<compile_context>
chip_gen: v7x
topology: tpu7x:2x2x1
jax: 0.10.0
libtpu: 0.0.40
codegen_flags: <defaults>
</compile_context>

<pallas_src>
import math
from functools import partial

import jax
import jax.numpy as jnp
from jax.experimental import pallas as pl
from jax.experimental.pallas import tpu as pltpu


# ----------------------------------------------------------------------------
# Fused Pallas kernel: one encoder layer per grid step (layer axis = grid),
# residual stream carried in VMEM scratch, decoder on the last step.
# ----------------------------------------------------------------------------
def transformer_kernel(x_ref,
                       wqkv_ref, bqkv_ref, wo_ref, bo_ref,
                       ln1w_ref, ln1b_ref,
                       w1_ref, b1_ref, w2_ref, b2_ref,
                       ln2w_ref, ln2b_ref,
                       dec_w_ref, dec_b_ref,
                       out_ref, x_sc,
                       *, num_heads, batch, seq):
    l = pl.program_id(0)
    n_layers = pl.num_programs(0)
    eps = 1e-5

    B, S, H = batch, seq, num_heads
    M, E = x_sc.shape                       # M = B * S (batch folded into M)
    Dh = E // H
    cd = wqkv_ref.dtype                     # matmul compute dtype (bf16)

    # ---- first layer: load the (pos-encoded) input into the residual scratch
    @pl.when(l == 0)
    def _():
        x_sc[...] = x_ref[...]

    x = x_sc[...]                           # (M, E) f32 residual stream

    def layernorm(v, w, b):
        mu = jnp.mean(v, axis=-1, keepdims=True)
        var = jnp.mean((v - mu) ** 2, axis=-1, keepdims=True)
        return (v - mu) * jax.lax.rsqrt(var + eps) * w + b

    # ---- QKV projection: whole (B*S, E) slab on the MXU (scale folded in Wq)
    qkv = jnp.dot(x.astype(cd), wqkv_ref[0],
                  preferred_element_type=jnp.float32) + bqkv_ref[0]     # (M, 3E)

    # ---- in-kernel causal mask (no (S,S) HBM operand)
    row = jax.lax.broadcasted_iota(jnp.int32, (S, S), 0)
    col = jax.lax.broadcasted_iota(jnp.int32, (S, S), 1)
    allowed = (col <= row)[None, :, :]                                   # (1,S,S)

    # ---- multi-head self-attention (per batch element, all heads batched)
    ctx_rows = []
    for b in range(B):                       # static loop; B small at demo shapes
        r0 = b * S
        q = qkv[r0:r0 + S, :E].reshape(S, H, Dh).astype(cd)
        k = qkv[r0:r0 + S, E:2 * E].reshape(S, H, Dh).astype(cd)
        v = qkv[r0:r0 + S, 2 * E:].reshape(S, H, Dh).astype(cd)

        s = jnp.einsum('qhd,khd->hqk', q, k,
                       preferred_element_type=jnp.float32)              # (H,S,S)
        s = jnp.where(allowed, s, -1e9)      # large finite negative (robust)
        s = s - jnp.max(s, axis=-1, keepdims=True)
        p = jnp.exp(s)
        p = p / jnp.sum(p, axis=-1, keepdims=True)                       # exact

        ctx = jnp.einsum('hqk,khd->qhd', p.astype(cd), v,
                         preferred_element_type=jnp.float32)             # (S,H,Dh)
        ctx_rows.append(ctx.reshape(S, E))
    ctx_all = jnp.concatenate(ctx_rows, axis=0) if B > 1 else ctx_rows[0]  # (M,E)

    attn = jnp.dot(ctx_all.astype(cd), wo_ref[0],
                   preferred_element_type=jnp.float32) + bo_ref[0]       # (M, E)

    # ---- residual + layernorm 1 (post-norm)
    y = layernorm(x + attn, ln1w_ref[0], ln1b_ref[0])

    # ---- feed-forward: linear -> relu -> linear (batch folded into M)
    h1 = jnp.dot(y.astype(cd), w1_ref[0],
                 preferred_element_type=jnp.float32) + b1_ref[0]         # (M, Hff)
    h1 = jnp.maximum(h1, 0.0)
    f = jnp.dot(h1.astype(cd), w2_ref[0],
                preferred_element_type=jnp.float32) + b2_ref[0]          # (M, E)

    # ---- residual + layernorm 2, carry to next layer step
    x_new = layernorm(y + f, ln2w_ref[0], ln2b_ref[0])
    x_sc[...] = x_new

    # ---- last layer: decoder linear (lane-dense padded output)
    @pl.when(l == n_layers - 1)
    def _():
        out = jnp.dot(x_new.astype(cd), dec_w_ref[...],
                      preferred_element_type=jnp.float32) + dec_b_ref[...]
        out_ref[...] = out.astype(out_ref.dtype)


# ----------------------------------------------------------------------------
# Wrapper: single fused pallas_call, grid over layers (weights streamed).
# ----------------------------------------------------------------------------
def fused_transformer(x_me, prepared, num_heads, batch, seq):
    """x_me: (B*S, E) f32 -> (B*S, Opad) f32."""
    M, E = x_me.shape
    L = prepared["wqkv"].shape[0]
    Opad = prepared["dec_w"].shape[1]

    layer_names = ("wqkv", "bqkv", "wo", "bo", "ln1w", "ln1b",
                   "w1", "b1", "w2", "b2", "ln2w", "ln2b")
    layer_ws = [prepared[n] for n in layer_names]
    dec_w, dec_b = prepared["dec_w"], prepared["dec_b"]

    def layer_spec(a):
        # One layer's slab per grid step -> double-buffered streaming of weights.
        nd = a.ndim
        return pl.BlockSpec((1,) + a.shape[1:],
                            lambda l, _nd=nd: (l,) + (0,) * (_nd - 1))

    def const_spec(a):
        # Constant block index over the layer axis -> DMA'd once, not re-fetched.
        nd = a.ndim
        return pl.BlockSpec(a.shape, lambda l, _nd=nd: (0,) * _nd)

    in_specs = ([const_spec(x_me)]
                + [layer_spec(w) for w in layer_ws]
                + [const_spec(dec_w), const_spec(dec_b)])
    out_spec = pl.BlockSpec((M, Opad), lambda l: (0, 0))

    # VMEM budget: 2x (double-buffered) per-layer weights + constants + working set.
    per_layer_bytes = sum((w.size // L) * w.dtype.itemsize for w in layer_ws)
    const_bytes = (x_me.size * 4 + dec_w.size * dec_w.dtype.itemsize
                   + dec_b.size * 4 + M * Opad * 4 + M * E * 4)
    work_bytes = (M * 3 * E + batch * num_heads * seq * seq * 3 + M * Opad) * 4
    vmem_limit = int(min(64 * 1024 * 1024,
                         max(32 * 1024 * 1024,
                             4 * (2 * per_layer_bytes + const_bytes + work_bytes))))

    return pl.pallas_call(
        partial(transformer_kernel, num_heads=num_heads, batch=batch, seq=seq),
        out_shape=jax.ShapeDtypeStruct((M, Opad), jnp.float32),
        grid=(L,),
        in_specs=in_specs,
        out_specs=out_spec,
        scratch_shapes=[pltpu.VMEM((M, E), jnp.float32)],   # residual stream carry
        compiler_params=pltpu.CompilerParams(
            dimension_semantics=("arbitrary",),             # layer axis = recurrence
            vmem_limit_bytes=vmem_limit),
    )(x_me, *layer_ws, dec_w, dec_b)


# ----------------------------------------------------------------------------
# Plain-JAX glue: positional encoding, params, host-side prep
# ----------------------------------------------------------------------------
def positional_encoding(seq_len, d_model):
    position = jnp.arange(seq_len, dtype=jnp.float32)[:, None]          # (S, 1)
    div_term = jnp.exp(jnp.arange(0, d_model, 2, dtype=jnp.float32)
                       * -(math.log(10000.0) / d_model))                # (E/2,)
    pe = jnp.zeros((seq_len, d_model), dtype=jnp.float32)
    pe = pe.at[:, 0::2].set(jnp.sin(position * div_term))
    pe = pe.at[:, 1::2].set(jnp.cos(position * div_term))
    return pe[:, None, :]                                               # (S, 1, E)


def init_params(key, input_dim, output_dim, hidden_dim, num_layers):
    """PyTorch-convention parameter shapes (weights as (out, in))."""
    E, H = input_dim, hidden_dim
    layers = []
    for _ in range(num_layers):
        key, k1, k2, k3, k4 = jax.random.split(key, 5)
        layers.append({
            "wqkv": 0.1 * jax.random.normal(k1, (3 * E, E), jnp.float32),
            "bqkv": jnp.zeros((3 * E,), jnp.float32),
            "wo":   0.1 * jax.random.normal(k2, (E, E), jnp.float32),
            "bo":   jnp.zeros((E,), jnp.float32),
            "ln1w": jnp.ones((E,), jnp.float32),
            "ln1b": jnp.zeros((E,), jnp.float32),
            "w1":   0.1 * jax.random.normal(k3, (H, E), jnp.float32),
            "b1":   jnp.zeros((H,), jnp.float32),
            "w2":   0.1 * jax.random.normal(k4, (E, H), jnp.float32),
            "b2":   jnp.zeros((E,), jnp.float32),
            "ln2w": jnp.ones((E,), jnp.float32),
            "ln2b": jnp.zeros((E,), jnp.float32),
        })
    key, kd = jax.random.split(key)
    dec_w = 0.1 * jax.random.normal(kd, (output_dim, E), jnp.float32)
    dec_b = jnp.zeros((output_dim,), jnp.float32)
    return {"layers": layers, "dec_w": dec_w, "dec_b": dec_b}


def prepare_params(params, num_heads, compute_dtype=jnp.bfloat16, lane=128):
    """Host-side one-time prep: stack layers, pre-transpose weights, fold the
    1/sqrt(Dh) scale into the Q projection, cast matmul weights to bf16 and
    pad the decoder to a lane-dense (multiple-of-128) output width."""
    E = params["layers"][0]["wqkv"].shape[1]
    Dh = E // num_heads
    scale = 1.0 / math.sqrt(Dh)

    def stk(name):
        return jnp.stack([lp[name] for lp in params["layers"]])

    wqkv = stk("wqkv")                                      # (L, 3E, E)
    bqkv = stk("bqkv")                                      # (L, 3E)
    wqkv = wqkv.at[:, :E, :].multiply(scale)                # fold attn scale into Wq
    bqkv = bqkv.at[:, :E].multiply(scale)

    prepared = {
        "wqkv": jnp.transpose(wqkv, (0, 2, 1)).astype(compute_dtype),       # (L, E, 3E)
        "bqkv": bqkv[:, None, :].astype(jnp.float32),                        # (L, 1, 3E)
        "wo":   jnp.transpose(stk("wo"), (0, 2, 1)).astype(compute_dtype),   # (L, E, E)
        "bo":   stk("bo")[:, None, :].astype(jnp.float32),
        "ln1w": stk("ln1w")[:, None, :].astype(jnp.float32),
        "ln1b": stk("ln1b")[:, None, :].astype(jnp.float32),
        "w1":   jnp.transpose(stk("w1"), (0, 2, 1)).astype(compute_dtype),   # (L, E, H)
        "b1":   stk("b1")[:, None, :].astype(jnp.float32),
        "w2":   jnp.transpose(stk("w2"), (0, 2, 1)).astype(compute_dtype),   # (L, H, E)
        "b2":   stk("b2")[:, None, :].astype(jnp.float32),
        "ln2w": stk("ln2w")[:, None, :].astype(jnp.float32),
        "ln2b": stk("ln2b")[:, None, :].astype(jnp.float32),
    }

    O = params["dec_w"].shape[0]
    Opad = max(lane, ((O + lane - 1) // lane) * lane)
    dec_w = jnp.zeros((E, Opad), jnp.float32).at[:, :O].set(params["dec_w"].T)
    dec_b = jnp.zeros((1, Opad), jnp.float32).at[:, :O].set(params["dec_b"][None, :])
    prepared["dec_w"] = dec_w.astype(compute_dtype)
    prepared["dec_b"] = dec_b
    return prepared


def my_transformer_forward(x_sbe, prepared, num_heads, output_dim):
    """x_sbe: (S, B, input_dim) -> (S, B, output_dim). PyTorch seq-first layout."""
    S, B, E = x_sbe.shape
    x = x_sbe + positional_encoding(S, E)                      # pos_encoder
    x_me = jnp.transpose(x, (1, 0, 2)).reshape(B * S, E).astype(jnp.float32)
    out_pad = fused_transformer(x_me, prepared, num_heads, B, S)   # (B*S, Opad)
    out = out_pad.reshape(B, S, -1)[:, :, :output_dim]         # drop lane padding
    return jnp.transpose(out, (1, 0, 2))                       # back to (S, B, O)


# ----------------------------------------------------------------------------
if __name__ == "__main__":
    # Small shapes consistent with the module's forward (seq-first input).
    S, B = 8, 2
    input_dim, output_dim, hidden_dim = 32, 8, 64
    num_layers, num_heads = 2, 4

    key = jax.random.PRNGKey(0)
    kx, kp = jax.random.split(key)
    x = jax.random.normal(kx, (S, B, input_dim), dtype=jnp.float32)

    raw_params = init_params(kp, input_dim, output_dim, hidden_dim, num_layers)
    prepared = prepare_params(raw_params, num_heads)

    out = my_transformer_forward(x, prepared, num_heads, output_dim)
    out = jax.block_until_ready(out)
    assert out.shape == (S, B, output_dim)
    assert bool(jnp.all(jnp.isfinite(out)))
    print("KERNEL_OK")
</pallas_src>

<mosaic_0001>
module attributes {stable_mosaic.version = 11 : i64} {
  func.func @transformer_kernel(%arg0: i32, %arg1: memref<16x32xf32, #tpu.memory_space<vmem>>, %arg2: memref<1x32x96xbf16, #tpu.memory_space<vmem>>, %arg3: memref<1x1x96xf32, #tpu.memory_space<vmem>>, %arg4: memref<1x32x32xbf16, #tpu.memory_space<vmem>>, %arg5: memref<1x1x32xf32, #tpu.memory_space<vmem>>, %arg6: memref<1x1x32xf32, #tpu.memory_space<vmem>>, %arg7: memref<1x1x32xf32, #tpu.memory_space<vmem>>, %arg8: memref<1x32x64xbf16, #tpu.memory_space<vmem>>, %arg9: memref<1x1x64xf32, #tpu.memory_space<vmem>>, %arg10: memref<1x64x32xbf16, #tpu.memory_space<vmem>>, %arg11: memref<1x1x32xf32, #tpu.memory_space<vmem>>, %arg12: memref<1x1x32xf32, #tpu.memory_space<vmem>>, %arg13: memref<1x1x32xf32, #tpu.memory_space<vmem>>, %arg14: memref<32x128xbf16, #tpu.memory_space<vmem>>, %arg15: memref<1x128xf32, #tpu.memory_space<vmem>>, %arg16: memref<16x128xf32, #tpu.memory_space<vmem>>, %arg17: memref<16x32xf32, #tpu.memory_space<vmem>>) attributes {dimension_semantics = [#tpu.dimension_semantics<arbitrary>], iteration_bounds = array<i64: 2>, scalar_prefetch = 0 : i64, scratch_operands = 1 : i64, tpu.core_type = #tpu.core_type<tc>, window_params = [{pipeline_mode = #tpu.pipeline_mode<synchronous>, transform_indices = @transform_0, window_bounds = array<i64: 16, 32>}, {transform_indices = @transform_1, window_bounds = array<i64: 1, 32, 96>}, {transform_indices = @transform_2, window_bounds = array<i64: 1, 1, 96>}, {transform_indices = @transform_3, window_bounds = array<i64: 1, 32, 32>}, {transform_indices = @transform_4, window_bounds = array<i64: 1, 1, 32>}, {transform_indices = @transform_5, window_bounds = array<i64: 1, 1, 32>}, {transform_indices = @transform_6, window_bounds = array<i64: 1, 1, 32>}, {transform_indices = @transform_7, window_bounds = array<i64: 1, 32, 64>}, {transform_indices = @transform_8, window_bounds = array<i64: 1, 1, 64>}, {transform_indices = @transform_9, window_bounds = array<i64: 1, 64, 32>}, {transform_indices = @transform_10, window_bounds = array<i64: 1, 1, 32>}, {transform_indices = @transform_11, window_bounds = array<i64: 1, 1, 32>}, {transform_indices = @transform_12, window_bounds = array<i64: 1, 1, 32>}, {pipeline_mode = #tpu.pipeline_mode<synchronous>, transform_indices = @transform_13, window_bounds = array<i64: 32, 128>}, {pipeline_mode = #tpu.pipeline_mode<synchronous>, transform_indices = @transform_14, window_bounds = array<i64: 1, 128>}, {pipeline_mode = #tpu.pipeline_mode<synchronous>, transform_indices = @transform_15, window_bounds = array<i64: 16, 128>}]} {
    %c0_i32 = arith.constant 0 : i32
    %0 = arith.cmpi eq, %arg0, %c0_i32 : i32
    %1 = arith.extui %0 : i1 to i32
    %c0_i32_0 = arith.constant 0 : i32
    %2 = arith.cmpi ne, %1, %c0_i32_0 : i32
    scf.if %2 {
      %c0_65 = arith.constant 0 : index
      %c0_66 = arith.constant 0 : index
      %155 = vector.load %arg1[%c0_65, %c0_66] : memref<16x32xf32, #tpu.memory_space<vmem>>, vector<16x32xf32>
      %c0_67 = arith.constant 0 : index
      %c0_68 = arith.constant 0 : index
      %156 = vector.load %arg17[%c0_67, %c0_68] : memref<16x32xf32, #tpu.memory_space<vmem>>, vector<16x32xf32>
      tpu.vector_store %arg17[%c0_67, %c0_68], %155 {strides = array<i32>} : memref<16x32xf32, #tpu.memory_space<vmem>>, vector<16x32xf32>,
    } else {
    }
    %c0 = arith.constant 0 : index
    %c0_1 = arith.constant 0 : index
    %3 = vector.load %arg17[%c0, %c0_1] : memref<16x32xf32, #tpu.memory_space<vmem>>, vector<16x32xf32>
    %4 = arith.truncf %3 : vector<16x32xf32> to vector<16x32xbf16>
    %c0_2 = arith.constant 0 : index
    %c0_3 = arith.constant 0 : index
    %c0_4 = arith.constant 0 : index
    %5 = vector.load %arg2[%c0_2, %c0_3, %c0_4] : memref<1x32x96xbf16, #tpu.memory_space<vmem>>, vector<1x32x96xbf16>
    %6 = vector.shape_cast %5 : vector<1x32x96xbf16> to vector<32x96xbf16>
    %cst = arith.constant dense<0.000000e+00> : vector<16x96xf32>
    %7 = tpu.matmul %4, %6, %cst {dimension_numbers = #tpu.dot_dimension_numbers<[1], [0], [0], [1], [0, 0, 1, 1], [], []>} : vector<16x32xbf16>, vector<32x96xbf16>, vector<16x96xf32> -> vector<16x96xf32>
    %c0_5 = arith.constant 0 : index
    %c0_6 = arith.constant 0 : index
    %c0_7 = arith.constant 0 : index
    %8 = vector.load %arg3[%c0_5, %c0_6, %c0_7] : memref<1x1x96xf32, #tpu.memory_space<vmem>>, vector<1x1x96xf32>
    %9 = vector.shape_cast %8 : vector<1x1x96xf32> to vector<1x96xf32>
    %10 = vector.broadcast %9 : vector<1x96xf32> to vector<16x96xf32>
    %11 = arith.addf %7, %10 : vector<16x96xf32>
    %12 = tpu.iota {dimensions = array<i32: 0>} : vector<8x8xi32>
    %13 = tpu.iota {dimensions = array<i32: 1>} : vector<8x8xi32>
    %14 = arith.cmpi sle, %13, %12 : vector<8x8xi32>
    %15 = vector.shape_cast %14 : vector<8x8xi1> to vector<1x8x8xi1>
    %16 = vector.extract_strided_slice %11 {offsets = [0, 0], sizes = [8, 32], strides = [1, 1]} : vector<16x96xf32> to vector<8x32xf32>
    %17 = vector.shape_cast %16 : vector<8x32xf32> to vector<8x4x8xf32>
    %18 = arith.truncf %17 : vector<8x4x8xf32> to vector<8x4x8xbf16>
    %19 = vector.extract_strided_slice %11 {offsets = [0, 32], sizes = [8, 32], strides = [1, 1]} : vector<16x96xf32> to vector<8x32xf32>
    %20 = vector.shape_cast %19 : vector<8x32xf32> to vector<8x4x8xf32>
    %21 = arith.truncf %20 : vector<8x4x8xf32> to vector<8x4x8xbf16>
    %22 = vector.extract_strided_slice %11 {offsets = [0, 64], sizes = [8, 32], strides = [1, 1]} : vector<16x96xf32> to vector<8x32xf32>
    %23 = vector.shape_cast %22 : vector<8x32xf32> to vector<8x4x8xf32>
    %24 = arith.truncf %23 : vector<8x4x8xf32> to vector<8x4x8xbf16>
    "tpu.trace_start"() <{level = 10 : i32, message = "qhd,khd->hqk"}> : () -> ()
    %cst_8 = arith.constant dense<0.000000e+00> : vector<4x8x8xf32>
    %25 = tpu.matmul %18, %21, %cst_8 {dimension_numbers = #tpu.dot_dimension_numbers<[2], [2], [0], [0], [0, 1, 0, 0, 1, 0], [1], [1]>} : vector<8x4x8xbf16>, vector<8x4x8xbf16>, vector<4x8x8xf32> -> vector<4x8x8xf32>
    %cst_9 = arith.constant -1.000000e+09 : f32
    "tpu.trace_stop"() : () -> ()
    %26 = vector.shape_cast %15 : vector<1x8x8xi1> to vector<1x8x8xi1>
    %27 = vector.broadcast %26 : vector<1x8x8xi1> to vector<4x8x8xi1>
    %28 = vector.broadcast %cst_9 : f32 to vector<4x8x8xf32>
    %29 = arith.select %27, %25, %28 : vector<4x8x8xi1>, vector<4x8x8xf32>
    %cst_10 = arith.constant dense<0xFF800000> : vector<4x8xf32>
    %30 = vector.multi_reduction <maximumf>, %29, %cst_10 [2] : vector<4x8x8xf32> to vector<4x8xf32>
    %31 = vector.shape_cast %30 : vector<4x8xf32> to vector<4x8x1xf32>
    %32 = vector.broadcast %31 : vector<4x8x1xf32> to vector<4x8x8xf32>
    %33 = arith.subf %29, %32 : vector<4x8x8xf32>
    %34 = math.exp %33 : vector<4x8x8xf32>
    %cst_11 = arith.constant dense<0.000000e+00> : vector<4x8xf32>
    %35 = vector.multi_reduction <add>, %34, %cst_11 [2] : vector<4x8x8xf32> to vector<4x8xf32>
    %36 = vector.shape_cast %35 : vector<4x8xf32> to vector<4x8x1xf32>
    %37 = vector.broadcast %36 : vector<4x8x1xf32> to vector<4x8x8xf32>
    %38 = arith.divf %34, %37 : vector<4x8x8xf32>
    %39 = arith.truncf %38 : vector<4x8x8xf32> to vector<4x8x8xbf16>
    "tpu.trace_start"() <{level = 10 : i32, message = "hqk,khd->qhd"}> : () -> ()
    %cst_12 = arith.constant dense<0.000000e+00> : vector<4x8x8xf32>
    %40 = tpu.matmul %24, %39, %cst_12 {dimension_numbers = #tpu.dot_dimension_numbers<[0], [2], [2], [1], [0, 1, 0, 2, 1, 1], [1], [0]>} : vector<8x4x8xbf16>, vector<4x8x8xbf16>, vector<4x8x8xf32> -> vector<4x8x8xf32>
    %41 = tpu.transpose %40, [2, 0, 1] : vector<4x8x8xf32> -> vector<8x4x8xf32>
    "tpu.trace_stop"() : () -> ()
    %42 = vector.shape_cast %41 : vector<8x4x8xf32> to vector<8x32xf32>
    %43 = vector.extract_strided_slice %11 {offsets = [8, 0], sizes = [8, 32], strides = [1, 1]} : vector<16x96xf32> to vector<8x32xf32>
    %44 = vector.shape_cast %43 : vector<8x32xf32> to vector<8x4x8xf32>
    %45 = arith.truncf %44 : vector<8x4x8xf32> to vector<8x4x8xbf16>
    %46 = vector.extract_strided_slice %11 {offsets = [8, 32], sizes = [8, 32], strides = [1, 1]} : vector<16x96xf32> to vector<8x32xf32>
    %47 = vector.shape_cast %46 : vector<8x32xf32> to vector<8x4x8xf32>
    %48 = arith.truncf %47 : vector<8x4x8xf32> to vector<8x4x8xbf16>
    %49 = vector.extract_strided_slice %11 {offsets = [8, 64], sizes = [8, 32], strides = [1, 1]} : vector<16x96xf32> to vector<8x32xf32>
    %50 = vector.shape_cast %49 : vector<8x32xf32> to vector<8x4x8xf32>
    %51 = arith.truncf %50 : vector<8x4x8xf32> to vector<8x4x8xbf16>
    "tpu.trace_start"() <{level = 10 : i32, message = "qhd,khd->hqk"}> : () -> ()
    %cst_13 = arith.constant dense<0.000000e+00> : vector<4x8x8xf32>
    %52 = tpu.matmul %45, %48, %cst_13 {dimension_numbers = #tpu.dot_dimension_numbers<[2], [2], [0], [0], [0, 1, 0, 0, 1, 0], [1], [1]>} : vector<8x4x8xbf16>, vector<8x4x8xbf16>, vector<4x8x8xf32> -> vector<4x8x8xf32>
    %cst_14 = arith.constant -1.000000e+09 : f32
    "tpu.trace_stop"() : () -> ()
    %53 = vector.shape_cast %15 : vector<1x8x8xi1> to vector<1x8x8xi1>
    %54 = vector.broadcast %53 : vector<1x8x8xi1> to vector<4x8x8xi1>
    %55 = vector.broadcast %cst_14 : f32 to vector<4x8x8xf32>
    %56 = arith.select %54, %52, %55 : vector<4x8x8xi1>, vector<4x8x8xf32>
    %cst_15 = arith.constant dense<0xFF800000> : vector<4x8xf32>
    %57 = vector.multi_reduction <maximumf>, %56, %cst_15 [2] : vector<4x8x8xf32> to vector<4x8xf32>
    %58 = vector.shape_cast %57 : vector<4x8xf32> to vector<4x8x1xf32>
    %59 = vector.broadcast %58 : vector<4x8x1xf32> to vector<4x8x8xf32>
    %60 = arith.subf %56, %59 : vector<4x8x8xf32>
    %61 = math.exp %60 : vector<4x8x8xf32>
    %cst_16 = arith.constant dense<0.000000e+00> : vector<4x8xf32>
    %62 = vector.multi_reduction <add>, %61, %cst_16 [2] : vector<4x8x8xf32> to vector<4x8xf32>
    %63 = vector.shape_cast %62 : vector<4x8xf32> to vector<4x8x1xf32>
    %64 = vector.broadcast %63 : vector<4x8x1xf32> to vector<4x8x8xf32>
    %65 = arith.divf %61, %64 : vector<4x8x8xf32>
    %66 = arith.truncf %65 : vector<4x8x8xf32> to vector<4x8x8xbf16>
    "tpu.trace_start"() <{level = 10 : i32, message = "hqk,khd->qhd"}> : () -> ()
    %cst_17 = arith.constant dense<0.000000e+00> : vector<4x8x8xf32>
    %67 = tpu.matmul %51, %66, %cst_17 {dimension_numbers = #tpu.dot_dimension_numbers<[0], [2], [2], [1], [0, 1, 0, 2, 1, 1], [1], [0]>} : vector<8x4x8xbf16>, vector<4x8x8xbf16>, vector<4x8x8xf32> -> vector<4x8x8xf32>
    %68 = tpu.transpose %67, [2, 0, 1] : vector<4x8x8xf32> -> vector<8x4x8xf32>
    "tpu.trace_stop"() : () -> ()
    %69 = vector.shape_cast %68 : vector<8x4x8xf32> to vector<8x32xf32>
    %70 = tpu.concatenate %42, %69 in 0 : vector<8x32xf32>, vector<8x32xf32> -> vector<16x32xf32>
    %71 = arith.truncf %70 : vector<16x32xf32> to vector<16x32xbf16>
    %c0_18 = arith.constant 0 : index
    %c0_19 = arith.constant 0 : index
    %c0_20 = arith.constant 0 : index
    %72 = vector.load %arg4[%c0_18, %c0_19, %c0_20] : memref<1x32x32xbf16, #tpu.memory_space<vmem>>, vector<1x32x32xbf16>
    %73 = vector.shape_cast %72 : vector<1x32x32xbf16> to vector<32x32xbf16>
    %cst_21 = arith.constant dense<0.000000e+00> : vector<16x32xf32>
    %74 = tpu.matmul %71, %73, %cst_21 {dimension_numbers = #tpu.dot_dimension_numbers<[1], [0], [0], [1], [0, 0, 1, 1], [], []>} : vector<16x32xbf16>, vector<32x32xbf16>, vector<16x32xf32> -> vector<16x32xf32>
    %c0_22 = arith.constant 0 : index
    %c0_23 = arith.constant 0 : index
    %c0_24 = arith.constant 0 : index
    %75 = vector.load %arg5[%c0_22, %c0_23, %c0_24] : memref<1x1x32xf32, #tpu.memory_space<vmem>>, vector<1x1x32xf32>
    %76 = vector.shape_cast %75 : vector<1x1x32xf32> to vector<1x32xf32>
    %77 = vector.broadcast %76 : vector<1x32xf32> to vector<16x32xf32>
    %78 = arith.addf %74, %77 : vector<16x32xf32>
    %79 = arith.addf %3, %78 : vector<16x32xf32>
    %c0_25 = arith.constant 0 : index
    %c0_26 = arith.constant 0 : index
    %c0_27 = arith.constant 0 : index
    %80 = vector.load %arg6[%c0_25, %c0_26, %c0_27] : memref<1x1x32xf32, #tpu.memory_space<vmem>>, vector<1x1x32xf32>
    %81 = vector.shape_cast %80 : vector<1x1x32xf32> to vector<1x32xf32>
    %c0_28 = arith.constant 0 : index
    %c0_29 = arith.constant 0 : index
    %c0_30 = arith.constant 0 : index
    %82 = vector.load %arg7[%c0_28, %c0_29, %c0_30] : memref<1x1x32xf32, #tpu.memory_space<vmem>>, vector<1x1x32xf32>
    %83 = vector.shape_cast %82 : vector<1x1x32xf32> to vector<1x32xf32>
    %cst_31 = arith.constant dense<0.000000e+00> : vector<16xf32>
    %84 = vector.multi_reduction <add>, %79, %cst_31 [1] : vector<16x32xf32> to vector<16xf32>
    %85 = vector.shape_cast %84 : vector<16xf32> to vector<16x1xf32>
    %cst_32 = arith.constant 3.200000e+01 : f32
    %86 = vector.broadcast %cst_32 : f32 to vector<16x1xf32>
    %87 = arith.divf %85, %86 : vector<16x1xf32>
    %88 = vector.broadcast %87 : vector<16x1xf32> to vector<16x32xf32>
    %89 = arith.subf %79, %88 : vector<16x32xf32>
    %90 = arith.mulf %89, %89 : vector<16x32xf32>
    %cst_33 = arith.constant dense<0.000000e+00> : vector<16xf32>
    %91 = vector.multi_reduction <add>, %90, %cst_33 [1] : vector<16x32xf32> to vector<16xf32>
    %92 = vector.shape_cast %91 : vector<16xf32> to vector<16x1xf32>
    %cst_34 = arith.constant 3.200000e+01 : f32
    %93 = vector.broadcast %cst_34 : f32 to vector<16x1xf32>
    %94 = arith.divf %92, %93 : vector<16x1xf32>
    %95 = vector.broadcast %87 : vector<16x1xf32> to vector<16x32xf32>
    %96 = arith.subf %79, %95 : vector<16x32xf32>
    %cst_35 = arith.constant 9.99999974E-6 : f32
    %97 = vector.broadcast %cst_35 : f32 to vector<16x1xf32>
    %98 = arith.addf %94, %97 : vector<16x1xf32>
    %99 = math.rsqrt %98 : vector<16x1xf32>
    %100 = vector.broadcast %99 : vector<16x1xf32> to vector<16x32xf32>
    %101 = arith.mulf %96, %100 : vector<16x32xf32>
    %102 = vector.broadcast %81 : vector<1x32xf32> to vector<16x32xf32>
    %103 = arith.mulf %101, %102 : vector<16x32xf32>
    %104 = vector.broadcast %83 : vector<1x32xf32> to vector<16x32xf32>
    %105 = arith.addf %103, %104 : vector<16x32xf32>
    %106 = arith.truncf %105 : vector<16x32xf32> to vector<16x32xbf16>
    %c0_36 = arith.constant 0 : index
    %c0_37 = arith.constant 0 : index
    %c0_38 = arith.constant 0 : index
    %107 = vector.load %arg8[%c0_36, %c0_37, %c0_38] : memref<1x32x64xbf16, #tpu.memory_space<vmem>>, vector<1x32x64xbf16>
    %108 = vector.shape_cast %107 : vector<1x32x64xbf16> to vector<32x64xbf16>
    %cst_39 = arith.constant dense<0.000000e+00> : vector<16x64xf32>
    %109 = tpu.matmul %106, %108, %cst_39 {dimension_numbers = #tpu.dot_dimension_numbers<[1], [0], [0], [1], [0, 0, 1, 1], [], []>} : vector<16x32xbf16>, vector<32x64xbf16>, vector<16x64xf32> -> vector<16x64xf32>
    %c0_40 = arith.constant 0 : index
    %c0_41 = arith.constant 0 : index
    %c0_42 = arith.constant 0 : index
    %110 = vector.load %arg9[%c0_40, %c0_41, %c0_42] : memref<1x1x64xf32, #tpu.memory_space<vmem>>, vector<1x1x64xf32>
    %111 = vector.shape_cast %110 : vector<1x1x64xf32> to vector<1x64xf32>
    %112 = vector.broadcast %111 : vector<1x64xf32> to vector<16x64xf32>
    %113 = arith.addf %109, %112 : vector<16x64xf32>
    %cst_43 = arith.constant 0.000000e+00 : f32
    %114 = vector.broadcast %cst_43 : f32 to vector<16x64xf32>
    %115 = arith.maximumf %113, %114 : vector<16x64xf32>
    %116 = arith.truncf %115 : vector<16x64xf32> to vector<16x64xbf16>
    %c0_44 = arith.constant 0 : index
    %c0_45 = arith.constant 0 : index
    %c0_46 = arith.constant 0 : index
    %117 = vector.load %arg10[%c0_44, %c0_45, %c0_46] : memref<1x64x32xbf16, #tpu.memory_space<vmem>>, vector<1x64x32xbf16>
    %118 = vector.shape_cast %117 : vector<1x64x32xbf16> to vector<64x32xbf16>
    %cst_47 = arith.constant dense<0.000000e+00> : vector<16x32xf32>
    %119 = tpu.matmul %116, %118, %cst_47 {dimension_numbers = #tpu.dot_dimension_numbers<[1], [0], [0], [1], [0, 0, 1, 1], [], []>} : vector<16x64xbf16>, vector<64x32xbf16>, vector<16x32xf32> -> vector<16x32xf32>
    %c0_48 = arith.constant 0 : index
    %c0_49 = arith.constant 0 : index
    %c0_50 = arith.constant 0 : index
    %120 = vector.load %arg11[%c0_48, %c0_49, %c0_50] : memref<1x1x32xf32, #tpu.memory_space<vmem>>, vector<1x1x32xf32>
    %121 = vector.shape_cast %120 : vector<1x1x32xf32> to vector<1x32xf32>
    %122 = vector.broadcast %121 : vector<1x32xf32> to vector<16x32xf32>
    %123 = arith.addf %119, %122 : vector<16x32xf32>
    %124 = arith.addf %105, %123 : vector<16x32xf32>
    %c0_51 = arith.constant 0 : index
    %c0_52 = arith.constant 0 : index
    %c0_53 = arith.constant 0 : index
    %125 = vector.load %arg12[%c0_51, %c0_52, %c0_53] : memref<1x1x32xf32, #tpu.memory_space<vmem>>, vector<1x1x32xf32>
    %126 = vector.shape_cast %125 : vector<1x1x32xf32> to vector<1x32xf32>
    %c0_54 = arith.constant 0 : index
    %c0_55 = arith.constant 0 : index
    %c0_56 = arith.constant 0 : index
    %127 = vector.load %arg13[%c0_54, %c0_55, %c0_56] : memref<1x1x32xf32, #tpu.memory_space<vmem>>, vector<1x1x32xf32>
    %128 = vector.shape_cast %127 : vector<1x1x32xf32> to vector<1x32xf32>
    %cst_57 = arith.constant dense<0.000000e+00> : vector<16xf32>
    %129 = vector.multi_reduction <add>, %124, %cst_57 [1] : vector<16x32xf32> to vector<16xf32>
    %130 = vector.shape_cast %129 : vector<16xf32> to vector<16x1xf32>
    %cst_58 = arith.constant 3.200000e+01 : f32
    %131 = vector.broadcast %cst_58 : f32 to vector<16x1xf32>
    %132 = arith.divf %130, %131 : vector<16x1xf32>
    %133 = vector.broadcast %132 : vector<16x1xf32> to vector<16x32xf32>
    %134 = arith.subf %124, %133 : vector<16x32xf32>
    %135 = arith.mulf %134, %134 : vector<16x32xf32>
    %cst_59 = arith.constant dense<0.000000e+00> : vector<16xf32>
    %136 = vector.multi_reduction <add>, %135, %cst_59 [1] : vector<16x32xf32> to vector<16xf32>
    %137 = vector.shape_cast %136 : vector<16xf32> to vector<16x1xf32>
    %cst_60 = arith.constant 3.200000e+01 : f32
    %138 = vector.broadcast %cst_60 : f32 to vector<16x1xf32>
    %139 = arith.divf %137, %138 : vector<16x1xf32>
    %140 = vector.broadcast %132 : vector<16x1xf32> to vector<16x32xf32>
    %141 = arith.subf %124, %140 : vector<16x32xf32>
    %cst_61 = arith.constant 9.99999974E-6 : f32
    %142 = vector.broadcast %cst_61 : f32 to vector<16x1xf32>
    %143 = arith.addf %139, %142 : vector<16x1xf32>
    %144 = math.rsqrt %143 : vector<16x1xf32>
    %145 = vector.broadcast %144 : vector<16x1xf32> to vector<16x32xf32>
    %146 = arith.mulf %141, %145 : vector<16x32xf32>
    %147 = vector.broadcast %126 : vector<1x32xf32> to vector<16x32xf32>
    %148 = arith.mulf %146, %147 : vector<16x32xf32>
    %149 = vector.broadcast %128 : vector<1x32xf32> to vector<16x32xf32>
    %150 = arith.addf %148, %149 : vector<16x32xf32>
    %c0_62 = arith.constant 0 : index
    %c0_63 = arith.constant 0 : index
    %151 = vector.load %arg17[%c0_62, %c0_63] : memref<16x32xf32, #tpu.memory_space<vmem>>, vector<16x32xf32>
    tpu.vector_store %arg17[%c0_62, %c0_63], %150 {strides = array<i32>} : memref<16x32xf32, #tpu.memory_space<vmem>>, vector<16x32xf32>,
    %c1_i32 = arith.constant 1 : i32
    %152 = arith.cmpi eq, %arg0, %c1_i32 : i32
    %153 = arith.extui %152 : i1 to i32
    %c0_i32_64 = arith.constant 0 : i32
    %154 = arith.cmpi ne, %153, %c0_i32_64 : i32
    scf.if %154 {
      %155 = arith.truncf %150 : vector<16x32xf32> to vector<16x32xbf16>
      %c0_65 = arith.constant 0 : index
      %c0_66 = arith.constant 0 : index
      %156 = vector.load %arg14[%c0_65, %c0_66] : memref<32x128xbf16, #tpu.memory_space<vmem>>, vector<32x128xbf16>
      %cst_67 = arith.constant dense<0.000000e+00> : vector<16x128xf32>
      %157 = tpu.matmul %155, %156, %cst_67 {dimension_numbers = #tpu.dot_dimension_numbers<[1], [0], [0], [1], [0, 0, 1, 1], [], []>} : vector<16x32xbf16>, vector<32x128xbf16>, vector<16x128xf32> -> vector<16x128xf32>
      %c0_68 = arith.constant 0 : index
      %c0_69 = arith.constant 0 : index
      %158 = vector.load %arg15[%c0_68, %c0_69] : memref<1x128xf32, #tpu.memory_space<vmem>>, vector<1x128xf32>
      %159 = vector.broadcast %158 : vector<1x128xf32> to vector<16x128xf32>
      %160 = arith.addf %157, %159 : vector<16x128xf32>
      %c0_70 = arith.constant 0 : index
      %c0_71 = arith.constant 0 : index
      %161 = vector.load %arg16[%c0_70, %c0_71] : memref<16x128xf32, #tpu.memory_space<vmem>>, vector<16x128xf32>
      tpu.vector_store %arg16[%c0_70, %c0_71], %160 {strides = array<i32>} : memref<16x128xf32, #tpu.memory_space<vmem>>, vector<16x128xf32>,
    } else {
    }
    return
  }
  func.func @transform_0(%arg0: i32) -> (i32, i32) {
    %c0_i32 = arith.constant 0 : i32
    %c0_i32_0 = arith.constant 0 : i32
    %c0_i32_1 = arith.constant 0 : i32
    return %c0_i32, %c0_i32_0 : i32, i32
  }
  func.func @transform_1(%arg0: i32) -> (i32, i32, i32) {
    %c0_i32 = arith.constant 0 : i32
    %c0_i32_0 = arith.constant 0 : i32
    %c0_i32_1 = arith.constant 0 : i32
    return %arg0, %c0_i32, %c0_i32_0 : i32, i32, i32
  }
  func.func @transform_2(%arg0: i32) -> (i32, i32, i32) {
    %c0_i32 = arith.constant 0 : i32
    %c0_i32_0 = arith.constant 0 : i32
    %c0_i32_1 = arith.constant 0 : i32
    return %arg0, %c0_i32, %c0_i32_0 : i32, i32, i32
  }
  func.func @transform_3(%arg0: i32) -> (i32, i32, i32) {
    %c0_i32 = arith.constant 0 : i32
    %c0_i32_0 = arith.constant 0 : i32
    %c0_i32_1 = arith.constant 0 : i32
    return %arg0, %c0_i32, %c0_i32_0 : i32, i32, i32
  }
  func.func @transform_4(%arg0: i32) -> (i32, i32, i32) {
    %c0_i32 = arith.constant 0 : i32
    %c0_i32_0 = arith.constant 0 : i32
    %c0_i32_1 = arith.constant 0 : i32
    return %arg0, %c0_i32, %c0_i32_0 : i32, i32, i32
  }
  func.func @transform_5(%arg0: i32) -> (i32, i32, i32) {
    %c0_i32 = arith.constant 0 : i32
    %c0_i32_0 = arith.constant 0 : i32
    %c0_i32_1 = arith.constant 0 : i32
    return %arg0, %c0_i32, %c0_i32_0 : i32, i32, i32
  }
  func.func @transform_6(%arg0: i32) -> (i32, i32, i32) {
    %c0_i32 = arith.constant 0 : i32
    %c0_i32_0 = arith.constant 0 : i32
    %c0_i32_1 = arith.constant 0 : i32
    return %arg0, %c0_i32, %c0_i32_0 : i32, i32, i32
  }
  func.func @transform_7(%arg0: i32) -> (i32, i32, i32) {
    %c0_i32 = arith.constant 0 : i32
    %c0_i32_0 = arith.constant 0 : i32
    %c0_i32_1 = arith.constant 0 : i32
    return %arg0, %c0_i32, %c0_i32_0 : i32, i32, i32
  }
  func.func @transform_8(%arg0: i32) -> (i32, i32, i32) {
    %c0_i32 = arith.constant 0 : i32
    %c0_i32_0 = arith.constant 0 : i32
    %c0_i32_1 = arith.constant 0 : i32
    return %arg0, %c0_i32, %c0_i32_0 : i32, i32, i32
  }
  func.func @transform_9(%arg0: i32) -> (i32, i32, i32) {
    %c0_i32 = arith.constant 0 : i32
    %c0_i32_0 = arith.constant 0 : i32
    %c0_i32_1 = arith.constant 0 : i32
    return %arg0, %c0_i32, %c0_i32_0 : i32, i32, i32
  }
  func.func @transform_10(%arg0: i32) -> (i32, i32, i32) {
    %c0_i32 = arith.constant 0 : i32
    %c0_i32_0 = arith.constant 0 : i32
    %c0_i32_1 = arith.constant 0 : i32
    return %arg0, %c0_i32, %c0_i32_0 : i32, i32, i32
  }
  func.func @transform_11(%arg0: i32) -> (i32, i32, i32) {
    %c0_i32 = arith.constant 0 : i32
    %c0_i32_0 = arith.constant 0 : i32
    %c0_i32_1 = arith.constant 0 : i32
    return %arg0, %c0_i32, %c0_i32_0 : i32, i32, i32
  }
  func.func @transform_12(%arg0: i32) -> (i32, i32, i32) {
    %c0_i32 = arith.constant 0 : i32
    %c0_i32_0 = arith.constant 0 : i32
    %c0_i32_1 = arith.constant 0 : i32
    return %arg0, %c0_i32, %c0_i32_0 : i32, i32, i32
  }
  func.func @transform_13(%arg0: i32) -> (i32, i32) {
    %c0_i32 = arith.constant 0 : i32
    %c0_i32_0 = arith.constant 0 : i32
    %c0_i32_1 = arith.constant 0 : i32
    return %c0_i32, %c0_i32_0 : i32, i32
  }
  func.func @transform_14(%arg0: i32) -> (i32, i32) {
    %c0_i32 = arith.constant 0 : i32
    %c0_i32_0 = arith.constant 0 : i32
    %c0_i32_1 = arith.constant 0 : i32
    return %c0_i32, %c0_i32_0 : i32, i32
  }
  func.func @transform_15(%arg0: i32) -> (i32, i32) {
    %c0_i32 = arith.constant 0 : i32
    %c0_i32_0 = arith.constant 0 : i32
    %c0_i32_1 = arith.constant 0 : i32
    return %c0_i32, %c0_i32_0 : i32, i32
  }
}

</mosaic_0001>

<llo_original>
// kernel: tpu_custom_call.1
$region0: #{tpu_custom_call.1}
  #allocation0 [shape = 'u32[]', space=smem, size = 0x4, offset = 0x4, fixed_abs, tag = 'smem constant byte address 0x4 - core index']
  #allocation1 [shape = 'u32[144,128]{1,0:T(1,128)}', space=vmem, size = 0x12000, scoped, tag = 'internal scratch']
  #allocation2 [shape = 'f32[16,32]{1,0:T(8,128)}', space=vmem, size = 0x2000, scoped, tag = 'scratch operand']
  %s0 = inlined_call_operand.hbm [shape: f32[16,32], index: 0, kind: input, shape index: {}]
  %s1 = inlined_call_operand.vmem [shape: bf16[2,32,96], index: 1, kind: input, shape index: {}]
  %s2 = inlined_call_operand.hbm [shape: f32[2,1,96], index: 2, kind: input, shape index: {}]
  %s3 = inlined_call_operand.vmem [shape: bf16[2,32,32], index: 3, kind: input, shape index: {}]
  %s4 = inlined_call_operand.hbm [shape: f32[2,1,32], index: 4, kind: input, shape index: {}]
  %s5 = inlined_call_operand.hbm [shape: f32[2,1,32], index: 5, kind: input, shape index: {}]
  %s6 = inlined_call_operand.hbm [shape: f32[2,1,32], index: 6, kind: input, shape index: {}]
  %s7 = inlined_call_operand.vmem [shape: bf16[2,32,64], index: 7, kind: input, shape index: {}]
  %s8 = inlined_call_operand.hbm [shape: f32[2,1,64], index: 8, kind: input, shape index: {}]
  %s9 = inlined_call_operand.vmem [shape: bf16[2,64,32], index: 9, kind: input, shape index: {}]
  %s10 = inlined_call_operand.hbm [shape: f32[2,1,32], index: 10, kind: input, shape index: {}]
  %s11 = inlined_call_operand.hbm [shape: f32[2,1,32], index: 11, kind: input, shape index: {}]
  %s12 = inlined_call_operand.hbm [shape: f32[2,1,32], index: 12, kind: input, shape index: {}]
  %s13 = inlined_call_operand.vmem [shape: bf16[32,128], index: 13, kind: input, shape index: {}]
  %s14 = inlined_call_operand.vmem [shape: f32[1,128], index: 14, kind: input, shape index: {}]
  %s15 = inlined_call_operand.hbm [shape: f32[16,128], index: 15, kind: output, shape index: {}]
  %s16 = sld [smem:[#allocation0]]
  $region137: #{tpu_custom_call.1} parent=0
    _
  %s18 = ssub.s32 1, %s16
  %s19 = scalar_select 0, %s18, %s16
  $region1: #{tpu_custom_call.1} parent=0
    #allocation3 [shape = 'u8[8192]{0}', space=vmem, size = 0x2000, scoped, tag = 'input window, operand 0, single buffered']
    #allocation4 [shape = 's32[2]{0}', space=sflag, size = 0x8, scoped, tag = 'scoped memory for tpu_custom_call.1']
    #allocation5 [shape = 's32[2]{0}', space=sflag, size = 0x8, scoped, tag = 'scoped memory for tpu_custom_call.1']
    #allocation6 [shape = 'u8[1024]{0}', space=vmem, size = 0x400, scoped, tag = 'input window, operand 2']
    #allocation7 [shape = 's32[2]{0}', space=sflag, size = 0x8, scoped, tag = 'scoped memory for tpu_custom_call.1']
    #allocation8 [shape = 'u8[1024]{0}', space=vmem, size = 0x400, scoped, tag = 'input window, operand 4']
    #allocation9 [shape = 'u8[1024]{0}', space=vmem, size = 0x400, scoped, tag = 'input window, operand 5']
    #allocation10 [shape = 's32[2]{0}', space=sflag, size = 0x8, scoped, tag = 'scoped memory for tpu_custom_call.1']
    #allocation11 [shape = 'u8[1024]{0}', space=vmem, size = 0x400, scoped, tag = 'input window, operand 6']
    #allocation12 [shape = 'u8[1024]{0}', space=vmem, size = 0x400, scoped, tag = 'input window, operand 8']
    #allocation13 [shape = 's32[2]{0}', space=sflag, size = 0x8, scoped, tag = 'scoped memory for tpu_custom_call.1']
    #allocation14 [shape = 'u8[1024]{0}', space=vmem, size = 0x400, scoped, tag = 'input window, operand 10']
    #allocation15 [shape = 'u8[1024]{0}', space=vmem, size = 0x400, scoped, tag = 'input window, operand 11']
    #allocation16 [shape = 's32[2]{0}', space=sflag, size = 0x8, scoped, tag = 'scoped memory for tpu_custom_call.1']
    #allocation17 [shape = 'u8[1024]{0}', space=vmem, size = 0x400, scoped, tag = 'input window, operand 12']
    #allocation18 [shape = 'u8[8192]{0}', space=vmem, size = 0x2000, scoped, tag = 'output window, operand 0, single buffered']
    %20 = vsyncpa [#allocation4], 0
    %21 = vsyncpa [#allocation7], 0
    %s22 = scalar_lea.sflag [#allocation7], 1
    %23 = vsyncpa %s22, 0
    %24 = vsyncpa [#allocation10], 0
    %s25 = scalar_lea.sflag [#allocation10], 1
    %26 = vsyncpa %s25, 0
    %27 = vsyncpa [#allocation13], 0
    %s28 = scalar_lea.sflag [#allocation13], 1
    %29 = vsyncpa %s28, 0
    %30 = vsyncpa [#allocation16], 0
    %s31 = scalar_lea.sflag [#allocation16], 1
    %32 = vsyncpa %s31, 0
    %33 = vsyncpa [#allocation5], 0
    loop: start=0, step=1, limit=4
    $region2: #{tpu_custom_call.1} parent=1 // loop_pre_header
      _
    $region3: #{tpu_custom_call.1} parent=1 // loop_header
      %s35 = sphi 0, %s39
      %p36 = scmp.ge.s32.totalorder %s35, 4
      %s43 = sphi 0, %s43
      %s45 = sphi 0, %s43
      %s46 = sphi 0, %s45
      %s60 = sphi 0, %s46
      %s66 = sphi 0, %s68
      %s69 = sphi 0, %s66
      %s70 = sphi 0, %s69
      %s86 = sphi 0, %s70
      %s92 = sphi 0, %s94
      %s95 = sphi 0, %s92
      %s96 = sphi 0, %s95
      %s112 = sphi 0, %s96
      %s118 = sphi 0, %s120
      %s121 = sphi 0, %s118
      %s122 = sphi 0, %s121
      %s138 = sphi 0, %s122
      %s144 = sphi 0, %s146
      %s147 = sphi 0, %s144
      %s148 = sphi 0, %s147
      %s164 = sphi 0, %s148
      %s170 = sphi 0, %s172
      %s173 = sphi 0, %s170
      %s174 = sphi 0, %s173
      %s190 = sphi 0, %s174
      %s196 = sphi 0, %s198
      %s199 = sphi 0, %s196
      %s200 = sphi 0, %s199
      %s216 = sphi 0, %s200
      %s222 = sphi 0, %s224
      %s225 = sphi 0, %s222
      %s226 = sphi 0, %s225
      %s242 = sphi 0, %s226
      %s248 = sphi 0, %s250
      %s251 = sphi 0, %s248
      %s252 = sphi 0, %s251
      %s268 = sphi 0, %s252
      %s274 = sphi 0, %s276
      %s277 = sphi 0, %s274
      %s278 = sphi 0, %s277
      %s294 = sphi 0, %s278
      %s300 = sphi 0, %s302
      %s303 = sphi 0, %s300
      %s304 = sphi 0, %s303
      %s320 = sphi 0, %s304
      %s326 = sphi 0, %s328
      %s329 = sphi 0, %s326
      %s330 = sphi 0, %s329
      %s346 = sphi 0, %s330
      %s352 = sphi 0, %s354
      %s355 = sphi 0, %s352
      %s356 = sphi 0, %s355
      %s372 = sphi 0, %s356
      %s376 = sphi 0, %s376
      %s378 = sphi 0, %s376
      %s379 = sphi 0, %s378
      %s393 = sphi 0, %s379
      %s397 = sphi 0, %s397
      %s399 = sphi 0, %s397
      %s400 = sphi 0, %s399
      %s414 = sphi 0, %s400
      %s418 = sphi 0, %s418
      %s420 = sphi 0, %s418
      %s421 = sphi 0, %s420
      %s435 = sphi 0, %s421
    $region4: #{tpu_custom_call.1} parent=1 // loop_header_branch
      %38 = sbr.rel (%p36) target = $region8
    $region5: #{tpu_custom_call.1} parent=1 // loop_body
      %s40 = ssub.s32 %s35, 1
      %s41 = ssub.s32 %s35, 2
      %s42 = sadd.s32 %s35, 1
      %s44 = sadd.s32 %s43, 1
      %p47 = scmp.eq.s32.totalorder %s35, 1
      %p48 = scmp.ne.s32.totalorder %s43, %s45
      %p49 = scmp.eq.s32.totalorder %s35, 0
      %p50 = por %p48, %p49
      %p51 = scmp.ne.s32.totalorder %s43, %s45
      %p52 = scmp.eq.s32.totalorder %s40, 1
      %p53 = por %p51, %p52
      %p54 = scmp.ne.s32.totalorder %s45, %s46
      %p55 = scmp.eq.s32.totalorder %s40, 0
      %p56 = por %p54, %p55
      %p57 = scmp.ne.s32.totalorder %s45, %s46
      %p58 = scmp.eq.s32.totalorder %s41, 1
      %p59 = por %p57, %p58
      %p61 = scmp.ne.s32.totalorder %s46, %s60
      %p62 = scmp.eq.s32.totalorder %s41, 0
      %p63 = por %p61, %p62
      %s64 = ssub.s32 %s35, %s42
      %p65 = scmp.eq.s32.totalorder %s64, 0
      %s67 = sadd.s32 %s66, 1
      %s68 = scalar_select %p65, %s66, %s67
      %p71 = pneg %p65
      %p72 = scmp.eq.s32.totalorder %s35, 1
      %p73 = por %p71, %p72
      %p74 = scmp.ne.s32.totalorder %s66, %s69
      %p75 = scmp.eq.s32.totalorder %s35, 0
      %p76 = por %p74, %p75
      %p77 = scmp.ne.s32.totalorder %s66, %s69
      %p78 = scmp.eq.s32.totalorder %s40, 1
      %p79 = por %p77, %p78
      %p80 = scmp.ne.s32.totalorder %s69, %s70
      %p81 = scmp.eq.s32.totalorder %s40, 0
      %p82 = por %p80, %p81
      %p83 = scmp.ne.s32.totalorder %s69, %s70
      %p84 = scmp.eq.s32.totalorder %s41, 1
      %p85 = por %p83, %p84
      %p87 = scmp.ne.s32.totalorder %s70, %s86
      %p88 = scmp.eq.s32.totalorder %s41, 0
      %p89 = por %p87, %p88
      %s90 = ssub.s32 %s35, %s42
      %p91 = scmp.eq.s32.totalorder %s90, 0
      %s93 = sadd.s32 %s92, 1
      %s94 = scalar_select %p91, %s92, %s93
      %p97 = pneg %p91
      %p98 = scmp.eq.s32.totalorder %s35, 1
      %p99 = por %p97, %p98
      %p100 = scmp.ne.s32.totalorder %s92, %s95
      %p101 = scmp.eq.s32.totalorder %s35, 0
      %p102 = por %p100, %p101
      %p103 = scmp.ne.s32.totalorder %s92, %s95
      %p104 = scmp.eq.s32.totalorder %s40, 1
      %p105 = por %p103, %p104
      %p106 = scmp.ne.s32.totalorder %s95, %s96
      %p107 = scmp.eq.s32.totalorder %s40, 0
      %p108 = por %p106, %p107
      %p109 = scmp.ne.s32.totalorder %s95, %s96
      %p110 = scmp.eq.s32.totalorder %s41, 1
      %p111 = por %p109, %p110
      %p113 = scmp.ne.s32.totalorder %s96, %s112
      %p114 = scmp.eq.s32.totalorder %s41, 0
      %p115 = por %p113, %p114
      %s116 = ssub.s32 %s35, %s42
      %p117 = scmp.eq.s32.totalorder %s116, 0
      %s119 = sadd.s32 %s118, 1
      %s120 = scalar_select %p117, %s118, %s119
      %p123 = pneg %p117
      %p124 = scmp.eq.s32.totalorder %s35, 1
      %p125 = por %p123, %p124
      %p126 = scmp.ne.s32.totalorder %s118, %s121
      %p127 = scmp.eq.s32.totalorder %s35, 0
      %p128 = por %p126, %p127
      %p129 = scmp.ne.s32.totalorder %s118, %s121
      %p130 = scmp.eq.s32.totalorder %s40, 1
      %p131 = por %p129, %p130
      %p132 = scmp.ne.s32.totalorder %s121, %s122
      %p133 = scmp.eq.s32.totalorder %s40, 0
      %p134 = por %p132, %p133
      %p135 = scmp.ne.s32.totalorder %s121, %s122
      %p136 = scmp.eq.s32.totalorder %s41, 1
      %p137 = por %p135, %p136
      %p139 = scmp.ne.s32.totalorder %s122, %s138
      %p140 = scmp.eq.s32.totalorder %s41, 0
      %p141 = por %p139, %p140
      %s142 = ssub.s32 %s35, %s42
      %p143 = scmp.eq.s32.totalorder %s142, 0
      %s145 = sadd.s32 %s144, 1
      %s146 = scalar_select %p143, %s144, %s145
      %p149 = pneg %p143
      %p150 = scmp.eq.s32.totalorder %s35, 1
      %p151 = por %p149, %p150
      %p152 = scmp.ne.s32.totalorder %s144, %s147
      %p153 = scmp.eq.s32.totalorder %s35, 0
      %p154 = por %p152, %p153
      %p155 = scmp.ne.s32.totalorder %s144, %s147
      %p156 = scmp.eq.s32.totalorder %s40, 1
      %p157 = por %p155, %p156
      %p158 = scmp.ne.s32.totalorder %s147, %s148
      %p159 = scmp.eq.s32.totalorder %s40, 0
      %p160 = por %p158, %p159
      %p161 = scmp.ne.s32.totalorder %s147, %s148
      %p162 = scmp.eq.s32.totalorder %s41, 1
      %p163 = por %p161, %p162
      %p165 = scmp.ne.s32.totalorder %s148, %s164
      %p166 = scmp.eq.s32.totalorder %s41, 0
      %p167 = por %p165, %p166
      %s168 = ssub.s32 %s35, %s42
      %p169 = scmp.eq.s32.totalorder %s168, 0
      %s171 = sadd.s32 %s170, 1
      %s172 = scalar_select %p169, %s170, %s171
      %p175 = pneg %p169
      %p176 = scmp.eq.s32.totalorder %s35, 1
      %p177 = por %p175, %p176
      %p178 = scmp.ne.s32.totalorder %s170, %s173
      %p179 = scmp.eq.s32.totalorder %s35, 0
      %p180 = por %p178, %p179
      %p181 = scmp.ne.s32.totalorder %s170, %s173
      %p182 = scmp.eq.s32.totalorder %s40, 1
      %p183 = por %p181, %p182
      %p184 = scmp.ne.s32.totalorder %s173, %s174
      %p185 = scmp.eq.s32.totalorder %s40, 0
      %p186 = por %p184, %p185
      %p187 = scmp.ne.s32.totalorder %s173, %s174
      %p188 = scmp.eq.s32.totalorder %s41, 1
      %p189 = por %p187, %p188
      %p191 = scmp.ne.s32.totalorder %s174, %s190
      %p192 = scmp.eq.s32.totalorder %s41, 0
      %p193 = por %p191, %p192
      %s194 = ssub.s32 %s35, %s42
      %p195 = scmp.eq.s32.totalorder %s194, 0
      %s197 = sadd.s32 %s196, 1
      %s198 = scalar_select %p195, %s196, %s197
      %p201 = pneg %p195
      %p202 = scmp.eq.s32.totalorder %s35, 1
      %p203 = por %p201, %p202
      %p204 = scmp.ne.s32.totalorder %s196, %s199
      %p205 = scmp.eq.s32.totalorder %s35, 0
      %p206 = por %p204, %p205
      %p207 = scmp.ne.s32.totalorder %s196, %s199
      %p208 = scmp.eq.s32.totalorder %s40, 1
      %p209 = por %p207, %p208
      %p210 = scmp.ne.s32.totalorder %s199, %s200
      %p211 = scmp.eq.s32.totalorder %s40, 0
      %p212 = por %p210, %p211
      %p213 = scmp.ne.s32.totalorder %s199, %s200
      %p214 = scmp.eq.s32.totalorder %s41, 1
      %p215 = por %p213, %p214
      %p217 = scmp.ne.s32.totalorder %s200, %s216
      %p218 = scmp.eq.s32.totalorder %s41, 0
      %p219 = por %p217, %p218
      %s220 = ssub.s32 %s35, %s42
      %p221 = scmp.eq.s32.totalorder %s220, 0
      %s223 = sadd.s32 %s222, 1
      %s224 = scalar_select %p221, %s222, %s223
      %p227 = pneg %p221
      %p228 = scmp.eq.s32.totalorder %s35, 1
      %p229 = por %p227, %p228
      %p230 = scmp.ne.s32.totalorder %s222, %s225
      %p231 = scmp.eq.s32.totalorder %s35, 0
      %p232 = por %p230, %p231
      %p233 = scmp.ne.s32.totalorder %s222, %s225
      %p234 = scmp.eq.s32.totalorder %s40, 1
      %p235 = por %p233, %p234
      %p236 = scmp.ne.s32.totalorder %s225, %s226
      %p237 = scmp.eq.s32.totalorder %s40, 0
      %p238 = por %p236, %p237
      %p239 = scmp.ne.s32.totalorder %s225, %s226
      %p240 = scmp.eq.s32.totalorder %s41, 1
      %p241 = por %p239, %p240
      %p243 = scmp.ne.s32.totalorder %s226, %s242
      %p244 = scmp.eq.s32.totalorder %s41, 0
      %p245 = por %p243, %p244
      %s246 = ssub.s32 %s35, %s42
      %p247 = scmp.eq.s32.totalorder %s246, 0
      %s249 = sadd.s32 %s248, 1
      %s250 = scalar_select %p247, %s248, %s249
      %p253 = pneg %p247
      %p254 = scmp.eq.s32.totalorder %s35, 1
      %p255 = por %p253, %p254
      %p256 = scmp.ne.s32.totalorder %s248, %s251
      %p257 = scmp.eq.s32.totalorder %s35, 0
      %p258 = por %p256, %p257
      %p259 = scmp.ne.s32.totalorder %s248, %s251
      %p260 = scmp.eq.s32.totalorder %s40, 1
      %p261 = por %p259, %p260
      %p262 = scmp.ne.s32.totalorder %s251, %s252
      %p263 = scmp.eq.s32.totalorder %s40, 0
      %p264 = por %p262, %p263
      %p265 = scmp.ne.s32.totalorder %s251, %s252
      %p266 = scmp.eq.s32.totalorder %s41, 1
      %p267 = por %p265, %p266
      %p269 = scmp.ne.s32.totalorder %s252, %s268
      %p270 = scmp.eq.s32.totalorder %s41, 0
      %p271 = por %p269, %p270
      %s272 = ssub.s32 %s35, %s42
      %p273 = scmp.eq.s32.totalorder %s272, 0
      %s275 = sadd.s32 %s274, 1
      %s276 = scalar_select %p273, %s274, %s275
      %p279 = pneg %p273
      %p280 = scmp.eq.s32.totalorder %s35, 1
      %p281 = por %p279, %p280
      %p282 = scmp.ne.s32.totalorder %s274, %s277
      %p283 = scmp.eq.s32.totalorder %s35, 0
      %p284 = por %p282, %p283
      %p285 = scmp.ne.s32.totalorder %s274, %s277
      %p286 = scmp.eq.s32.totalorder %s40, 1
      %p287 = por %p285, %p286
      %p288 = scmp.ne.s32.totalorder %s277, %s278
      %p289 = scmp.eq.s32.totalorder %s40, 0
      %p290 = por %p288, %p289
      %p291 = scmp.ne.s32.totalorder %s277, %s278
      %p292 = scmp.eq.s32.totalorder %s41, 1
      %p293 = por %p291, %p292
      %p295 = scmp.ne.s32.totalorder %s278, %s294
      %p296 = scmp.eq.s32.totalorder %s41, 0
      %p297 = por %p295, %p296
      %s298 = ssub.s32 %s35, %s42
      %p299 = scmp.eq.s32.totalorder %s298, 0
      %s301 = sadd.s32 %s300, 1
      %s302 = scalar_select %p299, %s300, %s301
      %p305 = pneg %p299
      %p306 = scmp.eq.s32.totalorder %s35, 1
      %p307 = por %p305, %p306
      %p308 = scmp.ne.s32.totalorder %s300, %s303
      %p309 = scmp.eq.s32.totalorder %s35, 0
      %p310 = por %p308, %p309
      %p311 = scmp.ne.s32.totalorder %s300, %s303
      %p312 = scmp.eq.s32.totalorder %s40, 1
      %p313 = por %p311, %p312
      %p314 = scmp.ne.s32.totalorder %s303, %s304
      %p315 = scmp.eq.s32.totalorder %s40, 0
      %p316 = por %p314, %p315
      %p317 = scmp.ne.s32.totalorder %s303, %s304
      %p318 = scmp.eq.s32.totalorder %s41, 1
      %p319 = por %p317, %p318
      %p321 = scmp.ne.s32.totalorder %s304, %s320
      %p322 = scmp.eq.s32.totalorder %s41, 0
      %p323 = por %p321, %p322
      %s324 = ssub.s32 %s35, %s42
      %p325 = scmp.eq.s32.totalorder %s324, 0
      %s327 = sadd.s32 %s326, 1
      %s328 = scalar_select %p325, %s326, %s327
      %p331 = pneg %p325
      %p332 = scmp.eq.s32.totalorder %s35, 1
      %p333 = por %p331, %p332
      %p334 = scmp.ne.s32.totalorder %s326, %s329
      %p335 = scmp.eq.s32.totalorder %s35, 0
      %p336 = por %p334, %p335
      %p337 = scmp.ne.s32.totalorder %s326, %s329
      %p338 = scmp.eq.s32.totalorder %s40, 1
      %p339 = por %p337, %p338
      %p340 = scmp.ne.s32.totalorder %s329, %s330
      %p341 = scmp.eq.s32.totalorder %s40, 0
      %p342 = por %p340, %p341
      %p343 = scmp.ne.s32.totalorder %s329, %s330
      %p344 = scmp.eq.s32.totalorder %s41, 1
      %p345 = por %p343, %p344
      %p347 = scmp.ne.s32.totalorder %s330, %s346
      %p348 = scmp.eq.s32.totalorder %s41, 0
      %p349 = por %p347, %p348
      %s350 = ssub.s32 %s35, %s42
      %p351 = scmp.eq.s32.totalorder %s350, 0
      %s353 = sadd.s32 %s352, 1
      %s354 = scalar_select %p351, %s352, %s353
      %p357 = pneg %p351
      %p358 = scmp.eq.s32.totalorder %s35, 1
      %p359 = por %p357, %p358
      %p360 = scmp.ne.s32.totalorder %s352, %s355
      %p361 = scmp.eq.s32.totalorder %s35, 0
      %p362 = por %p360, %p361
      %p363 = scmp.ne.s32.totalorder %s352, %s355
      %p364 = scmp.eq.s32.totalorder %s40, 1
      %p365 = por %p363, %p364
      %p366 = scmp.ne.s32.totalorder %s355, %s356
      %p367 = scmp.eq.s32.totalorder %s40, 0
      %p368 = por %p366, %p367
      %p369 = scmp.ne.s32.totalorder %s355, %s356
      %p370 = scmp.eq.s32.totalorder %s41, 1
      %p371 = por %p369, %p370
      %p373 = scmp.ne.s32.totalorder %s356, %s372
      %p374 = scmp.eq.s32.totalorder %s41, 0
      %p375 = por %p373, %p374
      %s377 = sadd.s32 %s376, 1
      %p380 = scmp.eq.s32.totalorder %s35, 1
      %p381 = scmp.ne.s32.totalorder %s376, %s378
      %p382 = scmp.eq.s32.totalorder %s35, 0
      %p383 = por %p381, %p382
      %p384 = scmp.ne.s32.totalorder %s376, %s378
      %p385 = scmp.eq.s32.totalorder %s40, 1
      %p386 = por %p384, %p385
      %p387 = scmp.ne.s32.totalorder %s378, %s379
      %p388 = scmp.eq.s32.totalorder %s40, 0
      %p389 = por %p387, %p388
      %p390 = scmp.ne.s32.totalorder %s378, %s379
      %p391 = scmp.eq.s32.totalorder %s41, 1
      %p392 = por %p390, %p391
      %p394 = scmp.ne.s32.totalorder %s379, %s393
      %p395 = scmp.eq.s32.totalorder %s41, 0
      %p396 = por %p394, %p395
      %s398 = sadd.s32 %s397, 1
      %p401 = scmp.eq.s32.totalorder %s35, 1
      %p402 = scmp.ne.s32.totalorder %s397, %s399
      %p403 = scmp.eq.s32.totalorder %s35, 0
      %p404 = por %p402, %p403
      %p405 = scmp.ne.s32.totalorder %s397, %s399
      %p406 = scmp.eq.s32.totalorder %s40, 1
      %p407 = por %p405, %p406
      %p408 = scmp.ne.s32.totalorder %s399, %s400
      %p409 = scmp.eq.s32.totalorder %s40, 0
      %p410 = por %p408, %p409
      %p411 = scmp.ne.s32.totalorder %s399, %s400
      %p412 = scmp.eq.s32.totalorder %s41, 1
      %p413 = por %p411, %p412
      %p415 = scmp.ne.s32.totalorder %s400, %s414
      %p416 = scmp.eq.s32.totalorder %s41, 0
      %p417 = por %p415, %p416
      %s419 = sadd.s32 %s418, 1
      %p422 = scmp.eq.s32.totalorder %s35, 1
      %p423 = scmp.ne.s32.totalorder %s418, %s420
      %p424 = scmp.eq.s32.totalorder %s35, 0
      %p425 = por %p423, %p424
      %p426 = scmp.ne.s32.totalorder %s418, %s420
      %p427 = scmp.eq.s32.totalorder %s40, 1
      %p428 = por %p426, %p427
      %p429 = scmp.ne.s32.totalorder %s420, %s421
      %p430 = scmp.eq.s32.totalorder %s40, 0
      %p431 = por %p429, %p430
      %p432 = scmp.ne.s32.totalorder %s420, %s421
      %p433 = scmp.eq.s32.totalorder %s41, 1
      %p434 = por %p432, %p433
      %p436 = scmp.ne.s32.totalorder %s421, %s435
      %p437 = scmp.eq.s32.totalorder %s41, 0
      %p438 = por %p436, %p437
      %p439 = scmp.le.s32.totalorder 1, %s35
      %p440 = scmp.lt.s32.totalorder %s35, 3
      %p441 = pnand %p439, %p440
      %p442 = pneg %p441
      // Predicated region
      $region9: #{tpu_custom_call.1} parent=5 // pred_check
        _
      $region10: #{tpu_custom_call.1} parent=5 // pred_check_branch
        %444 = sbr.rel (%p441) target = $region12
      $region11: #{tpu_custom_call.1} parent=5 // pred_region
        %s445 = ssub.s32 %s35, 1
        // Predicated region
        $region13: #{tpu_custom_call.1} parent=11 // pred_check
          %p446 = pneg %p56
        $region14: #{tpu_custom_call.1} parent=11 // pred_check_branch
          %448 = sbr.rel (%p446) target = $region16
        $region15: #{tpu_custom_call.1} parent=11 // pred_region
          %s450 = ssub.s32 256, 256
          %451 = vsyncadd [#allocation4], %s450
          %s452 = sshll.u32 [#allocation3], 4
          %s453 = int_to_ptr.vmem [resolvable:$true] %s452
          %458 = dma.hbm_to_vmem [thread:$0]  %s0, 256, %s453, [#allocation4], 128, 128, 8
        $region16: #{tpu_custom_call.1} parent=11 // pred_fallthru
          _
        // Predicated region
        $region17: #{tpu_custom_call.1} parent=11 // pred_check
          %p459 = pneg %p389
        $region18: #{tpu_custom_call.1} parent=11 // pred_check_branch
          %461 = sbr.rel (%p459) target = $region20
        $region19: #{tpu_custom_call.1} parent=11 // pred_region
          _
        $region20: #{tpu_custom_call.1} parent=11 // pred_fallthru
          _
        // Predicated region
        $region21: #{tpu_custom_call.1} parent=11 // pred_check
          %p462 = pneg %p410
        $region22: #{tpu_custom_call.1} parent=11 // pred_check_branch
          %464 = sbr.rel (%p462) target = $region24
        $region23: #{tpu_custom_call.1} parent=11 // pred_region
          _
        $region24: #{tpu_custom_call.1} parent=11 // pred_fallthru
          _
      $region12: #{tpu_custom_call.1} parent=5 // pred_fallthru
        _
      %p465 = scmp.lt.s32.totalorder %s35, 2
      // Predicated region
      $region25: #{tpu_custom_call.1} parent=5 // pred_check
        %p466 = pneg %p465
      $region26: #{tpu_custom_call.1} parent=5 // pred_check_branch
        %468 = sbr.rel (%p466) target = $region28
      $region27: #{tpu_custom_call.1} parent=5 // pred_region
        // Predicated region
        $region29: #{tpu_custom_call.1} parent=27 // pred_check
          %p469 = pneg %p76
        $region30: #{tpu_custom_call.1} parent=27 // pred_check_branch
          %471 = sbr.rel (%p469) target = $region32
        $region31: #{tpu_custom_call.1} parent=27 // pred_region
          %p472 = scmp.lt.s32.totalorder %s35, 1
          %s473 = scalar_select %p472, %s35, 1
          %s474 = smul.addr %s473, 4
          %s475 = smul.addr %s474, 4
          %s476 = scalar_lea.vmem %s1, %s475
        $region32: #{tpu_custom_call.1} parent=27 // pred_fallthru
          _
        // Predicated region
        $region33: #{tpu_custom_call.1} parent=27 // pred_check
          %p477 = pneg %p102
        $region34: #{tpu_custom_call.1} parent=27 // pred_check_branch
          %479 = sbr.rel (%p477) target = $region36
        $region35: #{tpu_custom_call.1} parent=27 // pred_region
          %s480 = sand.u32 %s35, 1
          %s481 = scalar_lea.sflag [#allocation7], %s480
          %s482 = sand.u32 %s92, 1
          %s483 = scalar_lea.vmem [#allocation6], %s482
          %s485 = ssub.s32 16, 16
          %486 = vsyncadd %s481, %s485
          %s487 = smul.addr %s35, 16
          %s488 = scalar_lea.hbm %s2, %s487
          %s490 = sshll.u32 %s483, 4
          %s491 = int_to_ptr.vmem [resolvable:$true] %s490
          %493 = dma.hbm_to_vmem [thread:$0]  %s488, 16, %s491, %s481
        $region36: #{tpu_custom_call.1} parent=27 // pred_fallthru
          _
        // Predicated region
        $region37: #{tpu_custom_call.1} parent=27 // pred_check
          %p494 = pneg %p128
        $region38: #{tpu_custom_call.1} parent=27 // pred_check_branch
          %496 = sbr.rel (%p494) target = $region40
        $region39: #{tpu_custom_call.1} parent=27 // pred_region
          %p497 = scmp.lt.s32.totalorder %s35, 1
          %s498 = scalar_select %p497, %s35, 1
          %s499 = smul.addr %s498, 4
          %s500 = smul.addr %s499, 4
          %s501 = scalar_lea.vmem %s3, %s500
        $region40: #{tpu_custom_call.1} parent=27 // pred_fallthru
          _
        // Predicated region
        $region41: #{tpu_custom_call.1} parent=27 // pred_check
          %p502 = pneg %p154
        $region42: #{tpu_custom_call.1} parent=27 // pred_check_branch
          %504 = sbr.rel (%p502) target = $region44
        $region43: #{tpu_custom_call.1} parent=27 // pred_region
          %s505 = sand.u32 %s35, 1
          %s506 = scalar_lea.sflag [#allocation7], %s505
          %s507 = sand.u32 %s144, 1
          %s508 = scalar_lea.vmem [#allocation8], %s507
          %s510 = ssub.s32 16, 16
          %511 = vsyncadd %s506, %s510
          %s512 = smul.addr %s35, 16
          %s513 = scalar_lea.hbm %s4, %s512
          %s515 = sshll.u32 %s508, 4
          %s516 = int_to_ptr.vmem [resolvable:$true] %s515
          %518 = dma.hbm_to_vmem [thread:$0]  %s513, 16, %s516, %s506
        $region44: #{tpu_custom_call.1} parent=27 // pred_fallthru
          _
        // Predicated region
        $region45: #{tpu_custom_call.1} parent=27 // pred_check
          %p519 = pneg %p180
        $region46: #{tpu_custom_call.1} parent=27 // pred_check_branch
          %521 = sbr.rel (%p519) target = $region48
        $region47: #{tpu_custom_call.1} parent=27 // pred_region
          %s522 = sand.u32 %s35, 1
          %s523 = scalar_lea.sflag [#allocation10], %s522
          %s524 = sand.u32 %s170, 1
          %s525 = scalar_lea.vmem [#allocation9], %s524
          %s527 = ssub.s32 16, 16
          %528 = vsyncadd %s523, %s527
          %s529 = smul.addr %s35, 16
          %s530 = scalar_lea.hbm %s5, %s529
          %s532 = sshll.u32 %s525, 4
          %s533 = int_to_ptr.vmem [resolvable:$true] %s532
          %535 = dma.hbm_to_vmem [thread:$0]  %s530, 16, %s533, %s523
        $region48: #{tpu_custom_call.1} parent=27 // pred_fallthru
          _
        // Predicated region
        $region49: #{tpu_custom_call.1} parent=27 // pred_check
          %p536 = pneg %p206
        $region50: #{tpu_custom_call.1} parent=27 // pred_check_branch
          %538 = sbr.rel (%p536) target = $region52
        $region51: #{tpu_custom_call.1} parent=27 // pred_region
          %s539 = sand.u32 %s35, 1
          %s540 = scalar_lea.sflag [#allocation10], %s539
          %s541 = sand.u32 %s196, 1
          %s542 = scalar_lea.vmem [#allocation11], %s541
          %s544 = ssub.s32 16, 16
          %545 = vsyncadd %s540, %s544
          %s546 = smul.addr %s35, 16
          %s547 = scalar_lea.hbm %s6, %s546
          %s549 = sshll.u32 %s542, 4
          %s550 = int_to_ptr.vmem [resolvable:$true] %s549
          %552 = dma.hbm_to_vmem [thread:$0]  %s547, 16, %s550, %s540
        $region52: #{tpu_custom_call.1} parent=27 // pred_fallthru
          _
        // Predicated region
        $region53: #{tpu_custom_call.1} parent=27 // pred_check
          %p553 = pneg %p232
        $region54: #{tpu_custom_call.1} parent=27 // pred_check_branch
          %555 = sbr.rel (%p553) target = $region56
        $region55: #{tpu_custom_call.1} parent=27 // pred_region
          %p556 = scmp.lt.s32.totalorder %s35, 1
          %s557 = scalar_select %p556, %s35, 1
          %s558 = smul.addr %s557, 4
          %s559 = smul.addr %s558, 4
          %s560 = scalar_lea.vmem %s7, %s559
        $region56: #{tpu_custom_call.1} parent=27 // pred_fallthru
          _
        // Predicated region
        $region57: #{tpu_custom_call.1} parent=27 // pred_check
          %p561 = pneg %p258
        $region58: #{tpu_custom_call.1} parent=27 // pred_check_branch
          %563 = sbr.rel (%p561) target = $region60
        $region59: #{tpu_custom_call.1} parent=27 // pred_region
          %s564 = sand.u32 %s35, 1
          %s565 = scalar_lea.sflag [#allocation13], %s564
          %s566 = sand.u32 %s248, 1
          %s567 = scalar_lea.vmem [#allocation12], %s566
          %s569 = ssub.s32 16, 16
          %570 = vsyncadd %s565, %s569
          %s571 = smul.addr %s35, 16
          %s572 = scalar_lea.hbm %s8, %s571
          %s574 = sshll.u32 %s567, 4
          %s575 = int_to_ptr.vmem [resolvable:$true] %s574
          %577 = dma.hbm_to_vmem [thread:$0]  %s572, 16, %s575, %s565
        $region60: #{tpu_custom_call.1} parent=27 // pred_fallthru
          _
        // Predicated region
        $region61: #{tpu_custom_call.1} parent=27 // pred_check
          %p578 = pneg %p284
        $region62: #{tpu_custom_call.1} parent=27 // pred_check_branch
          %580 = sbr.rel (%p578) target = $region64
        $region63: #{tpu_custom_call.1} parent=27 // pred_region
          %p581 = scmp.lt.s32.totalorder %s35, 1
          %s582 = scalar_select %p581, %s35, 1
          %s583 = smul.addr %s582, 8
          %s584 = smul.addr %s583, 4
          %s585 = scalar_lea.vmem %s9, %s584
        $region64: #{tpu_custom_call.1} parent=27 // pred_fallthru
          _
        // Predicated region
        $region65: #{tpu_custom_call.1} parent=27 // pred_check
          %p586 = pneg %p310
        $region66: #{tpu_custom_call.1} parent=27 // pred_check_branch
          %588 = sbr.rel (%p586) target = $region68
        $region67: #{tpu_custom_call.1} parent=27 // pred_region
          %s589 = sand.u32 %s35, 1
          %s590 = scalar_lea.sflag [#allocation13], %s589
          %s591 = sand.u32 %s300, 1
          %s592 = scalar_lea.vmem [#allocation14], %s591
          %s594 = ssub.s32 16, 16
          %595 = vsyncadd %s590, %s594
          %s596 = smul.addr %s35, 16
          %s597 = scalar_lea.hbm %s10, %s596
          %s599 = sshll.u32 %s592, 4
          %s600 = int_to_ptr.vmem [resolvable:$true] %s599
          %602 = dma.hbm_to_vmem [thread:$0]  %s597, 16, %s600, %s590
        $region68: #{tpu_custom_call.1} parent=27 // pred_fallthru
          _
        // Predicated region
        $region69: #{tpu_custom_call.1} parent=27 // pred_check
          %p603 = pneg %p336
        $region70: #{tpu_custom_call.1} parent=27 // pred_check_branch
          %605 = sbr.rel (%p603) target = $region72
        $region71: #{tpu_custom_call.1} parent=27 // pred_region
          %s606 = sand.u32 %s35, 1
          %s607 = scalar_lea.sflag [#allocation16], %s606
          %s608 = sand.u32 %s326, 1
          %s609 = scalar_lea.vmem [#allocation15], %s608
          %s611 = ssub.s32 16, 16
          %612 = vsyncadd %s607, %s611
          %s613 = smul.addr %s35, 16
          %s614 = scalar_lea.hbm %s11, %s613
          %s616 = sshll.u32 %s609, 4
          %s617 = int_to_ptr.vmem [resolvable:$true] %s616
          %619 = dma.hbm_to_vmem [thread:$0]  %s614, 16, %s617, %s607
        $region72: #{tpu_custom_call.1} parent=27 // pred_fallthru
          _
        // Predicated region
        $region73: #{tpu_custom_call.1} parent=27 // pred_check
          %p620 = pneg %p362
        $region74: #{tpu_custom_call.1} parent=27 // pred_check_branch
          %622 = sbr.rel (%p620) target = $region76
        $region75: #{tpu_custom_call.1} parent=27 // pred_region
          %s623 = sand.u32 %s35, 1
          %s624 = scalar_lea.sflag [#allocation16], %s623
          %s625 = sand.u32 %s352, 1
          %s626 = scalar_lea.vmem [#allocation17], %s625
          %s628 = ssub.s32 16, 16
          %629 = vsyncadd %s624, %s628
          %s630 = smul.addr %s35, 16
          %s631 = scalar_lea.hbm %s12, %s630
          %s633 = sshll.u32 %s626, 4
          %s634 = int_to_ptr.vmem [resolvable:$true] %s633
          %636 = dma.hbm_to_vmem [thread:$0]  %s631, 16, %s634, %s624
        $region76: #{tpu_custom_call.1} parent=27 // pred_fallthru
          _
      $region28: #{tpu_custom_call.1} parent=5 // pred_fallthru
        _
      %p637 = scmp.le.s32.totalorder 1, %s35
      %p638 = scmp.lt.s32.totalorder %s35, 3
      %p639 = pnand %p637, %p638
      %p640 = pneg %p639
      // Predicated region
      $region77: #{tpu_custom_call.1} parent=5 // pred_check
        _
      $region78: #{tpu_custom_call.1} parent=5 // pred_check_branch
        %642 = sbr.rel (%p639) target = $region80
      $region79: #{tpu_custom_call.1} parent=5 // pred_region
        %s643 = ssub.s32 %s35, 1
        // Predicated region
        $region81: #{tpu_custom_call.1} parent=79 // pred_check
          %p644 = pneg %p56
        $region82: #{tpu_custom_call.1} parent=79 // pred_check_branch
          %646 = sbr.rel (%p644) target = $region84
        $region83: #{tpu_custom_call.1} parent=79 // pred_region
          %647 = dma.done [#allocation4], 256
        $region84: #{tpu_custom_call.1} parent=79 // pred_fallthru
          _
        %s648 = sand.u32 %s40, 1
        %s649 = scalar_lea.sflag [#allocation7], %s648
        %s650 = sand.u32 %s95, 1
        %s651 = scalar_lea.vmem [#allocation6], %s650
        // Predicated region
        $region85: #{tpu_custom_call.1} parent=79 // pred_check
          %p652 = pneg %p108
        $region86: #{tpu_custom_call.1} parent=79 // pred_check_branch
          %654 = sbr.rel (%p652) target = $region88
        $region87: #{tpu_custom_call.1} parent=79 // pred_region
          %655 = dma.done %s649, 16
        $region88: #{tpu_custom_call.1} parent=79 // pred_fallthru
          _
        %s656 = sand.u32 %s40, 1
        %s657 = scalar_lea.sflag [#allocation7], %s656
        %s658 = sand.u32 %s147, 1
        %s659 = scalar_lea.vmem [#allocation8], %s658
        // Predicated region
        $region89: #{tpu_custom_call.1} parent=79 // pred_check
          %p660 = pneg %p160
        $region90: #{tpu_custom_call.1} parent=79 // pred_check_branch
          %662 = sbr.rel (%p660) target = $region92
        $region91: #{tpu_custom_call.1} parent=79 // pred_region
          %663 = dma.done %s657, 16
        $region92: #{tpu_custom_call.1} parent=79 // pred_fallthru
          _
        %s664 = sand.u32 %s40, 1
        %s665 = scalar_lea.sflag [#allocation10], %s664
        %s666 = sand.u32 %s173, 1
        %s667 = scalar_lea.vmem [#allocation9], %s666
        // Predicated region
        $region93: #{tpu_custom_call.1} parent=79 // pred_check
          %p668 = pneg %p186
        $region94: #{tpu_custom_call.1} parent=79 // pred_check_branch
          %670 = sbr.rel (%p668) target = $region96
        $region95: #{tpu_custom_call.1} parent=79 // pred_region
          %671 = dma.done %s665, 16
        $region96: #{tpu_custom_call.1} parent=79 // pred_fallthru
          _
        %s672 = sand.u32 %s40, 1
        %s673 = scalar_lea.sflag [#allocation10], %s672
        %s674 = sand.u32 %s199, 1
        %s675 = scalar_lea.vmem [#allocation11], %s674
        // Predicated region
        $region97: #{tpu_custom_call.1} parent=79 // pred_check
          %p676 = pneg %p212
        $region98: #{tpu_custom_call.1} parent=79 // pred_check_branch
          %678 = sbr.rel (%p676) target = $region100
        $region99: #{tpu_custom_call.1} parent=79 // pred_region
          %679 = dma.done %s673, 16
        $region100: #{tpu_custom_call.1} parent=79 // pred_fallthru
          _
        %s680 = sand.u32 %s40, 1
        %s681 = scalar_lea.sflag [#allocation13], %s680
        %s682 = sand.u32 %s251, 1
        %s683 = scalar_lea.vmem [#allocation12], %s682
        // Predicated region
        $region101: #{tpu_custom_call.1} parent=79 // pred_check
          %p684 = pneg %p264
        $region102: #{tpu_custom_call.1} parent=79 // pred_check_branch
          %686 = sbr.rel (%p684) target = $region104
        $region103: #{tpu_custom_call.1} parent=79 // pred_region
          %687 = dma.done %s681, 16
        $region104: #{tpu_custom_call.1} parent=79 // pred_fallthru
          _
        %s688 = sand.u32 %s40, 1
        %s689 = scalar_lea.sflag [#allocation13], %s688
        %s690 = sand.u32 %s303, 1
        %s691 = scalar_lea.vmem [#allocation14], %s690
        // Predicated region
        $region105: #{tpu_custom_call.1} parent=79 // pred_check
          %p692 = pneg %p316
        $region106: #{tpu_custom_call.1} parent=79 // pred_check_branch
          %694 = sbr.rel (%p692) target = $region108
        $region107: #{tpu_custom_call.1} parent=79 // pred_region
          %695 = dma.done %s689, 16
        $region108: #{tpu_custom_call.1} parent=79 // pred_fallthru
          _
        %s696 = sand.u32 %s40, 1
        %s697 = scalar_lea.sflag [#allocation16], %s696
        %s698 = sand.u32 %s329, 1
        %s699 = scalar_lea.vmem [#allocation15], %s698
        // Predicated region
        $region109: #{tpu_custom_call.1} parent=79 // pred_check
          %p700 = pneg %p342
        $region110: #{tpu_custom_call.1} parent=79 // pred_check_branch
          %702 = sbr.rel (%p700) target = $region112
        $region111: #{tpu_custom_call.1} parent=79 // pred_region
          %703 = dma.done %s697, 16
        $region112: #{tpu_custom_call.1} parent=79 // pred_fallthru
          _
        %s704 = sand.u32 %s40, 1
        %s705 = scalar_lea.sflag [#allocation16], %s704
        %s706 = sand.u32 %s355, 1
        %s707 = scalar_lea.vmem [#allocation17], %s706
        // Predicated region
        $region113: #{tpu_custom_call.1} parent=79 // pred_check
          %p708 = pneg %p368
        $region114: #{tpu_custom_call.1} parent=79 // pred_check_branch
          %710 = sbr.rel (%p708) target = $region116
        $region115: #{tpu_custom_call.1} parent=79 // pred_region
          %711 = dma.done %s705, 16
        $region116: #{tpu_custom_call.1} parent=79 // pred_fallthru
          _
        %p712 = pneg %p56
        %p713 = pneg %p53
        %p714 = scmp.lt.s32.totalorder %s40, 1
        %s715 = scalar_select %p714, %s40, 1
        %s716 = smul.addr %s715, 4
        %s717 = smul.addr %s716, 4
        %s718 = scalar_lea.vmem %s1, %s717
        %p719 = pneg %p82
        %p720 = pneg %p79
        %s721 = sand.u32 %s40, 1
        %s722 = scalar_lea.sflag [#allocation7], %s721
        %s723 = sand.u32 %s95, 1
        %s724 = scalar_lea.vmem [#allocation6], %s723
        %p725 = pneg %p108
        %p726 = pneg %p105
        %p727 = scmp.lt.s32.totalorder %s40, 1
        %s728 = scalar_select %p727, %s40, 1
        %s729 = smul.addr %s728, 4
        %s730 = smul.addr %s729, 4
        %s731 = scalar_lea.vmem %s3, %s730
        %p732 = pneg %p134
        %p733 = pneg %p131
        %s734 = sand.u32 %s40, 1
        %s735 = scalar_lea.sflag [#allocation7], %s734
        %s736 = sand.u32 %s147, 1
        %s737 = scalar_lea.vmem [#allocation8], %s736
        %p738 = pneg %p160
        %p739 = pneg %p157
        %s740 = sand.u32 %s40, 1
        %s741 = scalar_lea.sflag [#allocation10], %s740
        %s742 = sand.u32 %s173, 1
        %s743 = scalar_lea.vmem [#allocation9], %s742
        %p744 = pneg %p186
        %p745 = pneg %p183
        %s746 = sand.u32 %s40, 1
        %s747 = scalar_lea.sflag [#allocation10], %s746
        %s748 = sand.u32 %s199, 1
        %s749 = scalar_lea.vmem [#allocation11], %s748
        %p750 = pneg %p212
        %p751 = pneg %p209
        %p752 = scmp.lt.s32.totalorder %s40, 1
        %s753 = scalar_select %p752, %s40, 1
        %s754 = smul.addr %s753, 4
        %s755 = smul.addr %s754, 4
        %s756 = scalar_lea.vmem %s7, %s755
        %p757 = pneg %p238
        %p758 = pneg %p235
        %s759 = sand.u32 %s40, 1
        %s760 = scalar_lea.sflag [#allocation13], %s759
        %s761 = sand.u32 %s251, 1
        %s762 = scalar_lea.vmem [#allocation12], %s761
        %p763 = pneg %p264
        %p764 = pneg %p261
        %p765 = scmp.lt.s32.totalorder %s40, 1
        %s766 = scalar_select %p765, %s40, 1
        %s767 = smul.addr %s766, 8
        %s768 = smul.addr %s767, 4
        %s769 = scalar_lea.vmem %s9, %s768
        %p770 = pneg %p290
        %p771 = pneg %p287
        %s772 = sand.u32 %s40, 1
        %s773 = scalar_lea.sflag [#allocation13], %s772
        %s774 = sand.u32 %s303, 1
        %s775 = scalar_lea.vmem [#allocation14], %s774
        %p776 = pneg %p316
        %p777 = pneg %p313
        %s778 = sand.u32 %s40, 1
        %s779 = scalar_lea.sflag [#allocation16], %s778
        %s780 = sand.u32 %s329, 1
        %s781 = scalar_lea.vmem [#allocation15], %s780
        %p782 = pneg %p342
        %p783 = pneg %p339
        %s784 = sand.u32 %s40, 1
        %s785 = scalar_lea.sflag [#allocation16], %s784
        %s786 = sand.u32 %s355, 1
        %s787 = scalar_lea.vmem [#allocation17], %s786
        %p788 = pneg %p368
        %p789 = pneg %p365
        %p790 = pneg %p389
        %p791 = pneg %p386
        %p792 = pneg %p410
        %p793 = pneg %p407
        %p794 = pneg %p431
        %p795 = pneg %p428
        %p796 = scmp.lt.s32.totalorder %s40, 1
        %s797 = scalar_select %p796, %s40, 1
        %s798 = smul.addr %s797, 4
        %s799 = smul.addr %s798, 4
        %s800 = scalar_lea.vmem %s1, %s799
        %p801 = scmp.lt.s32.totalorder %s40, 1
        %s802 = scalar_select %p801, %s40, 1
        %s803 = smul.addr %s802, 4
        %s804 = smul.addr %s803, 4
        %s805 = scalar_lea.vmem %s3, %s804
        %p806 = scmp.lt.s32.totalorder %s40, 1
        %s807 = scalar_select %p806, %s40, 1
        %s808 = smul.addr %s807, 4
        %s809 = smul.addr %s808, 4
        %s810 = scalar_lea.vmem %s7, %s809
        %p811 = scmp.lt.s32.totalorder %s40, 1
        %s812 = scalar_select %p811, %s40, 1
        %s813 = smul.addr %s812, 8
        %s814 = smul.addr %s813, 4
        %s815 = scalar_lea.vmem %s9, %s814
        %p817 = scmp.eq.s32.totalorder %s40, 0
        // Predicated region
        $region117: #{tpu_custom_call.1} parent=79 // pred_check
          %p818 = pneg %p817
        $region118: #{tpu_custom_call.1} parent=79 // pred_check_branch
          %820 = sbr.rel (%p818) target = $region120
        $region119: #{tpu_custom_call.1} parent=79 // pred_region
          %v821 = vld [vmem:[#allocation3] sm:$0xff]
          %v822 = vld [vmem:[#allocation3 + $0x8] sm:$0xff]
          %vm823 = vcmask 261120
          %824 = vst.msk [vmem:[#allocation2] sm:$0xff] %vm823, %v821
          %825 = vst.msk [vmem:[#allocation2 + $0x8] sm:$0xff] %vm823, %v822
        $region120: #{tpu_custom_call.1} parent=79 // pred_fallthru
          _
        %v826 = vld [vmem:[#allocation2] sm:$0xff]
        %v827 = vld [vmem:[#allocation2 + $0x8] sm:$0xff]
        %v828 = vpack.c.bf16 %v827, %v826
        %v829 = vld [vmem:[%s800] sm:$0xf]
        %v830 = vld [vmem:[%s800 + $0x4] sm:$0xf]
        %v831 = vld [vmem:[%s800 + $0x8] sm:$0xf]
        %v832 = vld [vmem:[%s800 + $0xc] sm:$0xf]
        %v833 = vld [vmem:[%s651] sm:$0x1]
        %v835 = vlaneseq
        %v836 = vshrl.u32 %v835, 7
        %v837 = vsub.s32 0, %v836
        %v838 = vrot.slane %v833, %v837
        %v844 = vunpack.c.l.b16 %v829
        %v845 = vunpack.c.l.b16 %v830
        %v846 = vunpack.c.l.b16 %v831
        %v847 = vunpack.c.l.b16 %v832
        %v848 = vpack.c.b16 %v845, %v844
        %v849 = vpack.c.b16 %v847, %v846
        %vm852 = vcmask 261120
        %v854 = vsel %vm852, %v828, 0
        %856 = vmatprep.subr.bf16.mxu0 0
        %857 = vmatpush1.bf16.msra.mxu0 %v848
        %858 = vmatprep.subr.bf16.mxu0 0
        %859 = vmatpush1.bf16.msra.mxu0 %v849
        %860 = vmatprep.subr.bf16.mxu0 0
        %861 = vmatpush1.bf16.msra.mxu0 0
        %862 = vmatprep.subr.bf16.mxu0 0
        %863 = vmatpush1.bf16.msra.mxu0 0
        %864 = vmatprep.subr.bf16.mxu0 0
        %865 = vmatpush1.bf16.msra.mxu0 0
        %866 = vmatprep.subr.bf16.mxu0 0
        %867 = vmatpush1.bf16.msra.mxu0 0
        %868 = vmatprep.subr.bf16.mxu0 0
        %869 = vmatpush1.bf16.msra.mxu0 0
        %870 = vmatprep.subr.bf16.mxu0 0
        %871 = vmatpush1.bf16.msra.mxu0 0
        %872 = vmatprep.subr.bf16.mxu0 0
        %873 = vmatpush1.bf16.msra.mxu0 0
        %874 = vmatprep.subr.bf16.mxu0 0
        %875 = vmatpush1.bf16.msra.mxu0 0
        %876 = vmatprep.subr.bf16.mxu0 0
        %877 = vmatpush1.bf16.msra.mxu0 0
        %878 = vmatprep.subr.bf16.mxu0 0
        %879 = vmatpush1.bf16.msra.mxu0 0
        %880 = vmatprep.subr.bf16.mxu0 0
        %881 = vmatpush1.bf16.msra.mxu0 0
        %882 = vmatprep.subr.bf16.mxu0 0
        %883 = vmatpush1.bf16.msra.mxu0 0
        %884 = vmatprep.subr.bf16.mxu0 0
        %885 = vmatpush1.bf16.msra.mxu0 0
        %886 = vmatprep.subr.bf16.mxu0 0
        %887 = vmatpush1.bf16.msra.mxu0 0
        %888 = vmatprep.mubr.bf16.mxu0 0
        %889 = vmatmul.mubr.bf16.gmra.mrb[0].mxu0 %v854
        %v890 = vpop.f32.mrb[0].mxu0
        %v891 = vadd.f32 %v838, %v890
        %v892 = vpop.f32.mrb[0].mxu0
        %v893 = vpop.f32.mrb[0].mxu0
        %v894 = vadd.f32 %v838, %v893
        %v895 = vpop.f32.mrb[0].mxu0
        %896 = vdwg.mxu0
        %v897 = vlaneseq
        %v898 = vshrl.u32 %v897, 7
        %v899 = vlaneseq
        %v900 = vand.u32 %v899, 127
        %vm901 = vcmp.le.s32.totalorder %v900, %v898
        %903 = vrot.lane.b32.xlu0 %v891, 120
        %v904 = vpop.permute.xlu0 %903
        %906 = vrot.lane.b32.xlu0 %v891, 112
        %v907 = vpop.permute.xlu0 %906
        %909 = vrot.lane.b32.xlu0 %v891, 104
        %v910 = vpop.permute.xlu0 %909
        %v912 = vcombine.low %v891, %v907
        %v913 = vcombine.high %v891, %v907
        %v915 = vunpack.c.l.s4 1983009808
        %v916 = vunpack.c.0.s8 %v915
        %v917 = vlaneseq
        %v918 = vshrl.u32 %v917, 7
        %v919 = vsub.s32 %v916, %v918
        %v920 = vrot.slane %v912, %v919
        %v922 = vunpack.c.l.s4 1983009808
        %v923 = vunpack.c.0.s8 %v922
        %v924 = vlaneseq
        %v925 = vshrl.u32 %v924, 7
        %v926 = vsub.s32 %v923, %v925
        %v927 = vrot.slane %v913, %v926
        %v928 = vcombine.low %v904, %v910
        %v929 = vcombine.high %v904, %v910
        %v931 = vunpack.c.l.s4 1983009808
        %v932 = vunpack.c.0.s8 %v931
        %v933 = vlaneseq
        %v934 = vshrl.u32 %v933, 7
        %v935 = vsub.s32 %v932, %v934
        %v936 = vrot.slane %v928, %v935
        %v938 = vunpack.c.l.s4 1983009808
        %v939 = vunpack.c.0.s8 %v938
        %v940 = vlaneseq
        %v941 = vshrl.u32 %v940, 7
        %v942 = vsub.s32 %v939, %v941
        %v943 = vrot.slane %v929, %v942
        %v944 = vcombine.low %v920, %v936
        %v945 = vcombine.high %v920, %v936
        %v947 = vunpack.c.l.s4 1934713408
        %v948 = vunpack.c.0.s8 %v947
        %v949 = vlaneseq
        %v950 = vshrl.u32 %v949, 7
        %v951 = vsub.s32 %v948, %v950
        %v952 = vrot.slane %v944, %v951
        %v954 = vunpack.c.l.s4 1934713408
        %v955 = vunpack.c.0.s8 %v954
        %v956 = vlaneseq
        %v957 = vshrl.u32 %v956, 7
        %v958 = vsub.s32 %v955, %v957
        %v959 = vrot.slane %v945, %v958
        %v960 = vcombine.low %v927, %v943
        %v961 = vcombine.high %v927, %v943
        %v963 = vunpack.c.l.s4 1934713408
        %v964 = vunpack.c.0.s8 %v963
        %v965 = vlaneseq
        %v966 = vshrl.u32 %v965, 7
        %v967 = vsub.s32 %v964, %v966
        %v968 = vrot.slane %v960, %v967
        %v970 = vunpack.c.l.s4 1934713408
        %v971 = vunpack.c.0.s8 %v970
        %v972 = vlaneseq
        %v973 = vshrl.u32 %v972, 7
        %v974 = vsub.s32 %v971, %v973
        %v975 = vrot.slane %v961, %v974
        %v976 = vcombine.high %v952, 0.0
        %v977 = vcombine.high %v959, 0.0
        %v978 = vcombine.high %v968, 0.0
        %v979 = vcombine.high %v975, 0.0
        %v980 = vpack.c.bf16 %v952, %v952
        %v981 = vpack.c.bf16 %v976, %v976
        %v982 = vpack.c.bf16 %v959, %v959
        %v983 = vpack.c.bf16 %v977, %v977
        %v984 = vpack.c.bf16 %v968, %v968
        %v985 = vpack.c.bf16 %v978, %v978
        %v986 = vpack.c.bf16 %v975, %v975
        %v987 = vpack.c.bf16 %v979, %v979
        %988 = vrot.lane.b32.xlu0 %v891, 96
        %v989 = vpop.permute.xlu0 %988
        %990 = vrot.lane.b32.xlu0 %v904, 96
        %v991 = vpop.permute.xlu0 %990
        %992 = vrot.lane.b32.xlu0 %v907, 96
        %v993 = vpop.permute.xlu0 %992
        %994 = vrot.lane.b32.xlu0 %v910, 96
        %v995 = vpop.permute.xlu0 %994
        %v1000 = vcombine.low %v989, %v993
        %v1001 = vcombine.high %v989, %v993
        %v1003 = vunpack.c.l.s4 1983009808
        %v1004 = vunpack.c.0.s8 %v1003
        %v1005 = vlaneseq
        %v1006 = vshrl.u32 %v1005, 7
        %v1007 = vsub.s32 %v1004, %v1006
        %v1008 = vrot.slane %v1000, %v1007
        %v1010 = vunpack.c.l.s4 1983009808
        %v1011 = vunpack.c.0.s8 %v1010
        %v1012 = vlaneseq
        %v1013 = vshrl.u32 %v1012, 7
        %v1014 = vsub.s32 %v1011, %v1013
        %v1015 = vrot.slane %v1001, %v1014
        %v1016 = vcombine.low %v991, %v995
        %v1017 = vcombine.high %v991, %v995
        %v1019 = vunpack.c.l.s4 1983009808
        %v1020 = vunpack.c.0.s8 %v1019
        %v1021 = vlaneseq
        %v1022 = vshrl.u32 %v1021, 7
        %v1023 = vsub.s32 %v1020, %v1022
        %v1024 = vrot.slane %v1016, %v1023
        %v1026 = vunpack.c.l.s4 1983009808
        %v1027 = vunpack.c.0.s8 %v1026
        %v1028 = vlaneseq
        %v1029 = vshrl.u32 %v1028, 7
        %v1030 = vsub.s32 %v1027, %v1029
        %v1031 = vrot.slane %v1017, %v1030
        %v1032 = vcombine.low %v1008, %v1024
        %v1033 = vcombine.high %v1008, %v1024
        %v1035 = vunpack.c.l.s4 1934713408
        %v1036 = vunpack.c.0.s8 %v1035
        %v1037 = vlaneseq
        %v1038 = vshrl.u32 %v1037, 7
        %v1039 = vsub.s32 %v1036, %v1038
        %v1040 = vrot.slane %v1032, %v1039
        %v1042 = vunpack.c.l.s4 1934713408
        %v1043 = vunpack.c.0.s8 %v1042
        %v1044 = vlaneseq
        %v1045 = vshrl.u32 %v1044, 7
        %v1046 = vsub.s32 %v1043, %v1045
        %v1047 = vrot.slane %v1033, %v1046
        %v1048 = vcombine.low %v1015, %v1031
        %v1049 = vcombine.high %v1015, %v1031
        %v1051 = vunpack.c.l.s4 1934713408
        %v1052 = vunpack.c.0.s8 %v1051
        %v1053 = vlaneseq
        %v1054 = vshrl.u32 %v1053, 7
        %v1055 = vsub.s32 %v1052, %v1054
        %v1056 = vrot.slane %v1048, %v1055
        %v1058 = vunpack.c.l.s4 1934713408
        %v1059 = vunpack.c.0.s8 %v1058
        %v1060 = vlaneseq
        %v1061 = vshrl.u32 %v1060, 7
        %v1062 = vsub.s32 %v1059, %v1061
        %v1063 = vrot.slane %v1049, %v1062
        %v1064 = vcombine.high %v1040, 0.0
        %v1065 = vcombine.high %v1047, 0.0
        %v1066 = vcombine.high %v1056, 0.0
        %v1067 = vcombine.high %v1063, 0.0
        %v1068 = vpack.c.bf16 %v1040, %v1040
        %v1069 = vpack.c.bf16 %v1064, %v1064
        %v1070 = vpack.c.bf16 %v1047, %v1047
        %v1071 = vpack.c.bf16 %v1065, %v1065
        %v1072 = vpack.c.bf16 %v1056, %v1056
        %v1073 = vpack.c.bf16 %v1066, %v1066
        %v1074 = vpack.c.bf16 %v1063, %v1063
        %v1075 = vpack.c.bf16 %v1067, %v1067
        %1076 = vrot.lane.b32.xlu0 %v891, 64
        %v1077 = vpop.permute.xlu0 %1076
        %1078 = vrot.lane.b32.xlu0 %v904, 64
        %v1079 = vpop.permute.xlu0 %1078
        %1080 = vrot.lane.b32.xlu0 %v907, 64
        %v1081 = vpop.permute.xlu0 %1080
        %1082 = vrot.lane.b32.xlu0 %v910, 64
        %v1083 = vpop.permute.xlu0 %1082
        %v1088 = vcombine.low %v1077, %v1081
        %v1089 = vcombine.high %v1077, %v1081
        %v1091 = vunpack.c.l.s4 1983009808
        %v1092 = vunpack.c.0.s8 %v1091
        %v1093 = vlaneseq
        %v1094 = vshrl.u32 %v1093, 7
        %v1095 = vsub.s32 %v1092, %v1094
        %v1096 = vrot.slane %v1088, %v1095
        %v1098 = vunpack.c.l.s4 1983009808
        %v1099 = vunpack.c.0.s8 %v1098
        %v1100 = vlaneseq
        %v1101 = vshrl.u32 %v1100, 7
        %v1102 = vsub.s32 %v1099, %v1101
        %v1103 = vrot.slane %v1089, %v1102
        %v1104 = vcombine.low %v1079, %v1083
        %v1105 = vcombine.high %v1079, %v1083
        %v1107 = vunpack.c.l.s4 1983009808
        %v1108 = vunpack.c.0.s8 %v1107
        %v1109 = vlaneseq
        %v1110 = vshrl.u32 %v1109, 7
        %v1111 = vsub.s32 %v1108, %v1110
        %v1112 = vrot.slane %v1104, %v1111
        %v1114 = vunpack.c.l.s4 1983009808
        %v1115 = vunpack.c.0.s8 %v1114
        %v1116 = vlaneseq
        %v1117 = vshrl.u32 %v1116, 7
        %v1118 = vsub.s32 %v1115, %v1117
        %v1119 = vrot.slane %v1105, %v1118
        %v1120 = vcombine.low %v1096, %v1112
        %v1121 = vcombine.high %v1096, %v1112
        %v1123 = vunpack.c.l.s4 1934713408
        %v1124 = vunpack.c.0.s8 %v1123
        %v1125 = vlaneseq
        %v1126 = vshrl.u32 %v1125, 7
        %v1127 = vsub.s32 %v1124, %v1126
        %v1128 = vrot.slane %v1120, %v1127
        %v1130 = vunpack.c.l.s4 1934713408
        %v1131 = vunpack.c.0.s8 %v1130
        %v1132 = vlaneseq
        %v1133 = vshrl.u32 %v1132, 7
        %v1134 = vsub.s32 %v1131, %v1133
        %v1135 = vrot.slane %v1121, %v1134
        %v1136 = vcombine.low %v1103, %v1119
        %v1137 = vcombine.high %v1103, %v1119
        %v1139 = vunpack.c.l.s4 1934713408
        %v1140 = vunpack.c.0.s8 %v1139
        %v1141 = vlaneseq
        %v1142 = vshrl.u32 %v1141, 7
        %v1143 = vsub.s32 %v1140, %v1142
        %v1144 = vrot.slane %v1136, %v1143
        %v1146 = vunpack.c.l.s4 1934713408
        %v1147 = vunpack.c.0.s8 %v1146
        %v1148 = vlaneseq
        %v1149 = vshrl.u32 %v1148, 7
        %v1150 = vsub.s32 %v1147, %v1149
        %v1151 = vrot.slane %v1137, %v1150
        %v1152 = vcombine.high %v1128, 0.0
        %v1153 = vcombine.high %v1135, 0.0
        %v1154 = vcombine.high %v1144, 0.0
        %v1155 = vcombine.high %v1151, 0.0
        %v1156 = vpack.c.bf16 %v1128, %v1128
        %v1157 = vpack.c.bf16 %v1152, %v1152
        %v1158 = vpack.c.bf16 %v1135, %v1135
        %v1159 = vpack.c.bf16 %v1153, %v1153
        %v1160 = vpack.c.bf16 %v1144, %v1144
        %v1161 = vpack.c.bf16 %v1154, %v1154
        %v1162 = vpack.c.bf16 %v1151, %v1151
        %v1163 = vpack.c.bf16 %v1155, %v1155
        %v1164 = vcombine.low %v980, %v984
        %v1166 = vunpack.c.l.s4 1983009808
        %v1167 = vunpack.c.0.s8 %v1166
        %v1168 = vlaneseq
        %v1169 = vshrl.u32 %v1168, 7
        %v1170 = vsub.s32 %v1167, %v1169
        %v1171 = vrot.slane %v1164, %v1170
        %v1172 = vcombine.low %v982, %v986
        %v1174 = vunpack.c.l.s4 1983009808
        %v1175 = vunpack.c.0.s8 %v1174
        %v1176 = vlaneseq
        %v1177 = vshrl.u32 %v1176, 7
        %v1178 = vsub.s32 %v1175, %v1177
        %v1179 = vrot.slane %v1172, %v1178
        %v1180 = vcombine.low %v1171, %v1179
        %v1182 = vunpack.c.l.s4 1934713408
        %v1183 = vunpack.c.0.s8 %v1182
        %v1184 = vlaneseq
        %v1185 = vshrl.u32 %v1184, 7
        %v1186 = vsub.s32 %v1183, %v1185
        %v1187 = vrot.slane %v1180, %v1186
        %v1188 = vcombine.high %v1187, 0
        %v1189 = vcombine.low %v981, %v985
        %v1191 = vunpack.c.l.s4 1983009808
        %v1192 = vunpack.c.0.s8 %v1191
        %v1193 = vlaneseq
        %v1194 = vshrl.u32 %v1193, 7
        %v1195 = vsub.s32 %v1192, %v1194
        %v1196 = vrot.slane %v1189, %v1195
        %v1197 = vcombine.low %v983, %v987
        %v1199 = vunpack.c.l.s4 1983009808
        %v1200 = vunpack.c.0.s8 %v1199
        %v1201 = vlaneseq
        %v1202 = vshrl.u32 %v1201, 7
        %v1203 = vsub.s32 %v1200, %v1202
        %v1204 = vrot.slane %v1197, %v1203
        %v1205 = vcombine.low %v1196, %v1204
        %v1207 = vunpack.c.l.s4 1934713408
        %v1208 = vunpack.c.0.s8 %v1207
        %v1209 = vlaneseq
        %v1210 = vshrl.u32 %v1209, 7
        %v1211 = vsub.s32 %v1208, %v1210
        %v1212 = vrot.slane %v1205, %v1211
        %v1213 = vcombine.high %v1212, 0
        %v1216 = vpack.i.b16 %v1212, %v1187
        %v1217 = vshrl.u32 %v1187, 16
        %v1218 = vshrl.u32 %v1212, 16
        %v1219 = vpack.i.b16 %v1218, %v1217
        %v1222 = vpack.i.b16 %v1213, %v1188
        %v1223 = vshrl.u32 %v1188, 16
        %v1224 = vshrl.u32 %v1213, 16
        %v1225 = vpack.i.b16 %v1224, %v1223
        %1226 = vxpose.xlu0.c.b16.start [1/8] %v1068, 128
        %1227 = vxpose.xlu0.c.b16.cont [2/8] 0, 128
        %1228 = vxpose.xlu0.c.b16.cont [3/8] 0, 128
        %1229 = vxpose.xlu0.c.b16.cont [4/8] 0, 128
        %1230 = vxpose.xlu0.c.b16.cont [5/8] 0, 128
        %1231 = vxpose.xlu0.c.b16.cont [6/8] 0, 128
        %1232 = vxpose.xlu0.c.b16.cont [7/8] 0, 128
        %1233 = vxpose.xlu0.c.b16.end [8/8] 0, 128
        %v1234 = vpop.trf.xlu0
        %v1235 = vpop.trf.xlu0
        %v1236 = vpop.trf.xlu0
        %v1237 = vpop.trf.xlu0
        %v1238 = vpop.trf.xlu0
        %v1239 = vpop.trf.xlu0
        %v1240 = vpop.trf.xlu0
        %v1241 = vpop.trf.xlu0
        %1242 = vxpose.xlu0.c.b16.start [1/8] %v1069, 128
        %1243 = vxpose.xlu0.c.b16.cont [2/8] 0, 128
        %1244 = vxpose.xlu0.c.b16.cont [3/8] 0, 128
        %1245 = vxpose.xlu0.c.b16.cont [4/8] 0, 128
        %1246 = vxpose.xlu0.c.b16.cont [5/8] 0, 128
        %1247 = vxpose.xlu0.c.b16.cont [6/8] 0, 128
        %1248 = vxpose.xlu0.c.b16.cont [7/8] 0, 128
        %1249 = vxpose.xlu0.c.b16.end [8/8] 0, 128
        %v1250 = vpop.trf.xlu0
        %v1251 = vpop.trf.xlu0
        %v1252 = vpop.trf.xlu0
        %v1253 = vpop.trf.xlu0
        %v1254 = vpop.trf.xlu0
        %v1255 = vpop.trf.xlu0
        %v1256 = vpop.trf.xlu0
        %v1257 = vpop.trf.xlu0
        %1258 = vxpose.xlu0.c.b16.start [1/8] %v1070, 128
        %1259 = vxpose.xlu0.c.b16.cont [2/8] 0, 128
        %1260 = vxpose.xlu0.c.b16.cont [3/8] 0, 128
        %1261 = vxpose.xlu0.c.b16.cont [4/8] 0, 128
        %1262 = vxpose.xlu0.c.b16.cont [5/8] 0, 128
        %1263 = vxpose.xlu0.c.b16.cont [6/8] 0, 128
        %1264 = vxpose.xlu0.c.b16.cont [7/8] 0, 128
        %1265 = vxpose.xlu0.c.b16.end [8/8] 0, 128
        %v1266 = vpop.trf.xlu0
        %v1267 = vpop.trf.xlu0
        %v1268 = vpop.trf.xlu0
        %v1269 = vpop.trf.xlu0
        %v1270 = vpop.trf.xlu0
        %v1271 = vpop.trf.xlu0
        %v1272 = vpop.trf.xlu0
        %v1273 = vpop.trf.xlu0
        %1274 = vxpose.xlu0.c.b16.start [1/8] %v1071, 128
        %1275 = vxpose.xlu0.c.b16.cont [2/8] 0, 128
        %1276 = vxpose.xlu0.c.b16.cont [3/8] 0, 128
        %1277 = vxpose.xlu0.c.b16.cont [4/8] 0, 128
        %1278 = vxpose.xlu0.c.b16.cont [5/8] 0, 128
        %1279 = vxpose.xlu0.c.b16.cont [6/8] 0, 128
        %1280 = vxpose.xlu0.c.b16.cont [7/8] 0, 128
        %1281 = vxpose.xlu0.c.b16.end [8/8] 0, 128
        %v1282 = vpop.trf.xlu0
        %v1283 = vpop.trf.xlu0
        %v1284 = vpop.trf.xlu0
        %v1285 = vpop.trf.xlu0
        %v1286 = vpop.trf.xlu0
        %v1287 = vpop.trf.xlu0
        %v1288 = vpop.trf.xlu0
        %v1289 = vpop.trf.xlu0
        %1290 = vxpose.xlu0.c.b16.start [1/8] %v1072, 128
        %1291 = vxpose.xlu0.c.b16.cont [2/8] 0, 128
        %1292 = vxpose.xlu0.c.b16.cont [3/8] 0, 128
        %1293 = vxpose.xlu0.c.b16.cont [4/8] 0, 128
        %1294 = vxpose.xlu0.c.b16.cont [5/8] 0, 128
        %1295 = vxpose.xlu0.c.b16.cont [6/8] 0, 128
        %1296 = vxpose.xlu0.c.b16.cont [7/8] 0, 128
        %1297 = vxpose.xlu0.c.b16.end [8/8] 0, 128
        %v1298 = vpop.trf.xlu0
        %v1299 = vpop.trf.xlu0
        %v1300 = vpop.trf.xlu0
        %v1301 = vpop.trf.xlu0
        %v1302 = vpop.trf.xlu0
        %v1303 = vpop.trf.xlu0
        %v1304 = vpop.trf.xlu0
        %v1305 = vpop.trf.xlu0
        %1306 = vxpose.xlu0.c.b16.start [1/8] %v1073, 128
        %1307 = vxpose.xlu0.c.b16.cont [2/8] 0, 128
        %1308 = vxpose.xlu0.c.b16.cont [3/8] 0, 128
        %1309 = vxpose.xlu0.c.b16.cont [4/8] 0, 128
        %1310 = vxpose.xlu0.c.b16.cont [5/8] 0, 128
        %1311 = vxpose.xlu0.c.b16.cont [6/8] 0, 128
        %1312 = vxpose.xlu0.c.b16.cont [7/8] 0, 128
        %1313 = vxpose.xlu0.c.b16.end [8/8] 0, 128
        %v1314 = vpop.trf.xlu0
        %v1315 = vpop.trf.xlu0
        %v1316 = vpop.trf.xlu0
        %v1317 = vpop.trf.xlu0
        %v1318 = vpop.trf.xlu0
        %v1319 = vpop.trf.xlu0
        %v1320 = vpop.trf.xlu0
        %v1321 = vpop.trf.xlu0
        %1322 = vxpose.xlu0.c.b16.start [1/8] %v1074, 128
        %1323 = vxpose.xlu0.c.b16.cont [2/8] 0, 128
        %1324 = vxpose.xlu0.c.b16.cont [3/8] 0, 128
        %1325 = vxpose.xlu0.c.b16.cont [4/8] 0, 128
        %1326 = vxpose.xlu0.c.b16.cont [5/8] 0, 128
        %1327 = vxpose.xlu0.c.b16.cont [6/8] 0, 128
        %1328 = vxpose.xlu0.c.b16.cont [7/8] 0, 128
        %1329 = vxpose.xlu0.c.b16.end [8/8] 0, 128
        %v1330 = vpop.trf.xlu0
        %v1331 = vpop.trf.xlu0
        %v1332 = vpop.trf.xlu0
        %v1333 = vpop.trf.xlu0
        %v1334 = vpop.trf.xlu0
        %v1335 = vpop.trf.xlu0
        %v1336 = vpop.trf.xlu0
        %v1337 = vpop.trf.xlu0
        %1338 = vxpose.xlu0.c.b16.start [1/8] %v1075, 128
        %1339 = vxpose.xlu0.c.b16.cont [2/8] 0, 128
        %1340 = vxpose.xlu0.c.b16.cont [3/8] 0, 128
        %1341 = vxpose.xlu0.c.b16.cont [4/8] 0, 128
        %1342 = vxpose.xlu0.c.b16.cont [5/8] 0, 128
        %1343 = vxpose.xlu0.c.b16.cont [6/8] 0, 128
        %1344 = vxpose.xlu0.c.b16.cont [7/8] 0, 128
        %1345 = vxpose.xlu0.c.b16.end [8/8] 0, 128
        %v1346 = vpop.trf.xlu0
        %v1347 = vpop.trf.xlu0
        %v1348 = vpop.trf.xlu0
        %v1349 = vpop.trf.xlu0
        %v1350 = vpop.trf.xlu0
        %v1351 = vpop.trf.xlu0
        %v1352 = vpop.trf.xlu0
        %v1353 = vpop.trf.xlu0
        %v1354 = vcombine.low %v1234, %v1298
        %v1356 = vunpack.c.l.s4 1983009808
        %v1357 = vunpack.c.0.s8 %v1356
        %v1358 = vlaneseq
        %v1359 = vshrl.u32 %v1358, 7
        %v1360 = vsub.s32 %v1357, %v1359
        %v1361 = vrot.slane %v1354, %v1360
        %v1362 = vcombine.low %v1266, %v1330
        %v1364 = vunpack.c.l.s4 1983009808
        %v1365 = vunpack.c.0.s8 %v1364
        %v1366 = vlaneseq
        %v1367 = vshrl.u32 %v1366, 7
        %v1368 = vsub.s32 %v1365, %v1367
        %v1369 = vrot.slane %v1362, %v1368
        %v1370 = vcombine.low %v1361, %v1369
        %v1371 = vcombine.high %v1361, %v1369
        %v1373 = vunpack.c.l.s4 1934713408
        %v1374 = vunpack.c.0.s8 %v1373
        %v1375 = vlaneseq
        %v1376 = vshrl.u32 %v1375, 7
        %v1377 = vsub.s32 %v1374, %v1376
        %v1378 = vrot.slane %v1370, %v1377
        %v1380 = vunpack.c.l.s4 1934713408
        %v1381 = vunpack.c.0.s8 %v1380
        %v1382 = vlaneseq
        %v1383 = vshrl.u32 %v1382, 7
        %v1384 = vsub.s32 %v1381, %v1383
        %v1385 = vrot.slane %v1371, %v1384
        %v1386 = vcombine.high %v1378, 0
        %v1387 = vcombine.high %v1385, 0
        %v1388 = vcombine.low %v1250, %v1314
        %v1390 = vunpack.c.l.s4 1983009808
        %v1391 = vunpack.c.0.s8 %v1390
        %v1392 = vlaneseq
        %v1393 = vshrl.u32 %v1392, 7
        %v1394 = vsub.s32 %v1391, %v1393
        %v1395 = vrot.slane %v1388, %v1394
        %v1396 = vcombine.low %v1282, %v1346
        %v1398 = vunpack.c.l.s4 1983009808
        %v1399 = vunpack.c.0.s8 %v1398
        %v1400 = vlaneseq
        %v1401 = vshrl.u32 %v1400, 7
        %v1402 = vsub.s32 %v1399, %v1401
        %v1403 = vrot.slane %v1396, %v1402
        %v1404 = vcombine.low %v1395, %v1403
        %v1405 = vcombine.high %v1395, %v1403
        %v1407 = vunpack.c.l.s4 1934713408
        %v1408 = vunpack.c.0.s8 %v1407
        %v1409 = vlaneseq
        %v1410 = vshrl.u32 %v1409, 7
        %v1411 = vsub.s32 %v1408, %v1410
        %v1412 = vrot.slane %v1404, %v1411
        %v1414 = vunpack.c.l.s4 1934713408
        %v1415 = vunpack.c.0.s8 %v1414
        %v1416 = vlaneseq
        %v1417 = vshrl.u32 %v1416, 7
        %v1418 = vsub.s32 %v1415, %v1417
        %v1419 = vrot.slane %v1405, %v1418
        %v1420 = vcombine.high %v1412, 0
        %v1421 = vcombine.high %v1419, 0
        %v1424 = vpack.i.b16 %v1412, %v1378
        %v1426 = vshrl.u32 %v1378, 16
        %v1427 = vshrl.u32 %v1412, 16
        %v1428 = vpack.i.b16 %v1427, %v1426
        %v1432 = vpack.i.b16 %v1420, %v1386
        %v1434 = vshrl.u32 %v1386, 16
        %v1435 = vshrl.u32 %v1420, 16
        %v1436 = vpack.i.b16 %v1435, %v1434
        %v1440 = vpack.i.b16 %v1419, %v1385
        %v1442 = vshrl.u32 %v1385, 16
        %v1443 = vshrl.u32 %v1419, 16
        %v1444 = vpack.i.b16 %v1443, %v1442
        %v1448 = vpack.i.b16 %v1421, %v1387
        %v1450 = vshrl.u32 %v1387, 16
        %v1451 = vshrl.u32 %v1421, 16
        %v1452 = vpack.i.b16 %v1451, %v1450
        %1454 = vxpose.xlu0.c.b16.start [1/8] %v1424, 128
        %1455 = vxpose.xlu0.c.b16.cont [2/8] 0, 128
        %1456 = vxpose.xlu0.c.b16.cont [3/8] 0, 128
        %1457 = vxpose.xlu0.c.b16.cont [4/8] 0, 128
        %1458 = vxpose.xlu0.c.b16.cont [5/8] 0, 128
        %1459 = vxpose.xlu0.c.b16.cont [6/8] 0, 128
        %1460 = vxpose.xlu0.c.b16.cont [7/8] 0, 128
        %1461 = vxpose.xlu0.c.b16.end [8/8] 0, 128
        %v1462 = vpop.trf.xlu0
        %v1463 = vpop.trf.xlu0
        %v1464 = vpop.trf.xlu0
        %v1465 = vpop.trf.xlu0
        %v1466 = vpop.trf.xlu0
        %v1467 = vpop.trf.xlu0
        %v1468 = vpop.trf.xlu0
        %v1469 = vpop.trf.xlu0
        %1470 = vxpose.xlu0.c.b16.start [1/8] %v1428, 128
        %1471 = vxpose.xlu0.c.b16.cont [2/8] 0, 128
        %1472 = vxpose.xlu0.c.b16.cont [3/8] 0, 128
        %1473 = vxpose.xlu0.c.b16.cont [4/8] 0, 128
        %1474 = vxpose.xlu0.c.b16.cont [5/8] 0, 128
        %1475 = vxpose.xlu0.c.b16.cont [6/8] 0, 128
        %1476 = vxpose.xlu0.c.b16.cont [7/8] 0, 128
        %1477 = vxpose.xlu0.c.b16.end [8/8] 0, 128
        %v1478 = vpop.trf.xlu0
        %v1479 = vpop.trf.xlu0
        %v1480 = vpop.trf.xlu0
        %v1481 = vpop.trf.xlu0
        %v1482 = vpop.trf.xlu0
        %v1483 = vpop.trf.xlu0
        %v1484 = vpop.trf.xlu0
        %v1485 = vpop.trf.xlu0
        %1486 = vxpose.xlu0.c.b16.start [1/8] %v1432, 128
        %1487 = vxpose.xlu0.c.b16.cont [2/8] 0, 128
        %1488 = vxpose.xlu0.c.b16.cont [3/8] 0, 128
        %1489 = vxpose.xlu0.c.b16.cont [4/8] 0, 128
        %1490 = vxpose.xlu0.c.b16.cont [5/8] 0, 128
        %1491 = vxpose.xlu0.c.b16.cont [6/8] 0, 128
        %1492 = vxpose.xlu0.c.b16.cont [7/8] 0, 128
        %1493 = vxpose.xlu0.c.b16.end [8/8] 0, 128
        %v1494 = vpop.trf.xlu0
        %v1495 = vpop.trf.xlu0
        %v1496 = vpop.trf.xlu0
        %v1497 = vpop.trf.xlu0
        %v1498 = vpop.trf.xlu0
        %v1499 = vpop.trf.xlu0
        %v1500 = vpop.trf.xlu0
        %v1501 = vpop.trf.xlu0
        %1502 = vxpose.xlu0.c.b16.start [1/8] %v1436, 128
        %1503 = vxpose.xlu0.c.b16.cont [2/8] 0, 128
        %1504 = vxpose.xlu0.c.b16.cont [3/8] 0, 128
        %1505 = vxpose.xlu0.c.b16.cont [4/8] 0, 128
        %1506 = vxpose.xlu0.c.b16.cont [5/8] 0, 128
        %1507 = vxpose.xlu0.c.b16.cont [6/8] 0, 128
        %1508 = vxpose.xlu0.c.b16.cont [7/8] 0, 128
        %1509 = vxpose.xlu0.c.b16.end [8/8] 0, 128
        %v1510 = vpop.trf.xlu0
        %v1511 = vpop.trf.xlu0
        %v1512 = vpop.trf.xlu0
        %v1513 = vpop.trf.xlu0
        %v1514 = vpop.trf.xlu0
        %v1515 = vpop.trf.xlu0
        %v1516 = vpop.trf.xlu0
        %v1517 = vpop.trf.xlu0
        %1518 = vxpose.xlu0.c.b16.start [1/8] %v1440, 128
        %1519 = vxpose.xlu0.c.b16.cont [2/8] 0, 128
        %1520 = vxpose.xlu0.c.b16.cont [3/8] 0, 128
        %1521 = vxpose.xlu0.c.b16.cont [4/8] 0, 128
        %1522 = vxpose.xlu0.c.b16.cont [5/8] 0, 128
        %1523 = vxpose.xlu0.c.b16.cont [6/8] 0, 128
        %1524 = vxpose.xlu0.c.b16.cont [7/8] 0, 128
        %1525 = vxpose.xlu0.c.b16.end [8/8] 0, 128
        %v1526 = vpop.trf.xlu0
        %v1527 = vpop.trf.xlu0
        %v1528 = vpop.trf.xlu0
        %v1529 = vpop.trf.xlu0
        %v1530 = vpop.trf.xlu0
        %v1531 = vpop.trf.xlu0
        %v1532 = vpop.trf.xlu0
        %v1533 = vpop.trf.xlu0
        %1534 = vxpose.xlu0.c.b16.start [1/8] %v1444, 128
        %1535 = vxpose.xlu0.c.b16.cont [2/8] 0, 128
        %1536 = vxpose.xlu0.c.b16.cont [3/8] 0, 128
        %1537 = vxpose.xlu0.c.b16.cont [4/8] 0, 128
        %1538 = vxpose.xlu0.c.b16.cont [5/8] 0, 128
        %1539 = vxpose.xlu0.c.b16.cont [6/8] 0, 128
        %1540 = vxpose.xlu0.c.b16.cont [7/8] 0, 128
        %1541 = vxpose.xlu0.c.b16.end [8/8] 0, 128
        %v1542 = vpop.trf.xlu0
        %v1543 = vpop.trf.xlu0
        %v1544 = vpop.trf.xlu0
        %v1545 = vpop.trf.xlu0
        %v1546 = vpop.trf.xlu0
        %v1547 = vpop.trf.xlu0
        %v1548 = vpop.trf.xlu0
        %v1549 = vpop.trf.xlu0
        %1550 = vxpose.xlu0.c.b16.start [1/8] %v1448, 128
        %1551 = vxpose.xlu0.c.b16.cont [2/8] 0, 128
        %1552 = vxpose.xlu0.c.b16.cont [3/8] 0, 128
        %1553 = vxpose.xlu0.c.b16.cont [4/8] 0, 128
        %1554 = vxpose.xlu0.c.b16.cont [5/8] 0, 128
        %1555 = vxpose.xlu0.c.b16.cont [6/8] 0, 128
        %1556 = vxpose.xlu0.c.b16.cont [7/8] 0, 128
        %1557 = vxpose.xlu0.c.b16.end [8/8] 0, 128
        %v1558 = vpop.trf.xlu0
        %v1559 = vpop.trf.xlu0
        %v1560 = vpop.trf.xlu0
        %v1561 = vpop.trf.xlu0
        %v1562 = vpop.trf.xlu0
        %v1563 = vpop.trf.xlu0
        %v1564 = vpop.trf.xlu0
        %v1565 = vpop.trf.xlu0
        %1566 = vxpose.xlu0.c.b16.start [1/8] %v1452, 128
        %1567 = vxpose.xlu0.c.b16.cont [2/8] 0, 128
        %1568 = vxpose.xlu0.c.b16.cont [3/8] 0, 128
        %1569 = vxpose.xlu0.c.b16.cont [4/8] 0, 128
        %1570 = vxpose.xlu0.c.b16.cont [5/8] 0, 128
        %1571 = vxpose.xlu0.c.b16.cont [6/8] 0, 128
        %1572 = vxpose.xlu0.c.b16.cont [7/8] 0, 128
        %1573 = vxpose.xlu0.c.b16.end [8/8] 0, 128
        %v1574 = vpop.trf.xlu0
        %v1575 = vpop.trf.xlu0
        %v1576 = vpop.trf.xlu0
        %v1577 = vpop.trf.xlu0
        %v1578 = vpop.trf.xlu0
        %v1579 = vpop.trf.xlu0
        %v1580 = vpop.trf.xlu0
        %v1581 = vpop.trf.xlu0
        %v1582 = vcombine.low %v1462, %v1526
        %v1584 = vunpack.c.l.s4 1983009808
        %v1585 = vunpack.c.0.s8 %v1584
        %v1586 = vlaneseq
        %v1587 = vshrl.u32 %v1586, 7
        %v1588 = vsub.s32 %v1585, %v1587
        %v1589 = vrot.slane %v1582, %v1588
        %v1590 = vcombine.low %v1494, %v1558
        %v1592 = vunpack.c.l.s4 1983009808
        %v1593 = vunpack.c.0.s8 %v1592
        %v1594 = vlaneseq
        %v1595 = vshrl.u32 %v1594, 7
        %v1596 = vsub.s32 %v1593, %v1595
        %v1597 = vrot.slane %v1590, %v1596
        %v1598 = vcombine.low %v1589, %v1597
        %v1600 = vunpack.c.l.s4 1934713408
        %v1601 = vunpack.c.0.s8 %v1600
        %v1602 = vlaneseq
        %v1603 = vshrl.u32 %v1602, 7
        %v1604 = vsub.s32 %v1601, %v1603
        %v1605 = vrot.slane %v1598, %v1604
        %v1606 = vcombine.high %v1605, 0
        %v1607 = vcombine.low %v1478, %v1542
        %v1609 = vunpack.c.l.s4 1983009808
        %v1610 = vunpack.c.0.s8 %v1609
        %v1611 = vlaneseq
        %v1612 = vshrl.u32 %v1611, 7
        %v1613 = vsub.s32 %v1610, %v1612
        %v1614 = vrot.slane %v1607, %v1613
        %v1615 = vcombine.low %v1510, %v1574
        %v1617 = vunpack.c.l.s4 1983009808
        %v1618 = vunpack.c.0.s8 %v1617
        %v1619 = vlaneseq
        %v1620 = vshrl.u32 %v1619, 7
        %v1621 = vsub.s32 %v1618, %v1620
        %v1622 = vrot.slane %v1615, %v1621
        %v1623 = vcombine.low %v1614, %v1622
        %v1625 = vunpack.c.l.s4 1934713408
        %v1626 = vunpack.c.0.s8 %v1625
        %v1627 = vlaneseq
        %v1628 = vshrl.u32 %v1627, 7
        %v1629 = vsub.s32 %v1626, %v1628
        %v1630 = vrot.slane %v1623, %v1629
        %v1631 = vcombine.high %v1630, 0
        %v1634 = vpack.i.b16 %v1630, %v1605
        %v1635 = vshrl.u32 %v1605, 16
        %v1636 = vshrl.u32 %v1630, 16
        %v1637 = vpack.i.b16 %v1636, %v1635
        %v1640 = vpack.i.b16 %v1631, %v1606
        %v1641 = vshrl.u32 %v1606, 16
        %v1642 = vshrl.u32 %v1631, 16
        %v1643 = vpack.i.b16 %v1642, %v1641
        %vm1644 = vcmask 64512
        %v1646 = vsel %vm1644, %v1216, 0
        %vm1648 = vcmask 1043456
        %v1650 = vsel %vm1648, %v1634, 0
        %1652 = vmatprep.subr.bf16.mxu0 0
        %1653 = vmatpush1.bf16.msra.mxu0 %v1650
        %1654 = vmatprep.subr.bf16.mxu0 0
        %1655 = vmatpush1.bf16.msra.mxu0 0
        %1656 = vmatprep.subr.bf16.mxu0 0
        %1657 = vmatpush1.bf16.msra.mxu0 0
        %1658 = vmatprep.subr.bf16.mxu0 0
        %1659 = vmatpush1.bf16.msra.mxu0 0
        %1660 = vmatprep.subr.bf16.mxu0 0
        %1661 = vmatpush1.bf16.msra.mxu0 0
        %1662 = vmatprep.subr.bf16.mxu0 0
        %1663 = vmatpush1.bf16.msra.mxu0 0
        %1664 = vmatprep.subr.bf16.mxu0 0
        %1665 = vmatpush1.bf16.msra.mxu0 0
        %1666 = vmatprep.subr.bf16.mxu0 0
        %1667 = vmatpush1.bf16.msra.mxu0 0
        %1668 = vmatprep.subr.bf16.mxu0 0
        %1669 = vmatpush1.bf16.msra.mxu0 0
        %1670 = vmatprep.subr.bf16.mxu0 0
        %1671 = vmatpush1.bf16.msra.mxu0 0
        %1672 = vmatprep.subr.bf16.mxu0 0
        %1673 = vmatpush1.bf16.msra.mxu0 0
        %1674 = vmatprep.subr.bf16.mxu0 0
        %1675 = vmatpush1.bf16.msra.mxu0 0
        %1676 = vmatprep.subr.bf16.mxu0 0
        %1677 = vmatpush1.bf16.msra.mxu0 0
        %1678 = vmatprep.subr.bf16.mxu0 0
        %1679 = vmatpush1.bf16.msra.mxu0 0
        %1680 = vmatprep.subr.bf16.mxu0 0
        %1681 = vmatpush1.bf16.msra.mxu0 0
        %1682 = vmatprep.subr.bf16.mxu0 0
        %1683 = vmatpush1.bf16.msra.mxu0 0
        %1684 = vmatprep.mubr.bf16.mxu0 0
        %1685 = vmatmul.mubr.bf16.gmra.mrb[0].mxu0 %v1646
        %v1686 = vpop.f32.mrb[0].mxu0
        %v1687 = vadd.f32 0.0, %v1686
        %v1688 = vpop.f32.mrb[0].mxu0
        %v1689 = vpop.f32.mrb[0].mxu0
        %v1690 = vpop.f32.mrb[0].mxu0
        %1691 = vdwg.mxu0
        %v1693 = vsel %vm1644, %v1219, 0
        %v1696 = vsel %vm1648, %v1637, 0
        %1698 = vmatprep.subr.bf16.mxu0 0
        %1699 = vmatpush1.bf16.msra.mxu0 %v1696
        %1700 = vmatprep.subr.bf16.mxu0 0
        %1701 = vmatpush1.bf16.msra.mxu0 0
        %1702 = vmatprep.subr.bf16.mxu0 0
        %1703 = vmatpush1.bf16.msra.mxu0 0
        %1704 = vmatprep.subr.bf16.mxu0 0
        %1705 = vmatpush1.bf16.msra.mxu0 0
        %1706 = vmatprep.subr.bf16.mxu0 0
        %1707 = vmatpush1.bf16.msra.mxu0 0
        %1708 = vmatprep.subr.bf16.mxu0 0
        %1709 = vmatpush1.bf16.msra.mxu0 0
        %1710 = vmatprep.subr.bf16.mxu0 0
        %1711 = vmatpush1.bf16.msra.mxu0 0
        %1712 = vmatprep.subr.bf16.mxu0 0
        %1713 = vmatpush1.bf16.msra.mxu0 0
        %1714 = vmatprep.subr.bf16.mxu0 0
        %1715 = vmatpush1.bf16.msra.mxu0 0
        %1716 = vmatprep.subr.bf16.mxu0 0
        %1717 = vmatpush1.bf16.msra.mxu0 0
        %1718 = vmatprep.subr.bf16.mxu0 0
        %1719 = vmatpush1.bf16.msra.mxu0 0
        %1720 = vmatprep.subr.bf16.mxu0 0
        %1721 = vmatpush1.bf16.msra.mxu0 0
        %1722 = vmatprep.subr.bf16.mxu0 0
        %1723 = vmatpush1.bf16.msra.mxu0 0
        %1724 = vmatprep.subr.bf16.mxu0 0
        %1725 = vmatpush1.bf16.msra.mxu0 0
        %1726 = vmatprep.subr.bf16.mxu0 0
        %1727 = vmatpush1.bf16.msra.mxu0 0
        %1728 = vmatprep.subr.bf16.mxu0 0
        %1729 = vmatpush1.bf16.msra.mxu0 0
        %1730 = vmatprep.mubr.bf16.mxu0 0
        %1731 = vmatmul.mubr.bf16.gmra.mrb[0].mxu0 %v1693
        %v1732 = vpop.f32.mrb[0].mxu0
        %v1733 = vadd.f32 0.0, %v1732
        %v1734 = vpop.f32.mrb[0].mxu0
        %v1735 = vpop.f32.mrb[0].mxu0
        %v1736 = vpop.f32.mrb[0].mxu0
        %1737 = vdwg.mxu0
        %v1739 = vsel %vm1644, %v1222, 0
        %v1742 = vsel %vm1648, %v1640, 0
        %1744 = vmatprep.subr.bf16.mxu0 0
        %1745 = vmatpush1.bf16.msra.mxu0 %v1742
        %1746 = vmatprep.subr.bf16.mxu0 0
        %1747 = vmatpush1.bf16.msra.mxu0 0
        %1748 = vmatprep.subr.bf16.mxu0 0
        %1749 = vmatpush1.bf16.msra.mxu0 0
        %1750 = vmatprep.subr.bf16.mxu0 0
        %1751 = vmatpush1.bf16.msra.mxu0 0
        %1752 = vmatprep.subr.bf16.mxu0 0
        %1753 = vmatpush1.bf16.msra.mxu0 0
        %1754 = vmatprep.subr.bf16.mxu0 0
        %1755 = vmatpush1.bf16.msra.mxu0 0
        %1756 = vmatprep.subr.bf16.mxu0 0
        %1757 = vmatpush1.bf16.msra.mxu0 0
        %1758 = vmatprep.subr.bf16.mxu0 0
        %1759 = vmatpush1.bf16.msra.mxu0 0
        %1760 = vmatprep.subr.bf16.mxu0 0
        %1761 = vmatpush1.bf16.msra.mxu0 0
        %1762 = vmatprep.subr.bf16.mxu0 0
        %1763 = vmatpush1.bf16.msra.mxu0 0
        %1764 = vmatprep.subr.bf16.mxu0 0
        %1765 = vmatpush1.bf16.msra.mxu0 0
        %1766 = vmatprep.subr.bf16.mxu0 0
        %1767 = vmatpush1.bf16.msra.mxu0 0
        %1768 = vmatprep.subr.bf16.mxu0 0
        %1769 = vmatpush1.bf16.msra.mxu0 0
        %1770 = vmatprep.subr.bf16.mxu0 0
        %1771 = vmatpush1.bf16.msra.mxu0 0
        %1772 = vmatprep.subr.bf16.mxu0 0
        %1773 = vmatpush1.bf16.msra.mxu0 0
        %1774 = vmatprep.subr.bf16.mxu0 0
        %1775 = vmatpush1.bf16.msra.mxu0 0
        %1776 = vmatprep.mubr.bf16.mxu0 0
        %1777 = vmatmul.mubr.bf16.gmra.mrb[0].mxu0 %v1739
        %v1778 = vpop.f32.mrb[0].mxu0
        %v1779 = vadd.f32 0.0, %v1778
        %v1780 = vpop.f32.mrb[0].mxu0
        %v1781 = vpop.f32.mrb[0].mxu0
        %v1782 = vpop.f32.mrb[0].mxu0
        %1783 = vdwg.mxu0
        %v1785 = vsel %vm1644, %v1225, 0
        %v1788 = vsel %vm1648, %v1643, 0
        %1790 = vmatprep.subr.bf16.mxu0 0
        %1791 = vmatpush1.bf16.msra.mxu0 %v1788
        %1792 = vmatprep.subr.bf16.mxu0 0
        %1793 = vmatpush1.bf16.msra.mxu0 0
        %1794 = vmatprep.subr.bf16.mxu0 0
        %1795 = vmatpush1.bf16.msra.mxu0 0
        %1796 = vmatprep.subr.bf16.mxu0 0
        %1797 = vmatpush1.bf16.msra.mxu0 0
        %1798 = vmatprep.subr.bf16.mxu0 0
        %1799 = vmatpush1.bf16.msra.mxu0 0
        %1800 = vmatprep.subr.bf16.mxu0 0
        %1801 = vmatpush1.bf16.msra.mxu0 0
        %1802 = vmatprep.subr.bf16.mxu0 0
        %1803 = vmatpush1.bf16.msra.mxu0 0
        %1804 = vmatprep.subr.bf16.mxu0 0
        %1805 = vmatpush1.bf16.msra.mxu0 0
        %1806 = vmatprep.subr.bf16.mxu0 0
        %1807 = vmatpush1.bf16.msra.mxu0 0
        %1808 = vmatprep.subr.bf16.mxu0 0
        %1809 = vmatpush1.bf16.msra.mxu0 0
        %1810 = vmatprep.subr.bf16.mxu0 0
        %1811 = vmatpush1.bf16.msra.mxu0 0
        %1812 = vmatprep.subr.bf16.mxu0 0
        %1813 = vmatpush1.bf16.msra.mxu0 0
        %1814 = vmatprep.subr.bf16.mxu0 0
        %1815 = vmatpush1.bf16.msra.mxu0 0
        %1816 = vmatprep.subr.bf16.mxu0 0
        %1817 = vmatpush1.bf16.msra.mxu0 0
        %1818 = vmatprep.subr.bf16.mxu0 0
        %1819 = vmatpush1.bf16.msra.mxu0 0
        %1820 = vmatprep.subr.bf16.mxu0 0
        %1821 = vmatpush1.bf16.msra.mxu0 0
        %1822 = vmatprep.mubr.bf16.mxu0 0
        %1823 = vmatmul.mubr.bf16.gmra.mrb[0].mxu0 %v1785
        %v1824 = vpop.f32.mrb[0].mxu0
        %v1825 = vadd.f32 0.0, %v1824
        %v1826 = vpop.f32.mrb[0].mxu0
        %v1827 = vpop.f32.mrb[0].mxu0
        %v1828 = vpop.f32.mrb[0].mxu0
        %1829 = vdwg.mxu0
        %v1830 = vsel %vm901, 1, 0
        %vm1831 = vcmp.eq.s32.totalorder %v1830, 1
        %v1832 = vsel %vm1831, %v1687, -1e+09
        %v1833 = vsel %vm1831, %v1733, -1e+09
        %v1834 = vsel %vm1831, %v1779, -1e+09
        %v1835 = vsel %vm1831, %v1825, -1e+09
        %v1836 = vsel %vm1644, %v1832, -inf
        %1837 = vmax.xlane.f32.xlu0 %v1836
        %v1838 = vpop.xlane.xlu0 %1837
        %v1839 = vsel %vm1644, %v1833, -inf
        %1840 = vmax.xlane.f32.xlu0 %v1839
        %v1841 = vpop.xlane.xlu0 %1840
        %v1842 = vsel %vm1644, %v1834, -inf
        %1843 = vmax.xlane.f32.xlu0 %v1842
        %v1844 = vpop.xlane.xlu0 %1843
        %v1845 = vsel %vm1644, %v1835, -inf
        %1846 = vmax.xlane.f32.xlu0 %v1845
        %v1847 = vpop.xlane.xlu0 %1846
        %v1848 = vsub.f32 %v1832, %v1838
        %v1849 = vsub.f32 %v1833, %v1841
        %v1850 = vsub.f32 %v1834, %v1844
        %v1851 = vsub.f32 %v1835, %v1847
        %v1852 = vmul.f32 %v1848, 1.442695
        %v1853 = vpow.pop %v1852
        %v1854 = vmul.f32 %v1849, 1.442695
        %v1855 = vpow.pop %v1854
        %v1856 = vmul.f32 %v1850, 1.442695
        %v1857 = vpow.pop %v1856
        %v1858 = vmul.f32 %v1851, 1.442695
        %v1859 = vpow.pop %v1858
        %v1860 = vsel %vm1644, %v1853, 0.0
        %1861 = vadd.xlane.f32.xlu0 %v1860
        %v1862 = vpop.xlane.xlu0 %1861
        %v1863 = vsel %vm1644, %v1855, 0.0
        %1864 = vadd.xlane.f32.xlu0 %v1863
        %v1865 = vpop.xlane.xlu0 %1864
        %v1866 = vsel %vm1644, %v1857, 0.0
        %1867 = vadd.xlane.f32.xlu0 %v1866
        %v1868 = vpop.xlane.xlu0 %1867
        %v1869 = vsel %vm1644, %v1859, 0.0
        %1870 = vadd.xlane.f32.xlu0 %v1869
        %v1871 = vpop.xlane.xlu0 %1870
        %v1872 = vrcp.pop %v1862
        %v1873 = vmul.f32 %v1853, %v1872
        %v1874 = vrcp.pop %v1865
        %v1875 = vmul.f32 %v1855, %v1874
        %v1876 = vrcp.pop %v1868
        %v1877 = vmul.f32 %v1857, %v1876
        %v1878 = vrcp.pop %v1871
        %v1879 = vmul.f32 %v1859, %v1878
        %v1880 = vpack.c.bf16 %v1873, %v1873
        %v1881 = vpack.c.bf16 %v1875, %v1875
        %v1882 = vpack.c.bf16 %v1877, %v1877
        %v1883 = vpack.c.bf16 %v1879, %v1879
        %1884 = vxpose.xlu0.c.b16.start [1/8] %v1156, 128
        %1885 = vxpose.xlu0.c.b16.cont [2/8] 0, 128
        %1886 = vxpose.xlu0.c.b16.cont [3/8] 0, 128
        %1887 = vxpose.xlu0.c.b16.cont [4/8] 0, 128
        %1888 = vxpose.xlu0.c.b16.cont [5/8] 0, 128
        %1889 = vxpose.xlu0.c.b16.cont [6/8] 0, 128
        %1890 = vxpose.xlu0.c.b16.cont [7/8] 0, 128
        %1891 = vxpose.xlu0.c.b16.end [8/8] 0, 128
        %v1892 = vpop.trf.xlu0
        %v1893 = vpop.trf.xlu0
        %v1894 = vpop.trf.xlu0
        %v1895 = vpop.trf.xlu0
        %v1896 = vpop.trf.xlu0
        %v1897 = vpop.trf.xlu0
        %v1898 = vpop.trf.xlu0
        %v1899 = vpop.trf.xlu0
        %1900 = vxpose.xlu0.c.b16.start [1/8] %v1157, 128
        %1901 = vxpose.xlu0.c.b16.cont [2/8] 0, 128
        %1902 = vxpose.xlu0.c.b16.cont [3/8] 0, 128
        %1903 = vxpose.xlu0.c.b16.cont [4/8] 0, 128
        %1904 = vxpose.xlu0.c.b16.cont [5/8] 0, 128
        %1905 = vxpose.xlu0.c.b16.cont [6/8] 0, 128
        %1906 = vxpose.xlu0.c.b16.cont [7/8] 0, 128
        %1907 = vxpose.xlu0.c.b16.end [8/8] 0, 128
        %v1908 = vpop.trf.xlu0
        %v1909 = vpop.trf.xlu0
        %v1910 = vpop.trf.xlu0
        %v1911 = vpop.trf.xlu0
        %v1912 = vpop.trf.xlu0
        %v1913 = vpop.trf.xlu0
        %v1914 = vpop.trf.xlu0
        %v1915 = vpop.trf.xlu0
        %1916 = vxpose.xlu0.c.b16.start [1/8] %v1158, 128
        %1917 = vxpose.xlu0.c.b16.cont [2/8] 0, 128
        %1918 = vxpose.xlu0.c.b16.cont [3/8] 0, 128
        %1919 = vxpose.xlu0.c.b16.cont [4/8] 0, 128
        %1920 = vxpose.xlu0.c.b16.cont [5/8] 0, 128
        %1921 = vxpose.xlu0.c.b16.cont [6/8] 0, 128
        %1922 = vxpose.xlu0.c.b16.cont [7/8] 0, 128
        %1923 = vxpose.xlu0.c.b16.end [8/8] 0, 128
        %v1924 = vpop.trf.xlu0
        %v1925 = vpop.trf.xlu0
        %v1926 = vpop.trf.xlu0
        %v1927 = vpop.trf.xlu0
        %v1928 = vpop.trf.xlu0
        %v1929 = vpop.trf.xlu0
        %v1930 = vpop.trf.xlu0
        %v1931 = vpop.trf.xlu0
        %1932 = vxpose.xlu0.c.b16.start [1/8] %v1159, 128
        %1933 = vxpose.xlu0.c.b16.cont [2/8] 0, 128
        %1934 = vxpose.xlu0.c.b16.cont [3/8] 0, 128
        %1935 = vxpose.xlu0.c.b16.cont [4/8] 0, 128
        %1936 = vxpose.xlu0.c.b16.cont [5/8] 0, 128
        %1937 = vxpose.xlu0.c.b16.cont [6/8] 0, 128
        %1938 = vxpose.xlu0.c.b16.cont [7/8] 0, 128
        %1939 = vxpose.xlu0.c.b16.end [8/8] 0, 128
        %v1940 = vpop.trf.xlu0
        %v1941 = vpop.trf.xlu0
        %v1942 = vpop.trf.xlu0
        %v1943 = vpop.trf.xlu0
        %v1944 = vpop.trf.xlu0
        %v1945 = vpop.trf.xlu0
        %v1946 = vpop.trf.xlu0
        %v1947 = vpop.trf.xlu0
        %1948 = vxpose.xlu0.c.b16.start [1/8] %v1160, 128
        %1949 = vxpose.xlu0.c.b16.cont [2/8] 0, 128
        %1950 = vxpose.xlu0.c.b16.cont [3/8] 0, 128
        %1951 = vxpose.xlu0.c.b16.cont [4/8] 0, 128
        %1952 = vxpose.xlu0.c.b16.cont [5/8] 0, 128
        %1953 = vxpose.xlu0.c.b16.cont [6/8] 0, 128
        %1954 = vxpose.xlu0.c.b16.cont [7/8] 0, 128
        %1955 = vxpose.xlu0.c.b16.end [8/8] 0, 128
        %v1956 = vpop.trf.xlu0
        %v1957 = vpop.trf.xlu0
        %v1958 = vpop.trf.xlu0
        %v1959 = vpop.trf.xlu0
        %v1960 = vpop.trf.xlu0
        %v1961 = vpop.trf.xlu0
        %v1962 = vpop.trf.xlu0
        %v1963 = vpop.trf.xlu0
        %1964 = vxpose.xlu0.c.b16.start [1/8] %v1161, 128
        %1965 = vxpose.xlu0.c.b16.cont [2/8] 0, 128
        %1966 = vxpose.xlu0.c.b16.cont [3/8] 0, 128
        %1967 = vxpose.xlu0.c.b16.cont [4/8] 0, 128
        %1968 = vxpose.xlu0.c.b16.cont [5/8] 0, 128
        %1969 = vxpose.xlu0.c.b16.cont [6/8] 0, 128
        %1970 = vxpose.xlu0.c.b16.cont [7/8] 0, 128
        %1971 = vxpose.xlu0.c.b16.end [8/8] 0, 128
        %v1972 = vpop.trf.xlu0
        %v1973 = vpop.trf.xlu0
        %v1974 = vpop.trf.xlu0
        %v1975 = vpop.trf.xlu0
        %v1976 = vpop.trf.xlu0
        %v1977 = vpop.trf.xlu0
        %v1978 = vpop.trf.xlu0
        %v1979 = vpop.trf.xlu0
        %1980 = vxpose.xlu0.c.b16.start [1/8] %v1162, 128
        %1981 = vxpose.xlu0.c.b16.cont [2/8] 0, 128
        %1982 = vxpose.xlu0.c.b16.cont [3/8] 0, 128
        %1983 = vxpose.xlu0.c.b16.cont [4/8] 0, 128
        %1984 = vxpose.xlu0.c.b16.cont [5/8] 0, 128
        %1985 = vxpose.xlu0.c.b16.cont [6/8] 0, 128
        %1986 = vxpose.xlu0.c.b16.cont [7/8] 0, 128
        %1987 = vxpose.xlu0.c.b16.end [8/8] 0, 128
        %v1988 = vpop.trf.xlu0
        %v1989 = vpop.trf.xlu0
        %v1990 = vpop.trf.xlu0
        %v1991 = vpop.trf.xlu0
        %v1992 = vpop.trf.xlu0
        %v1993 = vpop.trf.xlu0
        %v1994 = vpop.trf.xlu0
        %v1995 = vpop.trf.xlu0
        %1996 = vxpose.xlu0.c.b16.start [1/8] %v1163, 128
        %1997 = vxpose.xlu0.c.b16.cont [2/8] 0, 128
        %1998 = vxpose.xlu0.c.b16.cont [3/8] 0, 128
        %1999 = vxpose.xlu0.c.b16.cont [4/8] 0, 128
        %2000 = vxpose.xlu0.c.b16.cont [5/8] 0, 128
        %2001 = vxpose.xlu0.c.b16.cont [6/8] 0, 128
        %2002 = vxpose.xlu0.c.b16.cont [7/8] 0, 128
        %2003 = vxpose.xlu0.c.b16.end [8/8] 0, 128
        %v2004 = vpop.trf.xlu0
        %v2005 = vpop.trf.xlu0
        %v2006 = vpop.trf.xlu0
        %v2007 = vpop.trf.xlu0
        %v2008 = vpop.trf.xlu0
        %v2009 = vpop.trf.xlu0
        %v2010 = vpop.trf.xlu0
        %v2011 = vpop.trf.xlu0
        %v2012 = vcombine.low %v1892, %v1956
        %v2014 = vunpack.c.l.s4 1983009808
        %v2015 = vunpack.c.0.s8 %v2014
        %v2016 = vlaneseq
        %v2017 = vshrl.u32 %v2016, 7
        %v2018 = vsub.s32 %v2015, %v2017
        %v2019 = vrot.slane %v2012, %v2018
        %v2020 = vcombine.low %v1924, %v1988
        %v2022 = vunpack.c.l.s4 1983009808
        %v2023 = vunpack.c.0.s8 %v2022
        %v2024 = vlaneseq
        %v2025 = vshrl.u32 %v2024, 7
        %v2026 = vsub.s32 %v2023, %v2025
        %v2027 = vrot.slane %v2020, %v2026
        %v2028 = vcombine.low %v2019, %v2027
        %v2029 = vcombine.high %v2019, %v2027
        %v2031 = vunpack.c.l.s4 1934713408
        %v2032 = vunpack.c.0.s8 %v2031
        %v2033 = vlaneseq
        %v2034 = vshrl.u32 %v2033, 7
        %v2035 = vsub.s32 %v2032, %v2034
        %v2036 = vrot.slane %v2028, %v2035
        %v2038 = vunpack.c.l.s4 1934713408
        %v2039 = vunpack.c.0.s8 %v2038
        %v2040 = vlaneseq
        %v2041 = vshrl.u32 %v2040, 7
        %v2042 = vsub.s32 %v2039, %v2041
        %v2043 = vrot.slane %v2029, %v2042
        %v2044 = vcombine.high %v2036, 0
        %v2045 = vcombine.high %v2043, 0
        %v2046 = vcombine.low %v1908, %v1972
        %v2048 = vunpack.c.l.s4 1983009808
        %v2049 = vunpack.c.0.s8 %v2048
        %v2050 = vlaneseq
        %v2051 = vshrl.u32 %v2050, 7
        %v2052 = vsub.s32 %v2049, %v2051
        %v2053 = vrot.slane %v2046, %v2052
        %v2054 = vcombine.low %v1940, %v2004
        %v2056 = vunpack.c.l.s4 1983009808
        %v2057 = vunpack.c.0.s8 %v2056
        %v2058 = vlaneseq
        %v2059 = vshrl.u32 %v2058, 7
        %v2060 = vsub.s32 %v2057, %v2059
        %v2061 = vrot.slane %v2054, %v2060
        %v2062 = vcombine.low %v2053, %v2061
        %v2063 = vcombine.high %v2053, %v2061
        %v2065 = vunpack.c.l.s4 1934713408
        %v2066 = vunpack.c.0.s8 %v2065
        %v2067 = vlaneseq
        %v2068 = vshrl.u32 %v2067, 7
        %v2069 = vsub.s32 %v2066, %v2068
        %v2070 = vrot.slane %v2062, %v2069
        %v2072 = vunpack.c.l.s4 1934713408
        %v2073 = vunpack.c.0.s8 %v2072
        %v2074 = vlaneseq
        %v2075 = vshrl.u32 %v2074, 7
        %v2076 = vsub.s32 %v2073, %v2075
        %v2077 = vrot.slane %v2063, %v2076
        %v2078 = vcombine.high %v2070, 0
        %v2079 = vcombine.high %v2077, 0
        %v2082 = vpack.i.b16 %v2070, %v2036
        %v2084 = vshrl.u32 %v2036, 16
        %v2085 = vshrl.u32 %v2070, 16
        %v2086 = vpack.i.b16 %v2085, %v2084
        %v2090 = vpack.i.b16 %v2078, %v2044
        %v2092 = vshrl.u32 %v2044, 16
        %v2093 = vshrl.u32 %v2078, 16
        %v2094 = vpack.i.b16 %v2093, %v2092
        %v2098 = vpack.i.b16 %v2077, %v2043
        %v2100 = vshrl.u32 %v2043, 16
        %v2101 = vshrl.u32 %v2077, 16
        %v2102 = vpack.i.b16 %v2101, %v2100
        %v2106 = vpack.i.b16 %v2079, %v2045
        %v2108 = vshrl.u32 %v2045, 16
        %v2109 = vshrl.u32 %v2079, 16
        %v2110 = vpack.i.b16 %v2109, %v2108
        %2112 = vxpose.xlu0.c.b16.start [1/8] %v2082, 128
        %2113 = vxpose.xlu0.c.b16.cont [2/8] 0, 128
        %2114 = vxpose.xlu0.c.b16.cont [3/8] 0, 128
        %2115 = vxpose.xlu0.c.b16.cont [4/8] 0, 128
        %2116 = vxpose.xlu0.c.b16.cont [5/8] 0, 128
        %2117 = vxpose.xlu0.c.b16.cont [6/8] 0, 128
        %2118 = vxpose.xlu0.c.b16.cont [7/8] 0, 128
        %2119 = vxpose.xlu0.c.b16.end [8/8] 0, 128
        %v2120 = vpop.trf.xlu0
        %v2121 = vpop.trf.xlu0
        %v2122 = vpop.trf.xlu0
        %v2123 = vpop.trf.xlu0
        %v2124 = vpop.trf.xlu0
        %v2125 = vpop.trf.xlu0
        %v2126 = vpop.trf.xlu0
        %v2127 = vpop.trf.xlu0
        %2128 = vxpose.xlu0.c.b16.start [1/8] %v2086, 128
        %2129 = vxpose.xlu0.c.b16.cont [2/8] 0, 128
        %2130 = vxpose.xlu0.c.b16.cont [3/8] 0, 128
        %2131 = vxpose.xlu0.c.b16.cont [4/8] 0, 128
        %2132 = vxpose.xlu0.c.b16.cont [5/8] 0, 128
        %2133 = vxpose.xlu0.c.b16.cont [6/8] 0, 128
        %2134 = vxpose.xlu0.c.b16.cont [7/8] 0, 128
        %2135 = vxpose.xlu0.c.b16.end [8/8] 0, 128
        %v2136 = vpop.trf.xlu0
        %v2137 = vpop.trf.xlu0
        %v2138 = vpop.trf.xlu0
        %v2139 = vpop.trf.xlu0
        %v2140 = vpop.trf.xlu0
        %v2141 = vpop.trf.xlu0
        %v2142 = vpop.trf.xlu0
        %v2143 = vpop.trf.xlu0
        %2144 = vxpose.xlu0.c.b16.start [1/8] %v2090, 128
        %2145 = vxpose.xlu0.c.b16.cont [2/8] 0, 128
        %2146 = vxpose.xlu0.c.b16.cont [3/8] 0, 128
        %2147 = vxpose.xlu0.c.b16.cont [4/8] 0, 128
        %2148 = vxpose.xlu0.c.b16.cont [5/8] 0, 128
        %2149 = vxpose.xlu0.c.b16.cont [6/8] 0, 128
        %2150 = vxpose.xlu0.c.b16.cont [7/8] 0, 128
        %2151 = vxpose.xlu0.c.b16.end [8/8] 0, 128
        %v2152 = vpop.trf.xlu0
        %v2153 = vpop.trf.xlu0
        %v2154 = vpop.trf.xlu0
        %v2155 = vpop.trf.xlu0
        %v2156 = vpop.trf.xlu0
        %v2157 = vpop.trf.xlu0
        %v2158 = vpop.trf.xlu0
        %v2159 = vpop.trf.xlu0
        %2160 = vxpose.xlu0.c.b16.start [1/8] %v2094, 128
        %2161 = vxpose.xlu0.c.b16.cont [2/8] 0, 128
        %2162 = vxpose.xlu0.c.b16.cont [3/8] 0, 128
        %2163 = vxpose.xlu0.c.b16.cont [4/8] 0, 128
        %2164 = vxpose.xlu0.c.b16.cont [5/8] 0, 128
        %2165 = vxpose.xlu0.c.b16.cont [6/8] 0, 128
        %2166 = vxpose.xlu0.c.b16.cont [7/8] 0, 128
        %2167 = vxpose.xlu0.c.b16.end [8/8] 0, 128
        %v2168 = vpop.trf.xlu0
        %v2169 = vpop.trf.xlu0
        %v2170 = vpop.trf.xlu0
        %v2171 = vpop.trf.xlu0
        %v2172 = vpop.trf.xlu0
        %v2173 = vpop.trf.xlu0
        %v2174 = vpop.trf.xlu0
        %v2175 = vpop.trf.xlu0
        %2176 = vxpose.xlu0.c.b16.start [1/8] %v2098, 128
        %2177 = vxpose.xlu0.c.b16.cont [2/8] 0, 128
        %2178 = vxpose.xlu0.c.b16.cont [3/8] 0, 128
        %2179 = vxpose.xlu0.c.b16.cont [4/8] 0, 128
        %2180 = vxpose.xlu0.c.b16.cont [5/8] 0, 128
        %2181 = vxpose.xlu0.c.b16.cont [6/8] 0, 128
        %2182 = vxpose.xlu0.c.b16.cont [7/8] 0, 128
        %2183 = vxpose.xlu0.c.b16.end [8/8] 0, 128
        %v2184 = vpop.trf.xlu0
        %v2185 = vpop.trf.xlu0
        %v2186 = vpop.trf.xlu0
        %v2187 = vpop.trf.xlu0
        %v2188 = vpop.trf.xlu0
        %v2189 = vpop.trf.xlu0
        %v2190 = vpop.trf.xlu0
        %v2191 = vpop.trf.xlu0
        %2192 = vxpose.xlu0.c.b16.start [1/8] %v2102, 128
        %2193 = vxpose.xlu0.c.b16.cont [2/8] 0, 128
        %2194 = vxpose.xlu0.c.b16.cont [3/8] 0, 128
        %2195 = vxpose.xlu0.c.b16.cont [4/8] 0, 128
        %2196 = vxpose.xlu0.c.b16.cont [5/8] 0, 128
        %2197 = vxpose.xlu0.c.b16.cont [6/8] 0, 128
        %2198 = vxpose.xlu0.c.b16.cont [7/8] 0, 128
        %2199 = vxpose.xlu0.c.b16.end [8/8] 0, 128
        %v2200 = vpop.trf.xlu0
        %v2201 = vpop.trf.xlu0
        %v2202 = vpop.trf.xlu0
        %v2203 = vpop.trf.xlu0
        %v2204 = vpop.trf.xlu0
        %v2205 = vpop.trf.xlu0
        %v2206 = vpop.trf.xlu0
        %v2207 = vpop.trf.xlu0
        %2208 = vxpose.xlu0.c.b16.start [1/8] %v2106, 128
        %2209 = vxpose.xlu0.c.b16.cont [2/8] 0, 128
        %2210 = vxpose.xlu0.c.b16.cont [3/8] 0, 128
        %2211 = vxpose.xlu0.c.b16.cont [4/8] 0, 128
        %2212 = vxpose.xlu0.c.b16.cont [5/8] 0, 128
        %2213 = vxpose.xlu0.c.b16.cont [6/8] 0, 128
        %2214 = vxpose.xlu0.c.b16.cont [7/8] 0, 128
        %2215 = vxpose.xlu0.c.b16.end [8/8] 0, 128
        %v2216 = vpop.trf.xlu0
        %v2217 = vpop.trf.xlu0
        %v2218 = vpop.trf.xlu0
        %v2219 = vpop.trf.xlu0
        %v2220 = vpop.trf.xlu0
        %v2221 = vpop.trf.xlu0
        %v2222 = vpop.trf.xlu0
        %v2223 = vpop.trf.xlu0
        %2224 = vxpose.xlu0.c.b16.start [1/8] %v2110, 128
        %2225 = vxpose.xlu0.c.b16.cont [2/8] 0, 128
        %2226 = vxpose.xlu0.c.b16.cont [3/8] 0, 128
        %2227 = vxpose.xlu0.c.b16.cont [4/8] 0, 128
        %2228 = vxpose.xlu0.c.b16.cont [5/8] 0, 128
        %2229 = vxpose.xlu0.c.b16.cont [6/8] 0, 128
        %2230 = vxpose.xlu0.c.b16.cont [7/8] 0, 128
        %2231 = vxpose.xlu0.c.b16.end [8/8] 0, 128
        %v2232 = vpop.trf.xlu0
        %v2233 = vpop.trf.xlu0
        %v2234 = vpop.trf.xlu0
        %v2235 = vpop.trf.xlu0
        %v2236 = vpop.trf.xlu0
        %v2237 = vpop.trf.xlu0
        %v2238 = vpop.trf.xlu0
        %v2239 = vpop.trf.xlu0
        %v2240 = vcombine.low %v2120, %v2184
        %v2242 = vunpack.c.l.s4 1983009808
        %v2243 = vunpack.c.0.s8 %v2242
        %v2244 = vlaneseq
        %v2245 = vshrl.u32 %v2244, 7
        %v2246 = vsub.s32 %v2243, %v2245
        %v2247 = vrot.slane %v2240, %v2246
        %v2248 = vcombine.low %v2152, %v2216
        %v2250 = vunpack.c.l.s4 1983009808
        %v2251 = vunpack.c.0.s8 %v2250
        %v2252 = vlaneseq
        %v2253 = vshrl.u32 %v2252, 7
        %v2254 = vsub.s32 %v2251, %v2253
        %v2255 = vrot.slane %v2248, %v2254
        %v2256 = vcombine.low %v2247, %v2255
        %v2258 = vunpack.c.l.s4 1934713408
        %v2259 = vunpack.c.0.s8 %v2258
        %v2260 = vlaneseq
        %v2261 = vshrl.u32 %v2260, 7
        %v2262 = vsub.s32 %v2259, %v2261
        %v2263 = vrot.slane %v2256, %v2262
        %v2264 = vcombine.high %v2263, 0
        %v2265 = vcombine.low %v2136, %v2200
        %v2267 = vunpack.c.l.s4 1983009808
        %v2268 = vunpack.c.0.s8 %v2267
        %v2269 = vlaneseq
        %v2270 = vshrl.u32 %v2269, 7
        %v2271 = vsub.s32 %v2268, %v2270
        %v2272 = vrot.slane %v2265, %v2271
        %v2273 = vcombine.low %v2168, %v2232
        %v2275 = vunpack.c.l.s4 1983009808
        %v2276 = vunpack.c.0.s8 %v2275
        %v2277 = vlaneseq
        %v2278 = vshrl.u32 %v2277, 7
        %v2279 = vsub.s32 %v2276, %v2278
        %v2280 = vrot.slane %v2273, %v2279
        %v2281 = vcombine.low %v2272, %v2280
        %v2283 = vunpack.c.l.s4 1934713408
        %v2284 = vunpack.c.0.s8 %v2283
        %v2285 = vlaneseq
        %v2286 = vshrl.u32 %v2285, 7
        %v2287 = vsub.s32 %v2284, %v2286
        %v2288 = vrot.slane %v2281, %v2287
        %v2289 = vcombine.high %v2288, 0
        %v2292 = vpack.i.b16 %v2288, %v2263
        %v2293 = vshrl.u32 %v2263, 16
        %v2294 = vshrl.u32 %v2288, 16
        %v2295 = vpack.i.b16 %v2294, %v2293
        %v2298 = vpack.i.b16 %v2289, %v2264
        %v2299 = vshrl.u32 %v2264, 16
        %v2300 = vshrl.u32 %v2289, 16
        %v2301 = vpack.i.b16 %v2300, %v2299
        %v2303 = vsel %vm1644, %v2292, 0
        %v2306 = vsel %vm1644, %v1880, 0
        %2308 = vmatprep.subr.bf16.mxu0 0
        %2309 = vmatpush1.bf16.xpose.msra.mxu0 %v2306
        %2310 = vmatprep.subr.bf16.mxu0 0
        %2311 = vmatpush1.bf16.xpose.msra.mxu0 0
        %2312 = vmatprep.subr.bf16.mxu0 0
        %2313 = vmatpush1.bf16.xpose.msra.mxu0 0
        %2314 = vmatprep.subr.bf16.mxu0 0
        %2315 = vmatpush1.bf16.xpose.msra.mxu0 0
        %2316 = vmatprep.subr.bf16.mxu0 0
        %2317 = vmatpush1.bf16.xpose.msra.mxu0 0
        %2318 = vmatprep.subr.bf16.mxu0 0
        %2319 = vmatpush1.bf16.xpose.msra.mxu0 0
        %2320 = vmatprep.subr.bf16.mxu0 0
        %2321 = vmatpush1.bf16.xpose.msra.mxu0 0
        %2322 = vmatprep.subr.bf16.mxu0 0
        %2323 = vmatpush1.bf16.xpose.msra.mxu0 0
        %2324 = vmatprep.subr.bf16.mxu0 0
        %2325 = vmatpush1.bf16.xpose.msra.mxu0 0
        %2326 = vmatprep.subr.bf16.mxu0 0
        %2327 = vmatpush1.bf16.xpose.msra.mxu0 0
        %2328 = vmatprep.subr.bf16.mxu0 0
        %2329 = vmatpush1.bf16.xpose.msra.mxu0 0
        %2330 = vmatprep.subr.bf16.mxu0 0
        %2331 = vmatpush1.bf16.xpose.msra.mxu0 0
        %2332 = vmatprep.subr.bf16.mxu0 0
        %2333 = vmatpush1.bf16.xpose.msra.mxu0 0
        %2334 = vmatprep.subr.bf16.mxu0 0
        %2335 = vmatpush1.bf16.xpose.msra.mxu0 0
        %2336 = vmatprep.subr.bf16.mxu0 0
        %2337 = vmatpush1.bf16.xpose.msra.mxu0 0
        %2338 = vmatprep.subr.bf16.mxu0 0
        %2339 = vmatpush1.bf16.xpose.msra.mxu0 0
        %2340 = vmatprep.mubr.bf16.mxu0 0
        %2341 = vmatmul.mubr.bf16.gmra.mrb[0].mxu0 %v2303
        %v2342 = vpop.f32.mrb[0].mxu0
        %v2343 = vadd.f32 0.0, %v2342
        %v2344 = vpop.f32.mrb[0].mxu0
        %v2345 = vpop.f32.mrb[0].mxu0
        %v2346 = vpop.f32.mrb[0].mxu0
        %2347 = vdwg.mxu0
        %v2349 = vsel %vm1644, %v2295, 0
        %v2352 = vsel %vm1644, %v1881, 0
        %2354 = vmatprep.subr.bf16.mxu0 0
        %2355 = vmatpush1.bf16.xpose.msra.mxu0 %v2352
        %2356 = vmatprep.subr.bf16.mxu0 0
        %2357 = vmatpush1.bf16.xpose.msra.mxu0 0
        %2358 = vmatprep.subr.bf16.mxu0 0
        %2359 = vmatpush1.bf16.xpose.msra.mxu0 0
        %2360 = vmatprep.subr.bf16.mxu0 0
        %2361 = vmatpush1.bf16.xpose.msra.mxu0 0
        %2362 = vmatprep.subr.bf16.mxu0 0
        %2363 = vmatpush1.bf16.xpose.msra.mxu0 0
        %2364 = vmatprep.subr.bf16.mxu0 0
        %2365 = vmatpush1.bf16.xpose.msra.mxu0 0
        %2366 = vmatprep.subr.bf16.mxu0 0
        %2367 = vmatpush1.bf16.xpose.msra.mxu0 0
        %2368 = vmatprep.subr.bf16.mxu0 0
        %2369 = vmatpush1.bf16.xpose.msra.mxu0 0
        %2370 = vmatprep.subr.bf16.mxu0 0
        %2371 = vmatpush1.bf16.xpose.msra.mxu0 0
        %2372 = vmatprep.subr.bf16.mxu0 0
        %2373 = vmatpush1.bf16.xpose.msra.mxu0 0
        %2374 = vmatprep.subr.bf16.mxu0 0
        %2375 = vmatpush1.bf16.xpose.msra.mxu0 0
        %2376 = vmatprep.subr.bf16.mxu0 0
        %2377 = vmatpush1.bf16.xpose.msra.mxu0 0
        %2378 = vmatprep.subr.bf16.mxu0 0
        %2379 = vmatpush1.bf16.xpose.msra.mxu0 0
        %2380 = vmatprep.subr.bf16.mxu0 0
        %2381 = vmatpush1.bf16.xpose.msra.mxu0 0
        %2382 = vmatprep.subr.bf16.mxu0 0
        %2383 = vmatpush1.bf16.xpose.msra.mxu0 0
        %2384 = vmatprep.subr.bf16.mxu0 0
        %2385 = vmatpush1.bf16.xpose.msra.mxu0 0
        %2386 = vmatprep.mubr.bf16.mxu0 0
        %2387 = vmatmul.mubr.bf16.gmra.mrb[0].mxu0 %v2349
        %v2388 = vpop.f32.mrb[0].mxu0
        %v2389 = vadd.f32 0.0, %v2388
        %v2390 = vpop.f32.mrb[0].mxu0
        %v2391 = vpop.f32.mrb[0].mxu0
        %v2392 = vpop.f32.mrb[0].mxu0
        %2393 = vdwg.mxu0
        %v2395 = vsel %vm1644, %v2298, 0
        %v2398 = vsel %vm1644, %v1882, 0
        %2400 = vmatprep.subr.bf16.mxu0 0
        %2401 = vmatpush1.bf16.xpose.msra.mxu0 %v2398
        %2402 = vmatprep.subr.bf16.mxu0 0
        %2403 = vmatpush1.bf16.xpose.msra.mxu0 0
        %2404 = vmatprep.subr.bf16.mxu0 0
        %2405 = vmatpush1.bf16.xpose.msra.mxu0 0
        %2406 = vmatprep.subr.bf16.mxu0 0
        %2407 = vmatpush1.bf16.xpose.msra.mxu0 0
        %2408 = vmatprep.subr.bf16.mxu0 0
        %2409 = vmatpush1.bf16.xpose.msra.mxu0 0
        %2410 = vmatprep.subr.bf16.mxu0 0
        %2411 = vmatpush1.bf16.xpose.msra.mxu0 0
        %2412 = vmatprep.subr.bf16.mxu0 0
        %2413 = vmatpush1.bf16.xpose.msra.mxu0 0
        %2414 = vmatprep.subr.bf16.mxu0 0
        %2415 = vmatpush1.bf16.xpose.msra.mxu0 0
        %2416 = vmatprep.subr.bf16.mxu0 0
        %2417 = vmatpush1.bf16.xpose.msra.mxu0 0
        %2418 = vmatprep.subr.bf16.mxu0 0
        %2419 = vmatpush1.bf16.xpose.msra.mxu0 0
        %2420 = vmatprep.subr.bf16.mxu0 0
        %2421 = vmatpush1.bf16.xpose.msra.mxu0 0
        %2422 = vmatprep.subr.bf16.mxu0 0
        %2423 = vmatpush1.bf16.xpose.msra.mxu0 0
        %2424 = vmatprep.subr.bf16.mxu0 0
        %2425 = vmatpush1.bf16.xpose.msra.mxu0 0
        %2426 = vmatprep.subr.bf16.mxu0 0
        %2427 = vmatpush1.bf16.xpose.msra.mxu0 0
        %2428 = vmatprep.subr.bf16.mxu0 0
        %2429 = vmatpush1.bf16.xpose.msra.mxu0 0
        %2430 = vmatprep.subr.bf16.mxu0 0
        %2431 = vmatpush1.bf16.xpose.msra.mxu0 0
        %2432 = vmatprep.mubr.bf16.mxu0 0
        %2433 = vmatmul.mubr.bf16.gmra.mrb[0].mxu0 %v2395
        %v2434 = vpop.f32.mrb[0].mxu0
        %v2435 = vadd.f32 0.0, %v2434
        %v2436 = vpop.f32.mrb[0].mxu0
        %v2437 = vpop.f32.mrb[0].mxu0
        %v2438 = vpop.f32.mrb[0].mxu0
        %2439 = vdwg.mxu0
        %v2441 = vsel %vm1644, %v2301, 0
        %v2444 = vsel %vm1644, %v1883, 0
        %2446 = vmatprep.subr.bf16.mxu0 0
        %2447 = vmatpush1.bf16.xpose.msra.mxu0 %v2444
        %2448 = vmatprep.subr.bf16.mxu0 0
        %2449 = vmatpush1.bf16.xpose.msra.mxu0 0
        %2450 = vmatprep.subr.bf16.mxu0 0
        %2451 = vmatpush1.bf16.xpose.msra.mxu0 0
        %2452 = vmatprep.subr.bf16.mxu0 0
        %2453 = vmatpush1.bf16.xpose.msra.mxu0 0
        %2454 = vmatprep.subr.bf16.mxu0 0
        %2455 = vmatpush1.bf16.xpose.msra.mxu0 0
        %2456 = vmatprep.subr.bf16.mxu0 0
        %2457 = vmatpush1.bf16.xpose.msra.mxu0 0
        %2458 = vmatprep.subr.bf16.mxu0 0
        %2459 = vmatpush1.bf16.xpose.msra.mxu0 0
        %2460 = vmatprep.subr.bf16.mxu0 0
        %2461 = vmatpush1.bf16.xpose.msra.mxu0 0
        %2462 = vmatprep.subr.bf16.mxu0 0
        %2463 = vmatpush1.bf16.xpose.msra.mxu0 0
        %2464 = vmatprep.subr.bf16.mxu0 0
        %2465 = vmatpush1.bf16.xpose.msra.mxu0 0
        %2466 = vmatprep.subr.bf16.mxu0 0
        %2467 = vmatpush1.bf16.xpose.msra.mxu0 0
        %2468 = vmatprep.subr.bf16.mxu0 0
        %2469 = vmatpush1.bf16.xpose.msra.mxu0 0
        %2470 = vmatprep.subr.bf16.mxu0 0
        %2471 = vmatpush1.bf16.xpose.msra.mxu0 0
        %2472 = vmatprep.subr.bf16.mxu0 0
        %2473 = vmatpush1.bf16.xpose.msra.mxu0 0
        %2474 = vmatprep.subr.bf16.mxu0 0
        %2475 = vmatpush1.bf16.xpose.msra.mxu0 0
        %2476 = vmatprep.subr.bf16.mxu0 0
        %2477 = vmatpush1.bf16.xpose.msra.mxu0 0
        %2478 = vmatprep.mubr.bf16.mxu0 0
        %2479 = vmatmul.mubr.bf16.gmra.mrb[0].mxu0 %v2441
        %v2480 = vpop.f32.mrb[0].mxu0
        %v2481 = vadd.f32 0.0, %v2480
        %v2482 = vpop.f32.mrb[0].mxu0
        %v2483 = vpop.f32.mrb[0].mxu0
        %v2484 = vpop.f32.mrb[0].mxu0
        %2485 = vdwg.mxu0
        %2486 = vxpose.xlu0.b32.start [1/16] %v2343, 128
        %2487 = vxpose.xlu0.b32.cont [2/16] 0.0, 128
        %2488 = vxpose.xlu0.b32.cont [3/16] 0.0, 128
        %2489 = vxpose.xlu0.b32.cont [4/16] 0.0, 128
        %2490 = vxpose.xlu0.b32.cont [5/16] 0.0, 128
        %2491 = vxpose.xlu0.b32.cont [6/16] 0.0, 128
        %2492 = vxpose.xlu0.b32.cont [7/16] 0.0, 128
        %2493 = vxpose.xlu0.b32.cont [8/16] 0.0, 128
        %2494 = vxpose.xlu0.b32.cont [9/16] 0.0, 128
        %2495 = vxpose.xlu0.b32.cont [10/16] 0.0, 128
        %2496 = vxpose.xlu0.b32.cont [11/16] 0.0, 128
        %2497 = vxpose.xlu0.b32.cont [12/16] 0.0, 128
        %2498 = vxpose.xlu0.b32.cont [13/16] 0.0, 128
        %2499 = vxpose.xlu0.b32.cont [14/16] 0.0, 128
        %2500 = vxpose.xlu0.b32.cont [15/16] 0.0, 128
        %2501 = vxpose.xlu0.b32.end [16/16] 0.0, 128
        %v2502 = vpop.trf.xlu0
        %v2503 = vpop.trf.xlu0
        %v2504 = vpop.trf.xlu0
        %v2505 = vpop.trf.xlu0
        %v2506 = vpop.trf.xlu0
        %v2507 = vpop.trf.xlu0
        %v2508 = vpop.trf.xlu0
        %v2509 = vpop.trf.xlu0
        %v2510 = vpop.trf.xlu0
        %v2511 = vpop.trf.xlu0
        %v2512 = vpop.trf.xlu0
        %v2513 = vpop.trf.xlu0
        %v2514 = vpop.trf.xlu0
        %v2515 = vpop.trf.xlu0
        %v2516 = vpop.trf.xlu0
        %v2517 = vpop.trf.xlu0
        %2518 = vxpose.xlu0.b32.start [1/16] %v2389, 128
        %2519 = vxpose.xlu0.b32.cont [2/16] 0.0, 128
        %2520 = vxpose.xlu0.b32.cont [3/16] 0.0, 128
        %2521 = vxpose.xlu0.b32.cont [4/16] 0.0, 128
        %2522 = vxpose.xlu0.b32.cont [5/16] 0.0, 128
        %2523 = vxpose.xlu0.b32.cont [6/16] 0.0, 128
        %2524 = vxpose.xlu0.b32.cont [7/16] 0.0, 128
        %2525 = vxpose.xlu0.b32.cont [8/16] 0.0, 128
        %2526 = vxpose.xlu0.b32.cont [9/16] 0.0, 128
        %2527 = vxpose.xlu0.b32.cont [10/16] 0.0, 128
        %2528 = vxpose.xlu0.b32.cont [11/16] 0.0, 128
        %2529 = vxpose.xlu0.b32.cont [12/16] 0.0, 128
        %2530 = vxpose.xlu0.b32.cont [13/16] 0.0, 128
        %2531 = vxpose.xlu0.b32.cont [14/16] 0.0, 128
        %2532 = vxpose.xlu0.b32.cont [15/16] 0.0, 128
        %2533 = vxpose.xlu0.b32.end [16/16] 0.0, 128
        %v2534 = vpop.trf.xlu0
        %v2535 = vpop.trf.xlu0
        %v2536 = vpop.trf.xlu0
        %v2537 = vpop.trf.xlu0
        %v2538 = vpop.trf.xlu0
        %v2539 = vpop.trf.xlu0
        %v2540 = vpop.trf.xlu0
        %v2541 = vpop.trf.xlu0
        %v2542 = vpop.trf.xlu0
        %v2543 = vpop.trf.xlu0
        %v2544 = vpop.trf.xlu0
        %v2545 = vpop.trf.xlu0
        %v2546 = vpop.trf.xlu0
        %v2547 = vpop.trf.xlu0
        %v2548 = vpop.trf.xlu0
        %v2549 = vpop.trf.xlu0
        %2550 = vxpose.xlu0.b32.start [1/16] %v2435, 128
        %2551 = vxpose.xlu0.b32.cont [2/16] 0.0, 128
        %2552 = vxpose.xlu0.b32.cont [3/16] 0.0, 128
        %2553 = vxpose.xlu0.b32.cont [4/16] 0.0, 128
        %2554 = vxpose.xlu0.b32.cont [5/16] 0.0, 128
        %2555 = vxpose.xlu0.b32.cont [6/16] 0.0, 128
        %2556 = vxpose.xlu0.b32.cont [7/16] 0.0, 128
        %2557 = vxpose.xlu0.b32.cont [8/16] 0.0, 128
        %2558 = vxpose.xlu0.b32.cont [9/16] 0.0, 128
        %2559 = vxpose.xlu0.b32.cont [10/16] 0.0, 128
        %2560 = vxpose.xlu0.b32.cont [11/16] 0.0, 128
        %2561 = vxpose.xlu0.b32.cont [12/16] 0.0, 128
        %2562 = vxpose.xlu0.b32.cont [13/16] 0.0, 128
        %2563 = vxpose.xlu0.b32.cont [14/16] 0.0, 128
        %2564 = vxpose.xlu0.b32.cont [15/16] 0.0, 128
        %2565 = vxpose.xlu0.b32.end [16/16] 0.0, 128
        %v2566 = vpop.trf.xlu0
        %v2567 = vpop.trf.xlu0
        %v2568 = vpop.trf.xlu0
        %v2569 = vpop.trf.xlu0
        %v2570 = vpop.trf.xlu0
        %v2571 = vpop.trf.xlu0
        %v2572 = vpop.trf.xlu0
        %v2573 = vpop.trf.xlu0
        %v2574 = vpop.trf.xlu0
        %v2575 = vpop.trf.xlu0
        %v2576 = vpop.trf.xlu0
        %v2577 = vpop.trf.xlu0
        %v2578 = vpop.trf.xlu0
        %v2579 = vpop.trf.xlu0
        %v2580 = vpop.trf.xlu0
        %v2581 = vpop.trf.xlu0
        %2582 = vxpose.xlu0.b32.start [1/16] %v2481, 128
        %2583 = vxpose.xlu0.b32.cont [2/16] 0.0, 128
        %2584 = vxpose.xlu0.b32.cont [3/16] 0.0, 128
        %2585 = vxpose.xlu0.b32.cont [4/16] 0.0, 128
        %2586 = vxpose.xlu0.b32.cont [5/16] 0.0, 128
        %2587 = vxpose.xlu0.b32.cont [6/16] 0.0, 128
        %2588 = vxpose.xlu0.b32.cont [7/16] 0.0, 128
        %2589 = vxpose.xlu0.b32.cont [8/16] 0.0, 128
        %2590 = vxpose.xlu0.b32.cont [9/16] 0.0, 128
        %2591 = vxpose.xlu0.b32.cont [10/16] 0.0, 128
        %2592 = vxpose.xlu0.b32.cont [11/16] 0.0, 128
        %2593 = vxpose.xlu0.b32.cont [12/16] 0.0, 128
        %2594 = vxpose.xlu0.b32.cont [13/16] 0.0, 128
        %2595 = vxpose.xlu0.b32.cont [14/16] 0.0, 128
        %2596 = vxpose.xlu0.b32.cont [15/16] 0.0, 128
        %2597 = vxpose.xlu0.b32.end [16/16] 0.0, 128
        %v2598 = vpop.trf.xlu0
        %v2599 = vpop.trf.xlu0
        %v2600 = vpop.trf.xlu0
        %v2601 = vpop.trf.xlu0
        %v2602 = vpop.trf.xlu0
        %v2603 = vpop.trf.xlu0
        %v2604 = vpop.trf.xlu0
        %v2605 = vpop.trf.xlu0
        %v2606 = vpop.trf.xlu0
        %v2607 = vpop.trf.xlu0
        %v2608 = vpop.trf.xlu0
        %v2609 = vpop.trf.xlu0
        %v2610 = vpop.trf.xlu0
        %v2611 = vpop.trf.xlu0
        %v2612 = vpop.trf.xlu0
        %v2613 = vpop.trf.xlu0
        %v2614 = vcombine.low %v2502, %v2566
        %v2615 = vcombine.high %v2502, %v2566
        %v2617 = vunpack.c.l.s4 1983009808
        %v2618 = vunpack.c.0.s8 %v2617
        %v2619 = vlaneseq
        %v2620 = vshrl.u32 %v2619, 7
        %v2621 = vsub.s32 %v2618, %v2620
        %v2622 = vrot.slane %v2614, %v2621
        %v2624 = vunpack.c.l.s4 1983009808
        %v2625 = vunpack.c.0.s8 %v2624
        %v2626 = vlaneseq
        %v2627 = vshrl.u32 %v2626, 7
        %v2628 = vsub.s32 %v2625, %v2627
        %v2629 = vrot.slane %v2615, %v2628
        %v2630 = vcombine.low %v2534, %v2598
        %v2631 = vcombine.high %v2534, %v2598
        %v2633 = vunpack.c.l.s4 1983009808
        %v2634 = vunpack.c.0.s8 %v2633
        %v2635 = vlaneseq
        %v2636 = vshrl.u32 %v2635, 7
        %v2637 = vsub.s32 %v2634, %v2636
        %v2638 = vrot.slane %v2630, %v2637
        %v2640 = vunpack.c.l.s4 1983009808
        %v2641 = vunpack.c.0.s8 %v2640
        %v2642 = vlaneseq
        %v2643 = vshrl.u32 %v2642, 7
        %v2644 = vsub.s32 %v2641, %v2643
        %v2645 = vrot.slane %v2631, %v2644
        %v2646 = vcombine.low %v2622, %v2638
        %v2647 = vcombine.high %v2622, %v2638
        %v2649 = vunpack.c.l.s4 1934713408
        %v2650 = vunpack.c.0.s8 %v2649
        %v2651 = vlaneseq
        %v2652 = vshrl.u32 %v2651, 7
        %v2653 = vsub.s32 %v2650, %v2652
        %v2654 = vrot.slane %v2646, %v2653
        %v2656 = vunpack.c.l.s4 1934713408
        %v2657 = vunpack.c.0.s8 %v2656
        %v2658 = vlaneseq
        %v2659 = vshrl.u32 %v2658, 7
        %v2660 = vsub.s32 %v2657, %v2659
        %v2661 = vrot.slane %v2647, %v2660
        %v2662 = vcombine.low %v2629, %v2645
        %v2663 = vcombine.high %v2629, %v2645
        %v2665 = vunpack.c.l.s4 1934713408
        %v2666 = vunpack.c.0.s8 %v2665
        %v2667 = vlaneseq
        %v2668 = vshrl.u32 %v2667, 7
        %v2669 = vsub.s32 %v2666, %v2668
        %v2670 = vrot.slane %v2662, %v2669
        %v2672 = vunpack.c.l.s4 1934713408
        %v2673 = vunpack.c.0.s8 %v2672
        %v2674 = vlaneseq
        %v2675 = vshrl.u32 %v2674, 7
        %v2676 = vsub.s32 %v2673, %v2675
        %v2677 = vrot.slane %v2663, %v2676
        %v2678 = vcombine.high %v2654, 0.0
        %v2679 = vcombine.high %v2661, 0.0
        %v2680 = vcombine.high %v2670, 0.0
        %v2681 = vcombine.high %v2677, 0.0
        %v2682 = vcombine.low %v2654, %v2661
        %v2684 = vunpack.c.l.s4 1983009808
        %v2685 = vunpack.c.0.s8 %v2684
        %v2686 = vlaneseq
        %v2687 = vshrl.u32 %v2686, 7
        %v2688 = vsub.s32 %v2685, %v2687
        %v2689 = vrot.slane %v2682, %v2688
        %v2690 = vcombine.low %v2678, %v2679
        %v2692 = vunpack.c.l.s4 1983009808
        %v2693 = vunpack.c.0.s8 %v2692
        %v2694 = vlaneseq
        %v2695 = vshrl.u32 %v2694, 7
        %v2696 = vsub.s32 %v2693, %v2695
        %v2697 = vrot.slane %v2690, %v2696
        %v2698 = vcombine.low %v2670, %v2677
        %v2700 = vunpack.c.l.s4 1983009808
        %v2701 = vunpack.c.0.s8 %v2700
        %v2702 = vlaneseq
        %v2703 = vshrl.u32 %v2702, 7
        %v2704 = vsub.s32 %v2701, %v2703
        %v2705 = vrot.slane %v2698, %v2704
        %v2706 = vcombine.low %v2680, %v2681
        %v2708 = vunpack.c.l.s4 1983009808
        %v2709 = vunpack.c.0.s8 %v2708
        %v2710 = vlaneseq
        %v2711 = vshrl.u32 %v2710, 7
        %v2712 = vsub.s32 %v2709, %v2711
        %v2713 = vrot.slane %v2706, %v2712
        %v2714 = vcombine.low %v2689, %v2697
        %v2715 = vcombine.high %v2689, %v2697
        %v2717 = vunpack.c.l.s4 1934713408
        %v2718 = vunpack.c.0.s8 %v2717
        %v2719 = vlaneseq
        %v2720 = vshrl.u32 %v2719, 7
        %v2721 = vsub.s32 %v2718, %v2720
        %v2722 = vrot.slane %v2714, %v2721
        %v2724 = vunpack.c.l.s4 1934713408
        %v2725 = vunpack.c.0.s8 %v2724
        %v2726 = vlaneseq
        %v2727 = vshrl.u32 %v2726, 7
        %v2728 = vsub.s32 %v2725, %v2727
        %v2729 = vrot.slane %v2715, %v2728
        %v2730 = vcombine.low %v2705, %v2713
        %v2731 = vcombine.high %v2705, %v2713
        %v2733 = vunpack.c.l.s4 1934713408
        %v2734 = vunpack.c.0.s8 %v2733
        %v2735 = vlaneseq
        %v2736 = vshrl.u32 %v2735, 7
        %v2737 = vsub.s32 %v2734, %v2736
        %v2738 = vrot.slane %v2730, %v2737
        %v2740 = vunpack.c.l.s4 1934713408
        %v2741 = vunpack.c.0.s8 %v2740
        %v2742 = vlaneseq
        %v2743 = vshrl.u32 %v2742, 7
        %v2744 = vsub.s32 %v2741, %v2743
        %v2745 = vrot.slane %v2731, %v2744
        %v2746 = vcombine.low %v2722, %v2738
        %v2747 = vcombine.high %v2722, %v2738
        %v2748 = vcombine.low %v2729, %v2745
        %v2749 = vcombine.high %v2729, %v2745
        %2751 = vrot.lane.b32.xlu0 %v2747, 8
        %v2752 = vpop.permute.xlu0 %2751
        %2755 = vrot.lane.b32.xlu0 %v2748, 16
        %v2756 = vpop.permute.xlu0 %2755
        %2759 = vrot.lane.b32.xlu0 %v2749, 24
        %v2760 = vpop.permute.xlu0 %2759
        %v2762 = vsel %vm1644, %v2746, %v2752
        %vm2763 = vcmask 130048
        %v2764 = vsel %vm2763, %v2762, %v2756
        %vm2765 = vcmask 195584
        %v2766 = vsel %vm2765, %v2764, %v2760
        %2768 = vrot.lane.b32.xlu0 %v894, 120
        %v2769 = vpop.permute.xlu0 %2768
        %2771 = vrot.lane.b32.xlu0 %v894, 112
        %v2772 = vpop.permute.xlu0 %2771
        %2774 = vrot.lane.b32.xlu0 %v894, 104
        %v2775 = vpop.permute.xlu0 %2774
        %v2777 = vcombine.low %v894, %v2772
        %v2778 = vcombine.high %v894, %v2772
        %v2780 = vunpack.c.l.s4 1983009808
        %v2781 = vunpack.c.0.s8 %v2780
        %v2782 = vlaneseq
        %v2783 = vshrl.u32 %v2782, 7
        %v2784 = vsub.s32 %v2781, %v2783
        %v2785 = vrot.slane %v2777, %v2784
        %v2787 = vunpack.c.l.s4 1983009808
        %v2788 = vunpack.c.0.s8 %v2787
        %v2789 = vlaneseq
        %v2790 = vshrl.u32 %v2789, 7
        %v2791 = vsub.s32 %v2788, %v2790
        %v2792 = vrot.slane %v2778, %v2791
        %v2793 = vcombine.low %v2769, %v2775
        %v2794 = vcombine.high %v2769, %v2775
        %v2796 = vunpack.c.l.s4 1983009808
        %v2797 = vunpack.c.0.s8 %v2796
        %v2798 = vlaneseq
        %v2799 = vshrl.u32 %v2798, 7
        %v2800 = vsub.s32 %v2797, %v2799
        %v2801 = vrot.slane %v2793, %v2800
        %v2803 = vunpack.c.l.s4 1983009808
        %v2804 = vunpack.c.0.s8 %v2803
        %v2805 = vlaneseq
        %v2806 = vshrl.u32 %v2805, 7
        %v2807 = vsub.s32 %v2804, %v2806
        %v2808 = vrot.slane %v2794, %v2807
        %v2809 = vcombine.low %v2785, %v2801
        %v2810 = vcombine.high %v2785, %v2801
        %v2812 = vunpack.c.l.s4 1934713408
        %v2813 = vunpack.c.0.s8 %v2812
        %v2814 = vlaneseq
        %v2815 = vshrl.u32 %v2814, 7
        %v2816 = vsub.s32 %v2813, %v2815
        %v2817 = vrot.slane %v2809, %v2816
        %v2819 = vunpack.c.l.s4 1934713408
        %v2820 = vunpack.c.0.s8 %v2819
        %v2821 = vlaneseq
        %v2822 = vshrl.u32 %v2821, 7
        %v2823 = vsub.s32 %v2820, %v2822
        %v2824 = vrot.slane %v2810, %v2823
        %v2825 = vcombine.low %v2792, %v2808
        %v2826 = vcombine.high %v2792, %v2808
        %v2828 = vunpack.c.l.s4 1934713408
        %v2829 = vunpack.c.0.s8 %v2828
        %v2830 = vlaneseq
        %v2831 = vshrl.u32 %v2830, 7
        %v2832 = vsub.s32 %v2829, %v2831
        %v2833 = vrot.slane %v2825, %v2832
        %v2835 = vunpack.c.l.s4 1934713408
        %v2836 = vunpack.c.0.s8 %v2835
        %v2837 = vlaneseq
        %v2838 = vshrl.u32 %v2837, 7
        %v2839 = vsub.s32 %v2836, %v2838
        %v2840 = vrot.slane %v2826, %v2839
        %v2841 = vcombine.high %v2817, 0.0
        %v2842 = vcombine.high %v2824, 0.0
        %v2843 = vcombine.high %v2833, 0.0
        %v2844 = vcombine.high %v2840, 0.0
        %v2845 = vpack.c.bf16 %v2817, %v2817
        %v2846 = vpack.c.bf16 %v2841, %v2841
        %v2847 = vpack.c.bf16 %v2824, %v2824
        %v2848 = vpack.c.bf16 %v2842, %v2842
        %v2849 = vpack.c.bf16 %v2833, %v2833
        %v2850 = vpack.c.bf16 %v2843, %v2843
        %v2851 = vpack.c.bf16 %v2840, %v2840
        %v2852 = vpack.c.bf16 %v2844, %v2844
        %2853 = vrot.lane.b32.xlu0 %v894, 96
        %v2854 = vpop.permute.xlu0 %2853
        %2855 = vrot.lane.b32.xlu0 %v2769, 96
        %v2856 = vpop.permute.xlu0 %2855
        %2857 = vrot.lane.b32.xlu0 %v2772, 96
        %v2858 = vpop.permute.xlu0 %2857
        %2859 = vrot.lane.b32.xlu0 %v2775, 96
        %v2860 = vpop.permute.xlu0 %2859
        %v2865 = vcombine.low %v2854, %v2858
        %v2866 = vcombine.high %v2854, %v2858
        %v2868 = vunpack.c.l.s4 1983009808
        %v2869 = vunpack.c.0.s8 %v2868
        %v2870 = vlaneseq
        %v2871 = vshrl.u32 %v2870, 7
        %v2872 = vsub.s32 %v2869, %v2871
        %v2873 = vrot.slane %v2865, %v2872
        %v2875 = vunpack.c.l.s4 1983009808
        %v2876 = vunpack.c.0.s8 %v2875
        %v2877 = vlaneseq
        %v2878 = vshrl.u32 %v2877, 7
        %v2879 = vsub.s32 %v2876, %v2878
        %v2880 = vrot.slane %v2866, %v2879
        %v2881 = vcombine.low %v2856, %v2860
        %v2882 = vcombine.high %v2856, %v2860
        %v2884 = vunpack.c.l.s4 1983009808
        %v2885 = vunpack.c.0.s8 %v2884
        %v2886 = vlaneseq
        %v2887 = vshrl.u32 %v2886, 7
        %v2888 = vsub.s32 %v2885, %v2887
        %v2889 = vrot.slane %v2881, %v2888
        %v2891 = vunpack.c.l.s4 1983009808
        %v2892 = vunpack.c.0.s8 %v2891
        %v2893 = vlaneseq
        %v2894 = vshrl.u32 %v2893, 7
        %v2895 = vsub.s32 %v2892, %v2894
        %v2896 = vrot.slane %v2882, %v2895
        %v2897 = vcombine.low %v2873, %v2889
        %v2898 = vcombine.high %v2873, %v2889
        %v2900 = vunpack.c.l.s4 1934713408
        %v2901 = vunpack.c.0.s8 %v2900
        %v2902 = vlaneseq
        %v2903 = vshrl.u32 %v2902, 7
        %v2904 = vsub.s32 %v2901, %v2903
        %v2905 = vrot.slane %v2897, %v2904
        %v2907 = vunpack.c.l.s4 1934713408
        %v2908 = vunpack.c.0.s8 %v2907
        %v2909 = vlaneseq
        %v2910 = vshrl.u32 %v2909, 7
        %v2911 = vsub.s32 %v2908, %v2910
        %v2912 = vrot.slane %v2898, %v2911
        %v2913 = vcombine.low %v2880, %v2896
        %v2914 = vcombine.high %v2880, %v2896
        %v2916 = vunpack.c.l.s4 1934713408
        %v2917 = vunpack.c.0.s8 %v2916
        %v2918 = vlaneseq
        %v2919 = vshrl.u32 %v2918, 7
        %v2920 = vsub.s32 %v2917, %v2919
        %v2921 = vrot.slane %v2913, %v2920
        %v2923 = vunpack.c.l.s4 1934713408
        %v2924 = vunpack.c.0.s8 %v2923
        %v2925 = vlaneseq
        %v2926 = vshrl.u32 %v2925, 7
        %v2927 = vsub.s32 %v2924, %v2926
        %v2928 = vrot.slane %v2914, %v2927
        %v2929 = vcombine.high %v2905, 0.0
        %v2930 = vcombine.high %v2912, 0.0
        %v2931 = vcombine.high %v2921, 0.0
        %v2932 = vcombine.high %v2928, 0.0
        %v2933 = vpack.c.bf16 %v2905, %v2905
        %v2934 = vpack.c.bf16 %v2929, %v2929
        %v2935 = vpack.c.bf16 %v2912, %v2912
        %v2936 = vpack.c.bf16 %v2930, %v2930
        %v2937 = vpack.c.bf16 %v2921, %v2921
        %v2938 = vpack.c.bf16 %v2931, %v2931
        %v2939 = vpack.c.bf16 %v2928, %v2928
        %v2940 = vpack.c.bf16 %v2932, %v2932
        %2941 = vrot.lane.b32.xlu0 %v894, 64
        %v2942 = vpop.permute.xlu0 %2941
        %2943 = vrot.lane.b32.xlu0 %v2769, 64
        %v2944 = vpop.permute.xlu0 %2943
        %2945 = vrot.lane.b32.xlu0 %v2772, 64
        %v2946 = vpop.permute.xlu0 %2945
        %2947 = vrot.lane.b32.xlu0 %v2775, 64
        %v2948 = vpop.permute.xlu0 %2947
        %v2953 = vcombine.low %v2942, %v2946
        %v2954 = vcombine.high %v2942, %v2946
        %v2956 = vunpack.c.l.s4 1983009808
        %v2957 = vunpack.c.0.s8 %v2956
        %v2958 = vlaneseq
        %v2959 = vshrl.u32 %v2958, 7
        %v2960 = vsub.s32 %v2957, %v2959
        %v2961 = vrot.slane %v2953, %v2960
        %v2963 = vunpack.c.l.s4 1983009808
        %v2964 = vunpack.c.0.s8 %v2963
        %v2965 = vlaneseq
        %v2966 = vshrl.u32 %v2965, 7
        %v2967 = vsub.s32 %v2964, %v2966
        %v2968 = vrot.slane %v2954, %v2967
        %v2969 = vcombine.low %v2944, %v2948
        %v2970 = vcombine.high %v2944, %v2948
        %v2972 = vunpack.c.l.s4 1983009808
        %v2973 = vunpack.c.0.s8 %v2972
        %v2974 = vlaneseq
        %v2975 = vshrl.u32 %v2974, 7
        %v2976 = vsub.s32 %v2973, %v2975
        %v2977 = vrot.slane %v2969, %v2976
        %v2979 = vunpack.c.l.s4 1983009808
        %v2980 = vunpack.c.0.s8 %v2979
        %v2981 = vlaneseq
        %v2982 = vshrl.u32 %v2981, 7
        %v2983 = vsub.s32 %v2980, %v2982
        %v2984 = vrot.slane %v2970, %v2983
        %v2985 = vcombine.low %v2961, %v2977
        %v2986 = vcombine.high %v2961, %v2977
        %v2988 = vunpack.c.l.s4 1934713408
        %v2989 = vunpack.c.0.s8 %v2988
        %v2990 = vlaneseq
        %v2991 = vshrl.u32 %v2990, 7
        %v2992 = vsub.s32 %v2989, %v2991
        %v2993 = vrot.slane %v2985, %v2992
        %v2995 = vunpack.c.l.s4 1934713408
        %v2996 = vunpack.c.0.s8 %v2995
        %v2997 = vlaneseq
        %v2998 = vshrl.u32 %v2997, 7
        %v2999 = vsub.s32 %v2996, %v2998
        %v3000 = vrot.slane %v2986, %v2999
        %v3001 = vcombine.low %v2968, %v2984
        %v3002 = vcombine.high %v2968, %v2984
        %v3004 = vunpack.c.l.s4 1934713408
        %v3005 = vunpack.c.0.s8 %v3004
        %v3006 = vlaneseq
        %v3007 = vshrl.u32 %v3006, 7
        %v3008 = vsub.s32 %v3005, %v3007
        %v3009 = vrot.slane %v3001, %v3008
        %v3011 = vunpack.c.l.s4 1934713408
        %v3012 = vunpack.c.0.s8 %v3011
        %v3013 = vlaneseq
        %v3014 = vshrl.u32 %v3013, 7
        %v3015 = vsub.s32 %v3012, %v3014
        %v3016 = vrot.slane %v3002, %v3015
        %v3017 = vcombine.high %v2993, 0.0
        %v3018 = vcombine.high %v3000, 0.0
        %v3019 = vcombine.high %v3009, 0.0
        %v3020 = vcombine.high %v3016, 0.0
        %v3021 = vpack.c.bf16 %v2993, %v2993
        %v3022 = vpack.c.bf16 %v3017, %v3017
        %v3023 = vpack.c.bf16 %v3000, %v3000
        %v3024 = vpack.c.bf16 %v3018, %v3018
        %v3025 = vpack.c.bf16 %v3009, %v3009
        %v3026 = vpack.c.bf16 %v3019, %v3019
        %v3027 = vpack.c.bf16 %v3016, %v3016
        %v3028 = vpack.c.bf16 %v3020, %v3020
        %v3029 = vcombine.low %v2845, %v2849
        %v3031 = vunpack.c.l.s4 1983009808
        %v3032 = vunpack.c.0.s8 %v3031
        %v3033 = vlaneseq
        %v3034 = vshrl.u32 %v3033, 7
        %v3035 = vsub.s32 %v3032, %v3034
        %v3036 = vrot.slane %v3029, %v3035
        %v3037 = vcombine.low %v2847, %v2851
        %v3039 = vunpack.c.l.s4 1983009808
        %v3040 = vunpack.c.0.s8 %v3039
        %v3041 = vlaneseq
        %v3042 = vshrl.u32 %v3041, 7
        %v3043 = vsub.s32 %v3040, %v3042
        %v3044 = vrot.slane %v3037, %v3043
        %v3045 = vcombine.low %v3036, %v3044
        %v3047 = vunpack.c.l.s4 1934713408
        %v3048 = vunpack.c.0.s8 %v3047
        %v3049 = vlaneseq
        %v3050 = vshrl.u32 %v3049, 7
        %v3051 = vsub.s32 %v3048, %v3050
        %v3052 = vrot.slane %v3045, %v3051
        %v3053 = vcombine.high %v3052, 0
        %v3054 = vcombine.low %v2846, %v2850
        %v3056 = vunpack.c.l.s4 1983009808
        %v3057 = vunpack.c.0.s8 %v3056
        %v3058 = vlaneseq
        %v3059 = vshrl.u32 %v3058, 7
        %v3060 = vsub.s32 %v3057, %v3059
        %v3061 = vrot.slane %v3054, %v3060
        %v3062 = vcombine.low %v2848, %v2852
        %v3064 = vunpack.c.l.s4 1983009808
        %v3065 = vunpack.c.0.s8 %v3064
        %v3066 = vlaneseq
        %v3067 = vshrl.u32 %v3066, 7
        %v3068 = vsub.s32 %v3065, %v3067
        %v3069 = vrot.slane %v3062, %v3068
        %v3070 = vcombine.low %v3061, %v3069
        %v3072 = vunpack.c.l.s4 1934713408
        %v3073 = vunpack.c.0.s8 %v3072
        %v3074 = vlaneseq
        %v3075 = vshrl.u32 %v3074, 7
        %v3076 = vsub.s32 %v3073, %v3075
        %v3077 = vrot.slane %v3070, %v3076
        %v3078 = vcombine.high %v3077, 0
        %v3081 = vpack.i.b16 %v3077, %v3052
        %v3082 = vshrl.u32 %v3052, 16
        %v3083 = vshrl.u32 %v3077, 16
        %v3084 = vpack.i.b16 %v3083, %v3082
        %v3087 = vpack.i.b16 %v3078, %v3053
        %v3088 = vshrl.u32 %v3053, 16
        %v3089 = vshrl.u32 %v3078, 16
        %v3090 = vpack.i.b16 %v3089, %v3088
        %3091 = vxpose.xlu0.c.b16.start [1/8] %v2933, 128
        %3092 = vxpose.xlu0.c.b16.cont [2/8] 0, 128
        %3093 = vxpose.xlu0.c.b16.cont [3/8] 0, 128
        %3094 = vxpose.xlu0.c.b16.cont [4/8] 0, 128
        %3095 = vxpose.xlu0.c.b16.cont [5/8] 0, 128
        %3096 = vxpose.xlu0.c.b16.cont [6/8] 0, 128
        %3097 = vxpose.xlu0.c.b16.cont [7/8] 0, 128
        %3098 = vxpose.xlu0.c.b16.end [8/8] 0, 128
        %v3099 = vpop.trf.xlu0
        %v3100 = vpop.trf.xlu0
        %v3101 = vpop.trf.xlu0
        %v3102 = vpop.trf.xlu0
        %v3103 = vpop.trf.xlu0
        %v3104 = vpop.trf.xlu0
        %v3105 = vpop.trf.xlu0
        %v3106 = vpop.trf.xlu0
        %3107 = vxpose.xlu0.c.b16.start [1/8] %v2934, 128
        %3108 = vxpose.xlu0.c.b16.cont [2/8] 0, 128
        %3109 = vxpose.xlu0.c.b16.cont [3/8] 0, 128
        %3110 = vxpose.xlu0.c.b16.cont [4/8] 0, 128
        %3111 = vxpose.xlu0.c.b16.cont [5/8] 0, 128
        %3112 = vxpose.xlu0.c.b16.cont [6/8] 0, 128
        %3113 = vxpose.xlu0.c.b16.cont [7/8] 0, 128
        %3114 = vxpose.xlu0.c.b16.end [8/8] 0, 128
        %v3115 = vpop.trf.xlu0
        %v3116 = vpop.trf.xlu0
        %v3117 = vpop.trf.xlu0
        %v3118 = vpop.trf.xlu0
        %v3119 = vpop.trf.xlu0
        %v3120 = vpop.trf.xlu0
        %v3121 = vpop.trf.xlu0
        %v3122 = vpop.trf.xlu0
        %3123 = vxpose.xlu0.c.b16.start [1/8] %v2935, 128
        %3124 = vxpose.xlu0.c.b16.cont [2/8] 0, 128
        %3125 = vxpose.xlu0.c.b16.cont [3/8] 0, 128
        %3126 = vxpose.xlu0.c.b16.cont [4/8] 0, 128
        %3127 = vxpose.xlu0.c.b16.cont [5/8] 0, 128
        %3128 = vxpose.xlu0.c.b16.cont [6/8] 0, 128
        %3129 = vxpose.xlu0.c.b16.cont [7/8] 0, 128
        %3130 = vxpose.xlu0.c.b16.end [8/8] 0, 128
        %v3131 = vpop.trf.xlu0
        %v3132 = vpop.trf.xlu0
        %v3133 = vpop.trf.xlu0
        %v3134 = vpop.trf.xlu0
        %v3135 = vpop.trf.xlu0
        %v3136 = vpop.trf.xlu0
        %v3137 = vpop.trf.xlu0
        %v3138 = vpop.trf.xlu0
        %3139 = vxpose.xlu0.c.b16.start [1/8] %v2936, 128
        %3140 = vxpose.xlu0.c.b16.cont [2/8] 0, 128
        %3141 = vxpose.xlu0.c.b16.cont [3/8] 0, 128
        %3142 = vxpose.xlu0.c.b16.cont [4/8] 0, 128
        %3143 = vxpose.xlu0.c.b16.cont [5/8] 0, 128
        %3144 = vxpose.xlu0.c.b16.cont [6/8] 0, 128
        %3145 = vxpose.xlu0.c.b16.cont [7/8] 0, 128
        %3146 = vxpose.xlu0.c.b16.end [8/8] 0, 128
        %v3147 = vpop.trf.xlu0
        %v3148 = vpop.trf.xlu0
        %v3149 = vpop.trf.xlu0
        %v3150 = vpop.trf.xlu0
        %v3151 = vpop.trf.xlu0
        %v3152 = vpop.trf.xlu0
        %v3153 = vpop.trf.xlu0
        %v3154 = vpop.trf.xlu0
        %3155 = vxpose.xlu0.c.b16.start [1/8] %v2937, 128
        %3156 = vxpose.xlu0.c.b16.cont [2/8] 0, 128
        %3157 = vxpose.xlu0.c.b16.cont [3/8] 0, 128
        %3158 = vxpose.xlu0.c.b16.cont [4/8] 0, 128
        %3159 = vxpose.xlu0.c.b16.cont [5/8] 0, 128
        %3160 = vxpose.xlu0.c.b16.cont [6/8] 0, 128
        %3161 = vxpose.xlu0.c.b16.cont [7/8] 0, 128
        %3162 = vxpose.xlu0.c.b16.end [8/8] 0, 128
        %v3163 = vpop.trf.xlu0
        %v3164 = vpop.trf.xlu0
        %v3165 = vpop.trf.xlu0
        %v3166 = vpop.trf.xlu0
        %v3167 = vpop.trf.xlu0
        %v3168 = vpop.trf.xlu0
        %v3169 = vpop.trf.xlu0
        %v3170 = vpop.trf.xlu0
        %3171 = vxpose.xlu0.c.b16.start [1/8] %v2938, 128
        %3172 = vxpose.xlu0.c.b16.cont [2/8] 0, 128
        %3173 = vxpose.xlu0.c.b16.cont [3/8] 0, 128
        %3174 = vxpose.xlu0.c.b16.cont [4/8] 0, 128
        %3175 = vxpose.xlu0.c.b16.cont [5/8] 0, 128
        %3176 = vxpose.xlu0.c.b16.cont [6/8] 0, 128
        %3177 = vxpose.xlu0.c.b16.cont [7/8] 0, 128
        %3178 = vxpose.xlu0.c.b16.end [8/8] 0, 128
        %v3179 = vpop.trf.xlu0
        %v3180 = vpop.trf.xlu0
        %v3181 = vpop.trf.xlu0
        %v3182 = vpop.trf.xlu0
        %v3183 = vpop.trf.xlu0
        %v3184 = vpop.trf.xlu0
        %v3185 = vpop.trf.xlu0
        %v3186 = vpop.trf.xlu0
        %3187 = vxpose.xlu0.c.b16.start [1/8] %v2939, 128
        %3188 = vxpose.xlu0.c.b16.cont [2/8] 0, 128
        %3189 = vxpose.xlu0.c.b16.cont [3/8] 0, 128
        %3190 = vxpose.xlu0.c.b16.cont [4/8] 0, 128
        %3191 = vxpose.xlu0.c.b16.cont [5/8] 0, 128
        %3192 = vxpose.xlu0.c.b16.cont [6/8] 0, 128
        %3193 = vxpose.xlu0.c.b16.cont [7/8] 0, 128
        %3194 = vxpose.xlu0.c.b16.end [8/8] 0, 128
        %v3195 = vpop.trf.xlu0
        %v3196 = vpop.trf.xlu0
        %v3197 = vpop.trf.xlu0
        %v3198 = vpop.trf.xlu0
        %v3199 = vpop.trf.xlu0
        %v3200 = vpop.trf.xlu0
        %v3201 = vpop.trf.xlu0
        %v3202 = vpop.trf.xlu0
        %3203 = vxpose.xlu0.c.b16.start [1/8] %v2940, 128
        %3204 = vxpose.xlu0.c.b16.cont [2/8] 0, 128
        %3205 = vxpose.xlu0.c.b16.cont [3/8] 0, 128
        %3206 = vxpose.xlu0.c.b16.cont [4/8] 0, 128
        %3207 = vxpose.xlu0.c.b16.cont [5/8] 0, 128
        %3208 = vxpose.xlu0.c.b16.cont [6/8] 0, 128
        %3209 = vxpose.xlu0.c.b16.cont [7/8] 0, 128
        %3210 = vxpose.xlu0.c.b16.end [8/8] 0, 128
        %v3211 = vpop.trf.xlu0
        %v3212 = vpop.trf.xlu0
        %v3213 = vpop.trf.xlu0
        %v3214 = vpop.trf.xlu0
        %v3215 = vpop.trf.xlu0
        %v3216 = vpop.trf.xlu0
        %v3217 = vpop.trf.xlu0
        %v3218 = vpop.trf.xlu0
        %v3219 = vcombine.low %v3099, %v3163
        %v3221 = vunpack.c.l.s4 1983009808
        %v3222 = vunpack.c.0.s8 %v3221
        %v3223 = vlaneseq
        %v3224 = vshrl.u32 %v3223, 7
        %v3225 = vsub.s32 %v3222, %v3224
        %v3226 = vrot.slane %v3219, %v3225
        %v3227 = vcombine.low %v3131, %v3195
        %v3229 = vunpack.c.l.s4 1983009808
        %v3230 = vunpack.c.0.s8 %v3229
        %v3231 = vlaneseq
        %v3232 = vshrl.u32 %v3231, 7
        %v3233 = vsub.s32 %v3230, %v3232
        %v3234 = vrot.slane %v3227, %v3233
        %v3235 = vcombine.low %v3226, %v3234
        %v3236 = vcombine.high %v3226, %v3234
        %v3238 = vunpack.c.l.s4 1934713408
        %v3239 = vunpack.c.0.s8 %v3238
        %v3240 = vlaneseq
        %v3241 = vshrl.u32 %v3240, 7
        %v3242 = vsub.s32 %v3239, %v3241
        %v3243 = vrot.slane %v3235, %v3242
        %v3245 = vunpack.c.l.s4 1934713408
        %v3246 = vunpack.c.0.s8 %v3245
        %v3247 = vlaneseq
        %v3248 = vshrl.u32 %v3247, 7
        %v3249 = vsub.s32 %v3246, %v3248
        %v3250 = vrot.slane %v3236, %v3249
        %v3251 = vcombine.high %v3243, 0
        %v3252 = vcombine.high %v3250, 0
        %v3253 = vcombine.low %v3115, %v3179
        %v3255 = vunpack.c.l.s4 1983009808
        %v3256 = vunpack.c.0.s8 %v3255
        %v3257 = vlaneseq
        %v3258 = vshrl.u32 %v3257, 7
        %v3259 = vsub.s32 %v3256, %v3258
        %v3260 = vrot.slane %v3253, %v3259
        %v3261 = vcombine.low %v3147, %v3211
        %v3263 = vunpack.c.l.s4 1983009808
        %v3264 = vunpack.c.0.s8 %v3263
        %v3265 = vlaneseq
        %v3266 = vshrl.u32 %v3265, 7
        %v3267 = vsub.s32 %v3264, %v3266
        %v3268 = vrot.slane %v3261, %v3267
        %v3269 = vcombine.low %v3260, %v3268
        %v3270 = vcombine.high %v3260, %v3268
        %v3272 = vunpack.c.l.s4 1934713408
        %v3273 = vunpack.c.0.s8 %v3272
        %v3274 = vlaneseq
        %v3275 = vshrl.u32 %v3274, 7
        %v3276 = vsub.s32 %v3273, %v3275
        %v3277 = vrot.slane %v3269, %v3276
        %v3279 = vunpack.c.l.s4 1934713408
        %v3280 = vunpack.c.0.s8 %v3279
        %v3281 = vlaneseq
        %v3282 = vshrl.u32 %v3281, 7
        %v3283 = vsub.s32 %v3280, %v3282
        %v3284 = vrot.slane %v3270, %v3283
        %v3285 = vcombine.high %v3277, 0
        %v3286 = vcombine.high %v3284, 0
        %v3289 = vpack.i.b16 %v3277, %v3243
        %v3291 = vshrl.u32 %v3243, 16
        %v3292 = vshrl.u32 %v3277, 16
        %v3293 = vpack.i.b16 %v3292, %v3291
        %v3297 = vpack.i.b16 %v3285, %v3251
        %v3299 = vshrl.u32 %v3251, 16
        %v3300 = vshrl.u32 %v3285, 16
        %v3301 = vpack.i.b16 %v3300, %v3299
        %v3305 = vpack.i.b16 %v3284, %v3250
        %v3307 = vshrl.u32 %v3250, 16
        %v3308 = vshrl.u32 %v3284, 16
        %v3309 = vpack.i.b16 %v3308, %v3307
        %v3313 = vpack.i.b16 %v3286, %v3252
        %v3315 = vshrl.u32 %v3252, 16
        %v3316 = vshrl.u32 %v3286, 16
        %v3317 = vpack.i.b16 %v3316, %v3315
        %3319 = vxpose.xlu0.c.b16.start [1/8] %v3289, 128
        %3320 = vxpose.xlu0.c.b16.cont [2/8] 0, 128
        %3321 = vxpose.xlu0.c.b16.cont [3/8] 0, 128
        %3322 = vxpose.xlu0.c.b16.cont [4/8] 0, 128
        %3323 = vxpose.xlu0.c.b16.cont [5/8] 0, 128
        %3324 = vxpose.xlu0.c.b16.cont [6/8] 0, 128
        %3325 = vxpose.xlu0.c.b16.cont [7/8] 0, 128
        %3326 = vxpose.xlu0.c.b16.end [8/8] 0, 128
        %v3327 = vpop.trf.xlu0
        %v3328 = vpop.trf.xlu0
        %v3329 = vpop.trf.xlu0
        %v3330 = vpop.trf.xlu0
        %v3331 = vpop.trf.xlu0
        %v3332 = vpop.trf.xlu0
        %v3333 = vpop.trf.xlu0
        %v3334 = vpop.trf.xlu0
        %3335 = vxpose.xlu0.c.b16.start [1/8] %v3293, 128
        %3336 = vxpose.xlu0.c.b16.cont [2/8] 0, 128
        %3337 = vxpose.xlu0.c.b16.cont [3/8] 0, 128
        %3338 = vxpose.xlu0.c.b16.cont [4/8] 0, 128
        %3339 = vxpose.xlu0.c.b16.cont [5/8] 0, 128
        %3340 = vxpose.xlu0.c.b16.cont [6/8] 0, 128
        %3341 = vxpose.xlu0.c.b16.cont [7/8] 0, 128
        %3342 = vxpose.xlu0.c.b16.end [8/8] 0, 128
        %v3343 = vpop.trf.xlu0
        %v3344 = vpop.trf.xlu0
        %v3345 = vpop.trf.xlu0
        %v3346 = vpop.trf.xlu0
        %v3347 = vpop.trf.xlu0
        %v3348 = vpop.trf.xlu0
        %v3349 = vpop.trf.xlu0
        %v3350 = vpop.trf.xlu0
        %3351 = vxpose.xlu0.c.b16.start [1/8] %v3297, 128
        %3352 = vxpose.xlu0.c.b16.cont [2/8] 0, 128
        %3353 = vxpose.xlu0.c.b16.cont [3/8] 0, 128
        %3354 = vxpose.xlu0.c.b16.cont [4/8] 0, 128
        %3355 = vxpose.xlu0.c.b16.cont [5/8] 0, 128
        %3356 = vxpose.xlu0.c.b16.cont [6/8] 0, 128
        %3357 = vxpose.xlu0.c.b16.cont [7/8] 0, 128
        %3358 = vxpose.xlu0.c.b16.end [8/8] 0, 128
        %v3359 = vpop.trf.xlu0
        %v3360 = vpop.trf.xlu0
        %v3361 = vpop.trf.xlu0
        %v3362 = vpop.trf.xlu0
        %v3363 = vpop.trf.xlu0
        %v3364 = vpop.trf.xlu0
        %v3365 = vpop.trf.xlu0
        %v3366 = vpop.trf.xlu0
        %3367 = vxpose.xlu0.c.b16.start [1/8] %v3301, 128
        %3368 = vxpose.xlu0.c.b16.cont [2/8] 0, 128
        %3369 = vxpose.xlu0.c.b16.cont [3/8] 0, 128
        %3370 = vxpose.xlu0.c.b16.cont [4/8] 0, 128
        %3371 = vxpose.xlu0.c.b16.cont [5/8] 0, 128
        %3372 = vxpose.xlu0.c.b16.cont [6/8] 0, 128
        %3373 = vxpose.xlu0.c.b16.cont [7/8] 0, 128
        %3374 = vxpose.xlu0.c.b16.end [8/8] 0, 128
        %v3375 = vpop.trf.xlu0
        %v3376 = vpop.trf.xlu0
        %v3377 = vpop.trf.xlu0
        %v3378 = vpop.trf.xlu0
        %v3379 = vpop.trf.xlu0
        %v3380 = vpop.trf.xlu0
        %v3381 = vpop.trf.xlu0
        %v3382 = vpop.trf.xlu0
        %3383 = vxpose.xlu0.c.b16.start [1/8] %v3305, 128
        %3384 = vxpose.xlu0.c.b16.cont [2/8] 0, 128
        %3385 = vxpose.xlu0.c.b16.cont [3/8] 0, 128
        %3386 = vxpose.xlu0.c.b16.cont [4/8] 0, 128
        %3387 = vxpose.xlu0.c.b16.cont [5/8] 0, 128
        %3388 = vxpose.xlu0.c.b16.cont [6/8] 0, 128
        %3389 = vxpose.xlu0.c.b16.cont [7/8] 0, 128
        %3390 = vxpose.xlu0.c.b16.end [8/8] 0, 128
        %v3391 = vpop.trf.xlu0
        %v3392 = vpop.trf.xlu0
        %v3393 = vpop.trf.xlu0
        %v3394 = vpop.trf.xlu0
        %v3395 = vpop.trf.xlu0
        %v3396 = vpop.trf.xlu0
        %v3397 = vpop.trf.xlu0
        %v3398 = vpop.trf.xlu0
        %3399 = vxpose.xlu0.c.b16.start [1/8] %v3309, 128
        %3400 = vxpose.xlu0.c.b16.cont [2/8] 0, 128
        %3401 = vxpose.xlu0.c.b16.cont [3/8] 0, 128
        %3402 = vxpose.xlu0.c.b16.cont [4/8] 0, 128
        %3403 = vxpose.xlu0.c.b16.cont [5/8] 0, 128
        %3404 = vxpose.xlu0.c.b16.cont [6/8] 0, 128
        %3405 = vxpose.xlu0.c.b16.cont [7/8] 0, 128
        %3406 = vxpose.xlu0.c.b16.end [8/8] 0, 128
        %v3407 = vpop.trf.xlu0
        %v3408 = vpop.trf.xlu0
        %v3409 = vpop.trf.xlu0
        %v3410 = vpop.trf.xlu0
        %v3411 = vpop.trf.xlu0
        %v3412 = vpop.trf.xlu0
        %v3413 = vpop.trf.xlu0
        %v3414 = vpop.trf.xlu0
        %3415 = vxpose.xlu0.c.b16.start [1/8] %v3313, 128
        %3416 = vxpose.xlu0.c.b16.cont [2/8] 0, 128
        %3417 = vxpose.xlu0.c.b16.cont [3/8] 0, 128
        %3418 = vxpose.xlu0.c.b16.cont [4/8] 0, 128
        %3419 = vxpose.xlu0.c.b16.cont [5/8] 0, 128
        %3420 = vxpose.xlu0.c.b16.cont [6/8] 0, 128
        %3421 = vxpose.xlu0.c.b16.cont [7/8] 0, 128
        %3422 = vxpose.xlu0.c.b16.end [8/8] 0, 128
        %v3423 = vpop.trf.xlu0
        %v3424 = vpop.trf.xlu0
        %v3425 = vpop.trf.xlu0
        %v3426 = vpop.trf.xlu0
        %v3427 = vpop.trf.xlu0
        %v3428 = vpop.trf.xlu0
        %v3429 = vpop.trf.xlu0
        %v3430 = vpop.trf.xlu0
        %3431 = vxpose.xlu0.c.b16.start [1/8] %v3317, 128
        %3432 = vxpose.xlu0.c.b16.cont [2/8] 0, 128
        %3433 = vxpose.xlu0.c.b16.cont [3/8] 0, 128
        %3434 = vxpose.xlu0.c.b16.cont [4/8] 0, 128
        %3435 = vxpose.xlu0.c.b16.cont [5/8] 0, 128
        %3436 = vxpose.xlu0.c.b16.cont [6/8] 0, 128
        %3437 = vxpose.xlu0.c.b16.cont [7/8] 0, 128
        %3438 = vxpose.xlu0.c.b16.end [8/8] 0, 128
        %v3439 = vpop.trf.xlu0
        %v3440 = vpop.trf.xlu0
        %v3441 = vpop.trf.xlu0
        %v3442 = vpop.trf.xlu0
        %v3443 = vpop.trf.xlu0
        %v3444 = vpop.trf.xlu0
        %v3445 = vpop.trf.xlu0
        %v3446 = vpop.trf.xlu0
        %v3447 = vcombine.low %v3327, %v3391
        %v3449 = vunpack.c.l.s4 1983009808
        %v3450 = vunpack.c.0.s8 %v3449
        %v3451 = vlaneseq
        %v3452 = vshrl.u32 %v3451, 7
        %v3453 = vsub.s32 %v3450, %v3452
        %v3454 = vrot.slane %v3447, %v3453
        %v3455 = vcombine.low %v3359, %v3423
        %v3457 = vunpack.c.l.s4 1983009808
        %v3458 = vunpack.c.0.s8 %v3457
        %v3459 = vlaneseq
        %v3460 = vshrl.u32 %v3459, 7
        %v3461 = vsub.s32 %v3458, %v3460
        %v3462 = vrot.slane %v3455, %v3461
        %v3463 = vcombine.low %v3454, %v3462
        %v3465 = vunpack.c.l.s4 1934713408
        %v3466 = vunpack.c.0.s8 %v3465
        %v3467 = vlaneseq
        %v3468 = vshrl.u32 %v3467, 7
        %v3469 = vsub.s32 %v3466, %v3468
        %v3470 = vrot.slane %v3463, %v3469
        %v3471 = vcombine.high %v3470, 0
        %v3472 = vcombine.low %v3343, %v3407
        %v3474 = vunpack.c.l.s4 1983009808
        %v3475 = vunpack.c.0.s8 %v3474
        %v3476 = vlaneseq
        %v3477 = vshrl.u32 %v3476, 7
        %v3478 = vsub.s32 %v3475, %v3477
        %v3479 = vrot.slane %v3472, %v3478
        %v3480 = vcombine.low %v3375, %v3439
        %v3482 = vunpack.c.l.s4 1983009808
        %v3483 = vunpack.c.0.s8 %v3482
        %v3484 = vlaneseq
        %v3485 = vshrl.u32 %v3484, 7
        %v3486 = vsub.s32 %v3483, %v3485
        %v3487 = vrot.slane %v3480, %v3486
        %v3488 = vcombine.low %v3479, %v3487
        %v3490 = vunpack.c.l.s4 1934713408
        %v3491 = vunpack.c.0.s8 %v3490
        %v3492 = vlaneseq
        %v3493 = vshrl.u32 %v3492, 7
        %v3494 = vsub.s32 %v3491, %v3493
        %v3495 = vrot.slane %v3488, %v3494
        %v3496 = vcombine.high %v3495, 0
        %v3499 = vpack.i.b16 %v3495, %v3470
        %v3500 = vshrl.u32 %v3470, 16
        %v3501 = vshrl.u32 %v3495, 16
        %v3502 = vpack.i.b16 %v3501, %v3500
        %v3505 = vpack.i.b16 %v3496, %v3471
        %v3506 = vshrl.u32 %v3471, 16
        %v3507 = vshrl.u32 %v3496, 16
        %v3508 = vpack.i.b16 %v3507, %v3506
        %v3510 = vsel %vm1644, %v3081, 0
        %v3513 = vsel %vm1648, %v3499, 0
        %3515 = vmatprep.subr.bf16.mxu0 0
        %3516 = vmatpush1.bf16.msra.mxu0 %v3513
        %3517 = vmatprep.subr.bf16.mxu0 0
        %3518 = vmatpush1.bf16.msra.mxu0 0
        %3519 = vmatprep.subr.bf16.mxu0 0
        %3520 = vmatpush1.bf16.msra.mxu0 0
        %3521 = vmatprep.subr.bf16.mxu0 0
        %3522 = vmatpush1.bf16.msra.mxu0 0
        %3523 = vmatprep.subr.bf16.mxu0 0
        %3524 = vmatpush1.bf16.msra.mxu0 0
        %3525 = vmatprep.subr.bf16.mxu0 0
        %3526 = vmatpush1.bf16.msra.mxu0 0
        %3527 = vmatprep.subr.bf16.mxu0 0
        %3528 = vmatpush1.bf16.msra.mxu0 0
        %3529 = vmatprep.subr.bf16.mxu0 0
        %3530 = vmatpush1.bf16.msra.mxu0 0
        %3531 = vmatprep.subr.bf16.mxu0 0
        %3532 = vmatpush1.bf16.msra.mxu0 0
        %3533 = vmatprep.subr.bf16.mxu0 0
        %3534 = vmatpush1.bf16.msra.mxu0 0
        %3535 = vmatprep.subr.bf16.mxu0 0
        %3536 = vmatpush1.bf16.msra.mxu0 0
        %3537 = vmatprep.subr.bf16.mxu0 0
        %3538 = vmatpush1.bf16.msra.mxu0 0
        %3539 = vmatprep.subr.bf16.mxu0 0
        %3540 = vmatpush1.bf16.msra.mxu0 0
        %3541 = vmatprep.subr.bf16.mxu0 0
        %3542 = vmatpush1.bf16.msra.mxu0 0
        %3543 = vmatprep.subr.bf16.mxu0 0
        %3544 = vmatpush1.bf16.msra.mxu0 0
        %3545 = vmatprep.subr.bf16.mxu0 0
        %3546 = vmatpush1.bf16.msra.mxu0 0
        %3547 = vmatprep.mubr.bf16.mxu0 0
        %3548 = vmatmul.mubr.bf16.gmra.mrb[0].mxu0 %v3510
        %v3549 = vpop.f32.mrb[0].mxu0
        %v3550 = vadd.f32 0.0, %v3549
        %v3551 = vpop.f32.mrb[0].mxu0
        %v3552 = vpop.f32.mrb[0].mxu0
        %v3553 = vpop.f32.mrb[0].mxu0
        %3554 = vdwg.mxu0
        %v3556 = vsel %vm1644, %v3084, 0
        %v3559 = vsel %vm1648, %v3502, 0
        %3561 = vmatprep.subr.bf16.mxu0 0
        %3562 = vmatpush1.bf16.msra.mxu0 %v3559
        %3563 = vmatprep.subr.bf16.mxu0 0
        %3564 = vmatpush1.bf16.msra.mxu0 0
        %3565 = vmatprep.subr.bf16.mxu0 0
        %3566 = vmatpush1.bf16.msra.mxu0 0
        %3567 = vmatprep.subr.bf16.mxu0 0
        %3568 = vmatpush1.bf16.msra.mxu0 0
        %3569 = vmatprep.subr.bf16.mxu0 0
        %3570 = vmatpush1.bf16.msra.mxu0 0
        %3571 = vmatprep.subr.bf16.mxu0 0
        %3572 = vmatpush1.bf16.msra.mxu0 0
        %3573 = vmatprep.subr.bf16.mxu0 0
        %3574 = vmatpush1.bf16.msra.mxu0 0
        %3575 = vmatprep.subr.bf16.mxu0 0
        %3576 = vmatpush1.bf16.msra.mxu0 0
        %3577 = vmatprep.subr.bf16.mxu0 0
        %3578 = vmatpush1.bf16.msra.mxu0 0
        %3579 = vmatprep.subr.bf16.mxu0 0
        %3580 = vmatpush1.bf16.msra.mxu0 0
        %3581 = vmatprep.subr.bf16.mxu0 0
        %3582 = vmatpush1.bf16.msra.mxu0 0
        %3583 = vmatprep.subr.bf16.mxu0 0
        %3584 = vmatpush1.bf16.msra.mxu0 0
        %3585 = vmatprep.subr.bf16.mxu0 0
        %3586 = vmatpush1.bf16.msra.mxu0 0
        %3587 = vmatprep.subr.bf16.mxu0 0
        %3588 = vmatpush1.bf16.msra.mxu0 0
        %3589 = vmatprep.subr.bf16.mxu0 0
        %3590 = vmatpush1.bf16.msra.mxu0 0
        %3591 = vmatprep.subr.bf16.mxu0 0
        %3592 = vmatpush1.bf16.msra.mxu0 0
        %3593 = vmatprep.mubr.bf16.mxu0 0
        %3594 = vmatmul.mubr.bf16.gmra.mrb[0].mxu0 %v3556
        %v3595 = vpop.f32.mrb[0].mxu0
        %v3596 = vadd.f32 0.0, %v3595
        %v3597 = vpop.f32.mrb[0].mxu0
        %v3598 = vpop.f32.mrb[0].mxu0
        %v3599 = vpop.f32.mrb[0].mxu0
        %3600 = vdwg.mxu0
        %v3602 = vsel %vm1644, %v3087, 0
        %v3605 = vsel %vm1648, %v3505, 0
        %3607 = vmatprep.subr.bf16.mxu0 0
        %3608 = vmatpush1.bf16.msra.mxu0 %v3605
        %3609 = vmatprep.subr.bf16.mxu0 0
        %3610 = vmatpush1.bf16.msra.mxu0 0
        %3611 = vmatprep.subr.bf16.mxu0 0
        %3612 = vmatpush1.bf16.msra.mxu0 0
        %3613 = vmatprep.subr.bf16.mxu0 0
        %3614 = vmatpush1.bf16.msra.mxu0 0
        %3615 = vmatprep.subr.bf16.mxu0 0
        %3616 = vmatpush1.bf16.msra.mxu0 0
        %3617 = vmatprep.subr.bf16.mxu0 0
        %3618 = vmatpush1.bf16.msra.mxu0 0
        %3619 = vmatprep.subr.bf16.mxu0 0
        %3620 = vmatpush1.bf16.msra.mxu0 0
        %3621 = vmatprep.subr.bf16.mxu0 0
        %3622 = vmatpush1.bf16.msra.mxu0 0
        %3623 = vmatprep.subr.bf16.mxu0 0
        %3624 = vmatpush1.bf16.msra.mxu0 0
        %3625 = vmatprep.subr.bf16.mxu0 0
        %3626 = vmatpush1.bf16.msra.mxu0 0
        %3627 = vmatprep.subr.bf16.mxu0 0
        %3628 = vmatpush1.bf16.msra.mxu0 0
        %3629 = vmatprep.subr.bf16.mxu0 0
        %3630 = vmatpush1.bf16.msra.mxu0 0
        %3631 = vmatprep.subr.bf16.mxu0 0
        %3632 = vmatpush1.bf16.msra.mxu0 0
        %3633 = vmatprep.subr.bf16.mxu0 0
        %3634 = vmatpush1.bf16.msra.mxu0 0
        %3635 = vmatprep.subr.bf16.mxu0 0
        %3636 = vmatpush1.bf16.msra.mxu0 0
        %3637 = vmatprep.subr.bf16.mxu0 0
        %3638 = vmatpush1.bf16.msra.mxu0 0
        %3639 = vmatprep.mubr.bf16.mxu0 0
        %3640 = vmatmul.mubr.bf16.gmra.mrb[0].mxu0 %v3602
        %v3641 = vpop.f32.mrb[0].mxu0
        %v3642 = vadd.f32 0.0, %v3641
        %v3643 = vpop.f32.mrb[0].mxu0
        %v3644 = vpop.f32.mrb[0].mxu0
        %v3645 = vpop.f32.mrb[0].mxu0
        %3646 = vdwg.mxu0
        %v3648 = vsel %vm1644, %v3090, 0
        %v3651 = vsel %vm1648, %v3508, 0
        %3653 = vmatprep.subr.bf16.mxu0 0
        %3654 = vmatpush1.bf16.msra.mxu0 %v3651
        %3655 = vmatprep.subr.bf16.mxu0 0
        %3656 = vmatpush1.bf16.msra.mxu0 0
        %3657 = vmatprep.subr.bf16.mxu0 0
        %3658 = vmatpush1.bf16.msra.mxu0 0
        %3659 = vmatprep.subr.bf16.mxu0 0
        %3660 = vmatpush1.bf16.msra.mxu0 0
        %3661 = vmatprep.subr.bf16.mxu0 0
        %3662 = vmatpush1.bf16.msra.mxu0 0
        %3663 = vmatprep.subr.bf16.mxu0 0
        %3664 = vmatpush1.bf16.msra.mxu0 0
        %3665 = vmatprep.subr.bf16.mxu0 0
        %3666 = vmatpush1.bf16.msra.mxu0 0
        %3667 = vmatprep.subr.bf16.mxu0 0
        %3668 = vmatpush1.bf16.msra.mxu0 0
        %3669 = vmatprep.subr.bf16.mxu0 0
        %3670 = vmatpush1.bf16.msra.mxu0 0
        %3671 = vmatprep.subr.bf16.mxu0 0
        %3672 = vmatpush1.bf16.msra.mxu0 0
        %3673 = vmatprep.subr.bf16.mxu0 0
        %3674 = vmatpush1.bf16.msra.mxu0 0
        %3675 = vmatprep.subr.bf16.mxu0 0
        %3676 = vmatpush1.bf16.msra.mxu0 0
        %3677 = vmatprep.subr.bf16.mxu0 0
        %3678 = vmatpush1.bf16.msra.mxu0 0
        %3679 = vmatprep.subr.bf16.mxu0 0
        %3680 = vmatpush1.bf16.msra.mxu0 0
        %3681 = vmatprep.subr.bf16.mxu0 0
        %3682 = vmatpush1.bf16.msra.mxu0 0
        %3683 = vmatprep.subr.bf16.mxu0 0
        %3684 = vmatpush1.bf16.msra.mxu0 0
        %3685 = vmatprep.mubr.bf16.mxu0 0
        %3686 = vmatmul.mubr.bf16.gmra.mrb[0].mxu0 %v3648
        %v3687 = vpop.f32.mrb[0].mxu0
        %v3688 = vadd.f32 0.0, %v3687
        %v3689 = vpop.f32.mrb[0].mxu0
        %v3690 = vpop.f32.mrb[0].mxu0
        %v3691 = vpop.f32.mrb[0].mxu0
        %3692 = vdwg.mxu0
        %v3693 = vsel %vm1831, %v3550, -1e+09
        %v3694 = vsel %vm1831, %v3596, -1e+09
        %v3695 = vsel %vm1831, %v3642, -1e+09
        %v3696 = vsel %vm1831, %v3688, -1e+09
        %v3697 = vsel %vm1644, %v3693, -inf
        %3698 = vmax.xlane.f32.xlu0 %v3697
        %v3699 = vpop.xlane.xlu0 %3698
        %v3700 = vsel %vm1644, %v3694, -inf
        %3701 = vmax.xlane.f32.xlu0 %v3700
        %v3702 = vpop.xlane.xlu0 %3701
        %v3703 = vsel %vm1644, %v3695, -inf
        %3704 = vmax.xlane.f32.xlu0 %v3703
        %v3705 = vpop.xlane.xlu0 %3704
        %v3706 = vsel %vm1644, %v3696, -inf
        %3707 = vmax.xlane.f32.xlu0 %v3706
        %v3708 = vpop.xlane.xlu0 %3707
        %v3709 = vsub.f32 %v3693, %v3699
        %v3710 = vsub.f32 %v3694, %v3702
        %v3711 = vsub.f32 %v3695, %v3705
        %v3712 = vsub.f32 %v3696, %v3708
        %v3713 = vmul.f32 %v3709, 1.442695
        %v3714 = vpow.pop %v3713
        %v3715 = vmul.f32 %v3710, 1.442695
        %v3716 = vpow.pop %v3715
        %v3717 = vmul.f32 %v3711, 1.442695
        %v3718 = vpow.pop %v3717
        %v3719 = vmul.f32 %v3712, 1.442695
        %v3720 = vpow.pop %v3719
        %v3721 = vsel %vm1644, %v3714, 0.0
        %3722 = vadd.xlane.f32.xlu0 %v3721
        %v3723 = vpop.xlane.xlu0 %3722
        %v3724 = vsel %vm1644, %v3716, 0.0
        %3725 = vadd.xlane.f32.xlu0 %v3724
        %v3726 = vpop.xlane.xlu0 %3725
        %v3727 = vsel %vm1644, %v3718, 0.0
        %3728 = vadd.xlane.f32.xlu0 %v3727
        %v3729 = vpop.xlane.xlu0 %3728
        %v3730 = vsel %vm1644, %v3720, 0.0
        %3731 = vadd.xlane.f32.xlu0 %v3730
        %v3732 = vpop.xlane.xlu0 %3731
        %v3733 = vrcp.pop %v3723
        %v3734 = vmul.f32 %v3714, %v3733
        %v3735 = vrcp.pop %v3726
        %v3736 = vmul.f32 %v3716, %v3735
        %v3737 = vrcp.pop %v3729
        %v3738 = vmul.f32 %v3718, %v3737
        %v3739 = vrcp.pop %v3732
        %v3740 = vmul.f32 %v3720, %v3739
        %v3741 = vpack.c.bf16 %v3734, %v3734
        %v3742 = vpack.c.bf16 %v3736, %v3736
        %v3743 = vpack.c.bf16 %v3738, %v3738
        %v3744 = vpack.c.bf16 %v3740, %v3740
        %3745 = vxpose.xlu0.c.b16.start [1/8] %v3021, 128
        %3746 = vxpose.xlu0.c.b16.cont [2/8] 0, 128
        %3747 = vxpose.xlu0.c.b16.cont [3/8] 0, 128
        %3748 = vxpose.xlu0.c.b16.cont [4/8] 0, 128
        %3749 = vxpose.xlu0.c.b16.cont [5/8] 0, 128
        %3750 = vxpose.xlu0.c.b16.cont [6/8] 0, 128
        %3751 = vxpose.xlu0.c.b16.cont [7/8] 0, 128
        %3752 = vxpose.xlu0.c.b16.end [8/8] 0, 128
        %v3753 = vpop.trf.xlu0
        %v3754 = vpop.trf.xlu0
        %v3755 = vpop.trf.xlu0
        %v3756 = vpop.trf.xlu0
        %v3757 = vpop.trf.xlu0
        %v3758 = vpop.trf.xlu0
        %v3759 = vpop.trf.xlu0
        %v3760 = vpop.trf.xlu0
        %3761 = vxpose.xlu0.c.b16.start [1/8] %v3022, 128
        %3762 = vxpose.xlu0.c.b16.cont [2/8] 0, 128
        %3763 = vxpose.xlu0.c.b16.cont [3/8] 0, 128
        %3764 = vxpose.xlu0.c.b16.cont [4/8] 0, 128
        %3765 = vxpose.xlu0.c.b16.cont [5/8] 0, 128
        %3766 = vxpose.xlu0.c.b16.cont [6/8] 0, 128
        %3767 = vxpose.xlu0.c.b16.cont [7/8] 0, 128
        %3768 = vxpose.xlu0.c.b16.end [8/8] 0, 128
        %v3769 = vpop.trf.xlu0
        %v3770 = vpop.trf.xlu0
        %v3771 = vpop.trf.xlu0
        %v3772 = vpop.trf.xlu0
        %v3773 = vpop.trf.xlu0
        %v3774 = vpop.trf.xlu0
        %v3775 = vpop.trf.xlu0
        %v3776 = vpop.trf.xlu0
        %3777 = vxpose.xlu0.c.b16.start [1/8] %v3023, 128
        %3778 = vxpose.xlu0.c.b16.cont [2/8] 0, 128
        %3779 = vxpose.xlu0.c.b16.cont [3/8] 0, 128
        %3780 = vxpose.xlu0.c.b16.cont [4/8] 0, 128
        %3781 = vxpose.xlu0.c.b16.cont [5/8] 0, 128
        %3782 = vxpose.xlu0.c.b16.cont [6/8] 0, 128
        %3783 = vxpose.xlu0.c.b16.cont [7/8] 0, 128
        %3784 = vxpose.xlu0.c.b16.end [8/8] 0, 128
        %v3785 = vpop.trf.xlu0
        %v3786 = vpop.trf.xlu0
        %v3787 = vpop.trf.xlu0
        %v3788 = vpop.trf.xlu0
        %v3789 = vpop.trf.xlu0
        %v3790 = vpop.trf.xlu0
        %v3791 = vpop.trf.xlu0
        %v3792 = vpop.trf.xlu0
        %3793 = vxpose.xlu0.c.b16.start [1/8] %v3024, 128
        %3794 = vxpose.xlu0.c.b16.cont [2/8] 0, 128
        %3795 = vxpose.xlu0.c.b16.cont [3/8] 0, 128
        %3796 = vxpose.xlu0.c.b16.cont [4/8] 0, 128
        %3797 = vxpose.xlu0.c.b16.cont [5/8] 0, 128
        %3798 = vxpose.xlu0.c.b16.cont [6/8] 0, 128
        %3799 = vxpose.xlu0.c.b16.cont [7/8] 0, 128
        %3800 = vxpose.xlu0.c.b16.end [8/8] 0, 128
        %v3801 = vpop.trf.xlu0
        %v3802 = vpop.trf.xlu0
        %v3803 = vpop.trf.xlu0
        %v3804 = vpop.trf.xlu0
        %v3805 = vpop.trf.xlu0
        %v3806 = vpop.trf.xlu0
        %v3807 = vpop.trf.xlu0
        %v3808 = vpop.trf.xlu0
        %3809 = vxpose.xlu0.c.b16.start [1/8] %v3025, 128
        %3810 = vxpose.xlu0.c.b16.cont [2/8] 0, 128
        %3811 = vxpose.xlu0.c.b16.cont [3/8] 0, 128
        %3812 = vxpose.xlu0.c.b16.cont [4/8] 0, 128
        %3813 = vxpose.xlu0.c.b16.cont [5/8] 0, 128
        %3814 = vxpose.xlu0.c.b16.cont [6/8] 0, 128
        %3815 = vxpose.xlu0.c.b16.cont [7/8] 0, 128
        %3816 = vxpose.xlu0.c.b16.end [8/8] 0, 128
        %v3817 = vpop.trf.xlu0
        %v3818 = vpop.trf.xlu0
        %v3819 = vpop.trf.xlu0
        %v3820 = vpop.trf.xlu0
        %v3821 = vpop.trf.xlu0
        %v3822 = vpop.trf.xlu0
        %v3823 = vpop.trf.xlu0
        %v3824 = vpop.trf.xlu0
        %3825 = vxpose.xlu0.c.b16.start [1/8] %v3026, 128
        %3826 = vxpose.xlu0.c.b16.cont [2/8] 0, 128
        %3827 = vxpose.xlu0.c.b16.cont [3/8] 0, 128
        %3828 = vxpose.xlu0.c.b16.cont [4/8] 0, 128
        %3829 = vxpose.xlu0.c.b16.cont [5/8] 0, 128
        %3830 = vxpose.xlu0.c.b16.cont [6/8] 0, 128
        %3831 = vxpose.xlu0.c.b16.cont [7/8] 0, 128
        %3832 = vxpose.xlu0.c.b16.end [8/8] 0, 128
        %v3833 = vpop.trf.xlu0
        %v3834 = vpop.trf.xlu0
        %v3835 = vpop.trf.xlu0
        %v3836 = vpop.trf.xlu0
        %v3837 = vpop.trf.xlu0
        %v3838 = vpop.trf.xlu0
        %v3839 = vpop.trf.xlu0
        %v3840 = vpop.trf.xlu0
        %3841 = vxpose.xlu0.c.b16.start [1/8] %v3027, 128
        %3842 = vxpose.xlu0.c.b16.cont [2/8] 0, 128
        %3843 = vxpose.xlu0.c.b16.cont [3/8] 0, 128
        %3844 = vxpose.xlu0.c.b16.cont [4/8] 0, 128
        %3845 = vxpose.xlu0.c.b16.cont [5/8] 0, 128
        %3846 = vxpose.xlu0.c.b16.cont [6/8] 0, 128
        %3847 = vxpose.xlu0.c.b16.cont [7/8] 0, 128
        %3848 = vxpose.xlu0.c.b16.end [8/8] 0, 128
        %v3849 = vpop.trf.xlu0
        %v3850 = vpop.trf.xlu0
        %v3851 = vpop.trf.xlu0
        %v3852 = vpop.trf.xlu0
        %v3853 = vpop.trf.xlu0
        %v3854 = vpop.trf.xlu0
        %v3855 = vpop.trf.xlu0
        %v3856 = vpop.trf.xlu0
        %3857 = vxpose.xlu0.c.b16.start [1/8] %v3028, 128
        %3858 = vxpose.xlu0.c.b16.cont [2/8] 0, 128
        %3859 = vxpose.xlu0.c.b16.cont [3/8] 0, 128
        %3860 = vxpose.xlu0.c.b16.cont [4/8] 0, 128
        %3861 = vxpose.xlu0.c.b16.cont [5/8] 0, 128
        %3862 = vxpose.xlu0.c.b16.cont [6/8] 0, 128
        %3863 = vxpose.xlu0.c.b16.cont [7/8] 0, 128
        %3864 = vxpose.xlu0.c.b16.end [8/8] 0, 128
        %v3865 = vpop.trf.xlu0
        %v3866 = vpop.trf.xlu0
        %v3867 = vpop.trf.xlu0
        %v3868 = vpop.trf.xlu0
        %v3869 = vpop.trf.xlu0
        %v3870 = vpop.trf.xlu0
        %v3871 = vpop.trf.xlu0
        %v3872 = vpop.trf.xlu0
        %v3873 = vcombine.low %v3753, %v3817
        %v3875 = vunpack.c.l.s4 1983009808
        %v3876 = vunpack.c.0.s8 %v3875
        %v3877 = vlaneseq
        %v3878 = vshrl.u32 %v3877, 7
        %v3879 = vsub.s32 %v3876, %v3878
        %v3880 = vrot.slane %v3873, %v3879
        %v3881 = vcombine.low %v3785, %v3849
        %v3883 = vunpack.c.l.s4 1983009808
        %v3884 = vunpack.c.0.s8 %v3883
        %v3885 = vlaneseq
        %v3886 = vshrl.u32 %v3885, 7
        %v3887 = vsub.s32 %v3884, %v3886
        %v3888 = vrot.slane %v3881, %v3887
        %v3889 = vcombine.low %v3880, %v3888
        %v3890 = vcombine.high %v3880, %v3888
        %v3892 = vunpack.c.l.s4 1934713408
        %v3893 = vunpack.c.0.s8 %v3892
        %v3894 = vlaneseq
        %v3895 = vshrl.u32 %v3894, 7
        %v3896 = vsub.s32 %v3893, %v3895
        %v3897 = vrot.slane %v3889, %v3896
        %v3899 = vunpack.c.l.s4 1934713408
        %v3900 = vunpack.c.0.s8 %v3899
        %v3901 = vlaneseq
        %v3902 = vshrl.u32 %v3901, 7
        %v3903 = vsub.s32 %v3900, %v3902
        %v3904 = vrot.slane %v3890, %v3903
        %v3905 = vcombine.high %v3897, 0
        %v3906 = vcombine.high %v3904, 0
        %v3907 = vcombine.low %v3769, %v3833
        %v3909 = vunpack.c.l.s4 1983009808
        %v3910 = vunpack.c.0.s8 %v3909
        %v3911 = vlaneseq
        %v3912 = vshrl.u32 %v3911, 7
        %v3913 = vsub.s32 %v3910, %v3912
        %v3914 = vrot.slane %v3907, %v3913
        %v3915 = vcombine.low %v3801, %v3865
        %v3917 = vunpack.c.l.s4 1983009808
        %v3918 = vunpack.c.0.s8 %v3917
        %v3919 = vlaneseq
        %v3920 = vshrl.u32 %v3919, 7
        %v3921 = vsub.s32 %v3918, %v3920
        %v3922 = vrot.slane %v3915, %v3921
        %v3923 = vcombine.low %v3914, %v3922
        %v3924 = vcombine.high %v3914, %v3922
        %v3926 = vunpack.c.l.s4 1934713408
        %v3927 = vunpack.c.0.s8 %v3926
        %v3928 = vlaneseq
        %v3929 = vshrl.u32 %v3928, 7
        %v3930 = vsub.s32 %v3927, %v3929
        %v3931 = vrot.slane %v3923, %v3930
        %v3933 = vunpack.c.l.s4 1934713408
        %v3934 = vunpack.c.0.s8 %v3933
        %v3935 = vlaneseq
        %v3936 = vshrl.u32 %v3935, 7
        %v3937 = vsub.s32 %v3934, %v3936
        %v3938 = vrot.slane %v3924, %v3937
        %v3939 = vcombine.high %v3931, 0
        %v3940 = vcombine.high %v3938, 0
        %v3943 = vpack.i.b16 %v3931, %v3897
        %v3945 = vshrl.u32 %v3897, 16
        %v3946 = vshrl.u32 %v3931, 16
        %v3947 = vpack.i.b16 %v3946, %v3945
        %v3951 = vpack.i.b16 %v3939, %v3905
        %v3953 = vshrl.u32 %v3905, 16
        %v3954 = vshrl.u32 %v3939, 16
        %v3955 = vpack.i.b16 %v3954, %v3953
        %v3959 = vpack.i.b16 %v3938, %v3904
        %v3961 = vshrl.u32 %v3904, 16
        %v3962 = vshrl.u32 %v3938, 16
        %v3963 = vpack.i.b16 %v3962, %v3961
        %v3967 = vpack.i.b16 %v3940, %v3906
        %v3969 = vshrl.u32 %v3906, 16
        %v3970 = vshrl.u32 %v3940, 16
        %v3971 = vpack.i.b16 %v3970, %v3969
        %3973 = vxpose.xlu0.c.b16.start [1/8] %v3943, 128
        %3974 = vxpose.xlu0.c.b16.cont [2/8] 0, 128
        %3975 = vxpose.xlu0.c.b16.cont [3/8] 0, 128
        %3976 = vxpose.xlu0.c.b16.cont [4/8] 0, 128
        %3977 = vxpose.xlu0.c.b16.cont [5/8] 0, 128
        %3978 = vxpose.xlu0.c.b16.cont [6/8] 0, 128
        %3979 = vxpose.xlu0.c.b16.cont [7/8] 0, 128
        %3980 = vxpose.xlu0.c.b16.end [8/8] 0, 128
        %v3981 = vpop.trf.xlu0
        %v3982 = vpop.trf.xlu0
        %v3983 = vpop.trf.xlu0
        %v3984 = vpop.trf.xlu0
        %v3985 = vpop.trf.xlu0
        %v3986 = vpop.trf.xlu0
        %v3987 = vpop.trf.xlu0
        %v3988 = vpop.trf.xlu0
        %3989 = vxpose.xlu0.c.b16.start [1/8] %v3947, 128
        %3990 = vxpose.xlu0.c.b16.cont [2/8] 0, 128
        %3991 = vxpose.xlu0.c.b16.cont [3/8] 0, 128
        %3992 = vxpose.xlu0.c.b16.cont [4/8] 0, 128
        %3993 = vxpose.xlu0.c.b16.cont [5/8] 0, 128
        %3994 = vxpose.xlu0.c.b16.cont [6/8] 0, 128
        %3995 = vxpose.xlu0.c.b16.cont [7/8] 0, 128
        %3996 = vxpose.xlu0.c.b16.end [8/8] 0, 128
        %v3997 = vpop.trf.xlu0
        %v3998 = vpop.trf.xlu0
        %v3999 = vpop.trf.xlu0
        %v4000 = vpop.trf.xlu0
        %v4001 = vpop.trf.xlu0
        %v4002 = vpop.trf.xlu0
        %v4003 = vpop.trf.xlu0
        %v4004 = vpop.trf.xlu0
        %4005 = vxpose.xlu0.c.b16.start [1/8] %v3951, 128
        %4006 = vxpose.xlu0.c.b16.cont [2/8] 0, 128
        %4007 = vxpose.xlu0.c.b16.cont [3/8] 0, 128
        %4008 = vxpose.xlu0.c.b16.cont [4/8] 0, 128
        %4009 = vxpose.xlu0.c.b16.cont [5/8] 0, 128
        %4010 = vxpose.xlu0.c.b16.cont [6/8] 0, 128
        %4011 = vxpose.xlu0.c.b16.cont [7/8] 0, 128
        %4012 = vxpose.xlu0.c.b16.end [8/8] 0, 128
        %v4013 = vpop.trf.xlu0
        %v4014 = vpop.trf.xlu0
        %v4015 = vpop.trf.xlu0
        %v4016 = vpop.trf.xlu0
        %v4017 = vpop.trf.xlu0
        %v4018 = vpop.trf.xlu0
        %v4019 = vpop.trf.xlu0
        %v4020 = vpop.trf.xlu0
        %4021 = vxpose.xlu0.c.b16.start [1/8] %v3955, 128
        %4022 = vxpose.xlu0.c.b16.cont [2/8] 0, 128
        %4023 = vxpose.xlu0.c.b16.cont [3/8] 0, 128
        %4024 = vxpose.xlu0.c.b16.cont [4/8] 0, 128
        %4025 = vxpose.xlu0.c.b16.cont [5/8] 0, 128
        %4026 = vxpose.xlu0.c.b16.cont [6/8] 0, 128
        %4027 = vxpose.xlu0.c.b16.cont [7/8] 0, 128
        %4028 = vxpose.xlu0.c.b16.end [8/8] 0, 128
        %v4029 = vpop.trf.xlu0
        %v4030 = vpop.trf.xlu0
        %v4031 = vpop.trf.xlu0
        %v4032 = vpop.trf.xlu0
        %v4033 = vpop.trf.xlu0
        %v4034 = vpop.trf.xlu0
        %v4035 = vpop.trf.xlu0
        %v4036 = vpop.trf.xlu0
        %4037 = vxpose.xlu0.c.b16.start [1/8] %v3959, 128
        %4038 = vxpose.xlu0.c.b16.cont [2/8] 0, 128
        %4039 = vxpose.xlu0.c.b16.cont [3/8] 0, 128
        %4040 = vxpose.xlu0.c.b16.cont [4/8] 0, 128
        %4041 = vxpose.xlu0.c.b16.cont [5/8] 0, 128
        %4042 = vxpose.xlu0.c.b16.cont [6/8] 0, 128
        %4043 = vxpose.xlu0.c.b16.cont [7/8] 0, 128
        %4044 = vxpose.xlu0.c.b16.end [8/8] 0, 128
        %v4045 = vpop.trf.xlu0
        %v4046 = vpop.trf.xlu0
        %v4047 = vpop.trf.xlu0
        %v4048 = vpop.trf.xlu0
        %v4049 = vpop.trf.xlu0
        %v4050 = vpop.trf.xlu0
        %v4051 = vpop.trf.xlu0
        %v4052 = vpop.trf.xlu0
        %4053 = vxpose.xlu0.c.b16.start [1/8] %v3963, 128
        %4054 = vxpose.xlu0.c.b16.cont [2/8] 0, 128
        %4055 = vxpose.xlu0.c.b16.cont [3/8] 0, 128
        %4056 = vxpose.xlu0.c.b16.cont [4/8] 0, 128
        %4057 = vxpose.xlu0.c.b16.cont [5/8] 0, 128
        %4058 = vxpose.xlu0.c.b16.cont [6/8] 0, 128
        %4059 = vxpose.xlu0.c.b16.cont [7/8] 0, 128
        %4060 = vxpose.xlu0.c.b16.end [8/8] 0, 128
        %v4061 = vpop.trf.xlu0
        %v4062 = vpop.trf.xlu0
        %v4063 = vpop.trf.xlu0
        %v4064 = vpop.trf.xlu0
        %v4065 = vpop.trf.xlu0
        %v4066 = vpop.trf.xlu0
        %v4067 = vpop.trf.xlu0
        %v4068 = vpop.trf.xlu0
        %4069 = vxpose.xlu0.c.b16.start [1/8] %v3967, 128
        %4070 = vxpose.xlu0.c.b16.cont [2/8] 0, 128
        %4071 = vxpose.xlu0.c.b16.cont [3/8] 0, 128
        %4072 = vxpose.xlu0.c.b16.cont [4/8] 0, 128
        %4073 = vxpose.xlu0.c.b16.cont [5/8] 0, 128
        %4074 = vxpose.xlu0.c.b16.cont [6/8] 0, 128
        %4075 = vxpose.xlu0.c.b16.cont [7/8] 0, 128
        %4076 = vxpose.xlu0.c.b16.end [8/8] 0, 128
        %v4077 = vpop.trf.xlu0
        %v4078 = vpop.trf.xlu0
        %v4079 = vpop.trf.xlu0
        %v4080 = vpop.trf.xlu0
        %v4081 = vpop.trf.xlu0
        %v4082 = vpop.trf.xlu0
        %v4083 = vpop.trf.xlu0
        %v4084 = vpop.trf.xlu0
        %4085 = vxpose.xlu0.c.b16.start [1/8] %v3971, 128
        %4086 = vxpose.xlu0.c.b16.cont [2/8] 0, 128
        %4087 = vxpose.xlu0.c.b16.cont [3/8] 0, 128
        %4088 = vxpose.xlu0.c.b16.cont [4/8] 0, 128
        %4089 = vxpose.xlu0.c.b16.cont [5/8] 0, 128
        %4090 = vxpose.xlu0.c.b16.cont [6/8] 0, 128
        %4091 = vxpose.xlu0.c.b16.cont [7/8] 0, 128
        %4092 = vxpose.xlu0.c.b16.end [8/8] 0, 128
        %v4093 = vpop.trf.xlu0
        %v4094 = vpop.trf.xlu0
        %v4095 = vpop.trf.xlu0
        %v4096 = vpop.trf.xlu0
        %v4097 = vpop.trf.xlu0
        %v4098 = vpop.trf.xlu0
        %v4099 = vpop.trf.xlu0
        %v4100 = vpop.trf.xlu0
        %v4101 = vcombine.low %v3981, %v4045
        %v4103 = vunpack.c.l.s4 1983009808
        %v4104 = vunpack.c.0.s8 %v4103
        %v4105 = vlaneseq
        %v4106 = vshrl.u32 %v4105, 7
        %v4107 = vsub.s32 %v4104, %v4106
        %v4108 = vrot.slane %v4101, %v4107
        %v4109 = vcombine.low %v4013, %v4077
        %v4111 = vunpack.c.l.s4 1983009808
        %v4112 = vunpack.c.0.s8 %v4111
        %v4113 = vlaneseq
        %v4114 = vshrl.u32 %v4113, 7
        %v4115 = vsub.s32 %v4112, %v4114
        %v4116 = vrot.slane %v4109, %v4115
        %v4117 = vcombine.low %v4108, %v4116
        %v4119 = vunpack.c.l.s4 1934713408
        %v4120 = vunpack.c.0.s8 %v4119
        %v4121 = vlaneseq
        %v4122 = vshrl.u32 %v4121, 7
        %v4123 = vsub.s32 %v4120, %v4122
        %v4124 = vrot.slane %v4117, %v4123
        %v4125 = vcombine.high %v4124, 0
        %v4126 = vcombine.low %v3997, %v4061
        %v4128 = vunpack.c.l.s4 1983009808
        %v4129 = vunpack.c.0.s8 %v4128
        %v4130 = vlaneseq
        %v4131 = vshrl.u32 %v4130, 7
        %v4132 = vsub.s32 %v4129, %v4131
        %v4133 = vrot.slane %v4126, %v4132
        %v4134 = vcombine.low %v4029, %v4093
        %v4136 = vunpack.c.l.s4 1983009808
        %v4137 = vunpack.c.0.s8 %v4136
        %v4138 = vlaneseq
        %v4139 = vshrl.u32 %v4138, 7
        %v4140 = vsub.s32 %v4137, %v4139
        %v4141 = vrot.slane %v4134, %v4140
        %v4142 = vcombine.low %v4133, %v4141
        %v4144 = vunpack.c.l.s4 1934713408
        %v4145 = vunpack.c.0.s8 %v4144
        %v4146 = vlaneseq
        %v4147 = vshrl.u32 %v4146, 7
        %v4148 = vsub.s32 %v4145, %v4147
        %v4149 = vrot.slane %v4142, %v4148
        %v4150 = vcombine.high %v4149, 0
        %v4153 = vpack.i.b16 %v4149, %v4124
        %v4154 = vshrl.u32 %v4124, 16
        %v4155 = vshrl.u32 %v4149, 16
        %v4156 = vpack.i.b16 %v4155, %v4154
        %v4159 = vpack.i.b16 %v4150, %v4125
        %v4160 = vshrl.u32 %v4125, 16
        %v4161 = vshrl.u32 %v4150, 16
        %v4162 = vpack.i.b16 %v4161, %v4160
        %v4164 = vsel %vm1644, %v4153, 0
        %v4167 = vsel %vm1644, %v3741, 0
        %4169 = vmatprep.subr.bf16.mxu0 0
        %4170 = vmatpush1.bf16.xpose.msra.mxu0 %v4167
        %4171 = vmatprep.subr.bf16.mxu0 0
        %4172 = vmatpush1.bf16.xpose.msra.mxu0 0
        %4173 = vmatprep.subr.bf16.mxu0 0
        %4174 = vmatpush1.bf16.xpose.msra.mxu0 0
        %4175 = vmatprep.subr.bf16.mxu0 0
        %4176 = vmatpush1.bf16.xpose.msra.mxu0 0
        %4177 = vmatprep.subr.bf16.mxu0 0
        %4178 = vmatpush1.bf16.xpose.msra.mxu0 0
        %4179 = vmatprep.subr.bf16.mxu0 0
        %4180 = vmatpush1.bf16.xpose.msra.mxu0 0
        %4181 = vmatprep.subr.bf16.mxu0 0
        %4182 = vmatpush1.bf16.xpose.msra.mxu0 0
        %4183 = vmatprep.subr.bf16.mxu0 0
        %4184 = vmatpush1.bf16.xpose.msra.mxu0 0
        %4185 = vmatprep.subr.bf16.mxu0 0
        %4186 = vmatpush1.bf16.xpose.msra.mxu0 0
        %4187 = vmatprep.subr.bf16.mxu0 0
        %4188 = vmatpush1.bf16.xpose.msra.mxu0 0
        %4189 = vmatprep.subr.bf16.mxu0 0
        %4190 = vmatpush1.bf16.xpose.msra.mxu0 0
        %4191 = vmatprep.subr.bf16.mxu0 0
        %4192 = vmatpush1.bf16.xpose.msra.mxu0 0
        %4193 = vmatprep.subr.bf16.mxu0 0
        %4194 = vmatpush1.bf16.xpose.msra.mxu0 0
        %4195 = vmatprep.subr.bf16.mxu0 0
        %4196 = vmatpush1.bf16.xpose.msra.mxu0 0
        %4197 = vmatprep.subr.bf16.mxu0 0
        %4198 = vmatpush1.bf16.xpose.msra.mxu0 0
        %4199 = vmatprep.subr.bf16.mxu0 0
        %4200 = vmatpush1.bf16.xpose.msra.mxu0 0
        %4201 = vmatprep.mubr.bf16.mxu0 0
        %4202 = vmatmul.mubr.bf16.gmra.mrb[0].mxu0 %v4164
        %v4203 = vpop.f32.mrb[0].mxu0
        %v4204 = vadd.f32 0.0, %v4203
        %v4205 = vpop.f32.mrb[0].mxu0
        %v4206 = vpop.f32.mrb[0].mxu0
        %v4207 = vpop.f32.mrb[0].mxu0
        %4208 = vdwg.mxu0
        %v4210 = vsel %vm1644, %v4156, 0
        %v4213 = vsel %vm1644, %v3742, 0
        %4215 = vmatprep.subr.bf16.mxu0 0
        %4216 = vmatpush1.bf16.xpose.msra.mxu0 %v4213
        %4217 = vmatprep.subr.bf16.mxu0 0
        %4218 = vmatpush1.bf16.xpose.msra.mxu0 0
        %4219 = vmatprep.subr.bf16.mxu0 0
        %4220 = vmatpush1.bf16.xpose.msra.mxu0 0
        %4221 = vmatprep.subr.bf16.mxu0 0
        %4222 = vmatpush1.bf16.xpose.msra.mxu0 0
        %4223 = vmatprep.subr.bf16.mxu0 0
        %4224 = vmatpush1.bf16.xpose.msra.mxu0 0
        %4225 = vmatprep.subr.bf16.mxu0 0
        %4226 = vmatpush1.bf16.xpose.msra.mxu0 0
        %4227 = vmatprep.subr.bf16.mxu0 0
        %4228 = vmatpush1.bf16.xpose.msra.mxu0 0
        %4229 = vmatprep.subr.bf16.mxu0 0
        %4230 = vmatpush1.bf16.xpose.msra.mxu0 0
        %4231 = vmatprep.subr.bf16.mxu0 0
        %4232 = vmatpush1.bf16.xpose.msra.mxu0 0
        %4233 = vmatprep.subr.bf16.mxu0 0
        %4234 = vmatpush1.bf16.xpose.msra.mxu0 0
        %4235 = vmatprep.subr.bf16.mxu0 0
        %4236 = vmatpush1.bf16.xpose.msra.mxu0 0
        %4237 = vmatprep.subr.bf16.mxu0 0
        %4238 = vmatpush1.bf16.xpose.msra.mxu0 0
        %4239 = vmatprep.subr.bf16.mxu0 0
        %4240 = vmatpush1.bf16.xpose.msra.mxu0 0
        %4241 = vmatprep.subr.bf16.mxu0 0
        %4242 = vmatpush1.bf16.xpose.msra.mxu0 0
        %4243 = vmatprep.subr.bf16.mxu0 0
        %4244 = vmatpush1.bf16.xpose.msra.mxu0 0
        %4245 = vmatprep.subr.bf16.mxu0 0
        %4246 = vmatpush1.bf16.xpose.msra.mxu0 0
        %4247 = vmatprep.mubr.bf16.mxu0 0
        %4248 = vmatmul.mubr.bf16.gmra.mrb[0].mxu0 %v4210
        %v4249 = vpop.f32.mrb[0].mxu0
        %v4250 = vadd.f32 0.0, %v4249
        %v4251 = vpop.f32.mrb[0].mxu0
        %v4252 = vpop.f32.mrb[0].mxu0
        %v4253 = vpop.f32.mrb[0].mxu0
        %4254 = vdwg.mxu0
        %v4256 = vsel %vm1644, %v4159, 0
        %v4259 = vsel %vm1644, %v3743, 0
        %4261 = vmatprep.subr.bf16.mxu0 0
        %4262 = vmatpush1.bf16.xpose.msra.mxu0 %v4259
        %4263 = vmatprep.subr.bf16.mxu0 0
        %4264 = vmatpush1.bf16.xpose.msra.mxu0 0
        %4265 = vmatprep.subr.bf16.mxu0 0
        %4266 = vmatpush1.bf16.xpose.msra.mxu0 0
        %4267 = vmatprep.subr.bf16.mxu0 0
        %4268 = vmatpush1.bf16.xpose.msra.mxu0 0
        %4269 = vmatprep.subr.bf16.mxu0 0
        %4270 = vmatpush1.bf16.xpose.msra.mxu0 0
        %4271 = vmatprep.subr.bf16.mxu0 0
        %4272 = vmatpush1.bf16.xpose.msra.mxu0 0
        %4273 = vmatprep.subr.bf16.mxu0 0
        %4274 = vmatpush1.bf16.xpose.msra.mxu0 0
        %4275 = vmatprep.subr.bf16.mxu0 0
        %4276 = vmatpush1.bf16.xpose.msra.mxu0 0
        %4277 = vmatprep.subr.bf16.mxu0 0
        %4278 = vmatpush1.bf16.xpose.msra.mxu0 0
        %4279 = vmatprep.subr.bf16.mxu0 0
        %4280 = vmatpush1.bf16.xpose.msra.mxu0 0
        %4281 = vmatprep.subr.bf16.mxu0 0
        %4282 = vmatpush1.bf16.xpose.msra.mxu0 0
        %4283 = vmatprep.subr.bf16.mxu0 0
        %4284 = vmatpush1.bf16.xpose.msra.mxu0 0
        %4285 = vmatprep.subr.bf16.mxu0 0
        %4286 = vmatpush1.bf16.xpose.msra.mxu0 0
        %4287 = vmatprep.subr.bf16.mxu0 0
        %4288 = vmatpush1.bf16.xpose.msra.mxu0 0
        %4289 = vmatprep.subr.bf16.mxu0 0
        %4290 = vmatpush1.bf16.xpose.msra.mxu0 0
        %4291 = vmatprep.subr.bf16.mxu0 0
        %4292 = vmatpush1.bf16.xpose.msra.mxu0 0
        %4293 = vmatprep.mubr.bf16.mxu0 0
        %4294 = vmatmul.mubr.bf16.gmra.mrb[0].mxu0 %v4256
        %v4295 = vpop.f32.mrb[0].mxu0
        %v4296 = vadd.f32 0.0, %v4295
        %v4297 = vpop.f32.mrb[0].mxu0
        %v4298 = vpop.f32.mrb[0].mxu0
        %v4299 = vpop.f32.mrb[0].mxu0
        %4300 = vdwg.mxu0
        %v4302 = vsel %vm1644, %v4162, 0
        %v4305 = vsel %vm1644, %v3744, 0
        %4307 = vmatprep.subr.bf16.mxu0 0
        %4308 = vmatpush1.bf16.xpose.msra.mxu0 %v4305
        %4309 = vmatprep.subr.bf16.mxu0 0
        %4310 = vmatpush1.bf16.xpose.msra.mxu0 0
        %4311 = vmatprep.subr.bf16.mxu0 0
        %4312 = vmatpush1.bf16.xpose.msra.mxu0 0
        %4313 = vmatprep.subr.bf16.mxu0 0
        %4314 = vmatpush1.bf16.xpose.msra.mxu0 0
        %4315 = vmatprep.subr.bf16.mxu0 0
        %4316 = vmatpush1.bf16.xpose.msra.mxu0 0
        %4317 = vmatprep.subr.bf16.mxu0 0
        %4318 = vmatpush1.bf16.xpose.msra.mxu0 0
        %4319 = vmatprep.subr.bf16.mxu0 0
        %4320 = vmatpush1.bf16.xpose.msra.mxu0 0
        %4321 = vmatprep.subr.bf16.mxu0 0
        %4322 = vmatpush1.bf16.xpose.msra.mxu0 0
        %4323 = vmatprep.subr.bf16.mxu0 0
        %4324 = vmatpush1.bf16.xpose.msra.mxu0 0
        %4325 = vmatprep.subr.bf16.mxu0 0
        %4326 = vmatpush1.bf16.xpose.msra.mxu0 0
        %4327 = vmatprep.subr.bf16.mxu0 0
        %4328 = vmatpush1.bf16.xpose.msra.mxu0 0
        %4329 = vmatprep.subr.bf16.mxu0 0
        %4330 = vmatpush1.bf16.xpose.msra.mxu0 0
        %4331 = vmatprep.subr.bf16.mxu0 0
        %4332 = vmatpush1.bf16.xpose.msra.mxu0 0
        %4333 = vmatprep.subr.bf16.mxu0 0
        %4334 = vmatpush1.bf16.xpose.msra.mxu0 0
        %4335 = vmatprep.subr.bf16.mxu0 0
        %4336 = vmatpush1.bf16.xpose.msra.mxu0 0
        %4337 = vmatprep.subr.bf16.mxu0 0
        %4338 = vmatpush1.bf16.xpose.msra.mxu0 0
        %4339 = vmatprep.mubr.bf16.mxu0 0
        %4340 = vmatmul.mubr.bf16.gmra.mrb[0].mxu0 %v4302
        %v4341 = vpop.f32.mrb[0].mxu0
        %v4342 = vadd.f32 0.0, %v4341
        %v4343 = vpop.f32.mrb[0].mxu0
        %v4344 = vpop.f32.mrb[0].mxu0
        %v4345 = vpop.f32.mrb[0].mxu0
        %4346 = vdwg.mxu0
        %4347 = vxpose.xlu0.b32.start [1/16] %v4204, 128
        %4348 = vxpose.xlu0.b32.cont [2/16] 0.0, 128
        %4349 = vxpose.xlu0.b32.cont [3/16] 0.0, 128
        %4350 = vxpose.xlu0.b32.cont [4/16] 0.0, 128
        %4351 = vxpose.xlu0.b32.cont [5/16] 0.0, 128
        %4352 = vxpose.xlu0.b32.cont [6/16] 0.0, 128
        %4353 = vxpose.xlu0.b32.cont [7/16] 0.0, 128
        %4354 = vxpose.xlu0.b32.cont [8/16] 0.0, 128
        %4355 = vxpose.xlu0.b32.cont [9/16] 0.0, 128
        %4356 = vxpose.xlu0.b32.cont [10/16] 0.0, 128
        %4357 = vxpose.xlu0.b32.cont [11/16] 0.0, 128
        %4358 = vxpose.xlu0.b32.cont [12/16] 0.0, 128
        %4359 = vxpose.xlu0.b32.cont [13/16] 0.0, 128
        %4360 = vxpose.xlu0.b32.cont [14/16] 0.0, 128
        %4361 = vxpose.xlu0.b32.cont [15/16] 0.0, 128
        %4362 = vxpose.xlu0.b32.end [16/16] 0.0, 128
        %v4363 = vpop.trf.xlu0
        %v4364 = vpop.trf.xlu0
        %v4365 = vpop.trf.xlu0
        %v4366 = vpop.trf.xlu0
        %v4367 = vpop.trf.xlu0
        %v4368 = vpop.trf.xlu0
        %v4369 = vpop.trf.xlu0
        %v4370 = vpop.trf.xlu0
        %v4371 = vpop.trf.xlu0
        %v4372 = vpop.trf.xlu0
        %v4373 = vpop.trf.xlu0
        %v4374 = vpop.trf.xlu0
        %v4375 = vpop.trf.xlu0
        %v4376 = vpop.trf.xlu0
        %v4377 = vpop.trf.xlu0
        %v4378 = vpop.trf.xlu0
        %4379 = vxpose.xlu0.b32.start [1/16] %v4250, 128
        %4380 = vxpose.xlu0.b32.cont [2/16] 0.0, 128
        %4381 = vxpose.xlu0.b32.cont [3/16] 0.0, 128
        %4382 = vxpose.xlu0.b32.cont [4/16] 0.0, 128
        %4383 = vxpose.xlu0.b32.cont [5/16] 0.0, 128
        %4384 = vxpose.xlu0.b32.cont [6/16] 0.0, 128
        %4385 = vxpose.xlu0.b32.cont [7/16] 0.0, 128
        %4386 = vxpose.xlu0.b32.cont [8/16] 0.0, 128
        %4387 = vxpose.xlu0.b32.cont [9/16] 0.0, 128
        %4388 = vxpose.xlu0.b32.cont [10/16] 0.0, 128
        %4389 = vxpose.xlu0.b32.cont [11/16] 0.0, 128
        %4390 = vxpose.xlu0.b32.cont [12/16] 0.0, 128
        %4391 = vxpose.xlu0.b32.cont [13/16] 0.0, 128
        %4392 = vxpose.xlu0.b32.cont [14/16] 0.0, 128
        %4393 = vxpose.xlu0.b32.cont [15/16] 0.0, 128
        %4394 = vxpose.xlu0.b32.end [16/16] 0.0, 128
        %v4395 = vpop.trf.xlu0
        %v4396 = vpop.trf.xlu0
        %v4397 = vpop.trf.xlu0
        %v4398 = vpop.trf.xlu0
        %v4399 = vpop.trf.xlu0
        %v4400 = vpop.trf.xlu0
        %v4401 = vpop.trf.xlu0
        %v4402 = vpop.trf.xlu0
        %v4403 = vpop.trf.xlu0
        %v4404 = vpop.trf.xlu0
        %v4405 = vpop.trf.xlu0
        %v4406 = vpop.trf.xlu0
        %v4407 = vpop.trf.xlu0
        %v4408 = vpop.trf.xlu0
        %v4409 = vpop.trf.xlu0
        %v4410 = vpop.trf.xlu0
        %4411 = vxpose.xlu0.b32.start [1/16] %v4296, 128
        %4412 = vxpose.xlu0.b32.cont [2/16] 0.0, 128
        %4413 = vxpose.xlu0.b32.cont [3/16] 0.0, 128
        %4414 = vxpose.xlu0.b32.cont [4/16] 0.0, 128
        %4415 = vxpose.xlu0.b32.cont [5/16] 0.0, 128
        %4416 = vxpose.xlu0.b32.cont [6/16] 0.0, 128
        %4417 = vxpose.xlu0.b32.cont [7/16] 0.0, 128
        %4418 = vxpose.xlu0.b32.cont [8/16] 0.0, 128
        %4419 = vxpose.xlu0.b32.cont [9/16] 0.0, 128
        %4420 = vxpose.xlu0.b32.cont [10/16] 0.0, 128
        %4421 = vxpose.xlu0.b32.cont [11/16] 0.0, 128
        %4422 = vxpose.xlu0.b32.cont [12/16] 0.0, 128
        %4423 = vxpose.xlu0.b32.cont [13/16] 0.0, 128
        %4424 = vxpose.xlu0.b32.cont [14/16] 0.0, 128
        %4425 = vxpose.xlu0.b32.cont [15/16] 0.0, 128
        %4426 = vxpose.xlu0.b32.end [16/16] 0.0, 128
        %v4427 = vpop.trf.xlu0
        %v4428 = vpop.trf.xlu0
        %v4429 = vpop.trf.xlu0
        %v4430 = vpop.trf.xlu0
        %v4431 = vpop.trf.xlu0
        %v4432 = vpop.trf.xlu0
        %v4433 = vpop.trf.xlu0
        %v4434 = vpop.trf.xlu0
        %v4435 = vpop.trf.xlu0
        %v4436 = vpop.trf.xlu0
        %v4437 = vpop.trf.xlu0
        %v4438 = vpop.trf.xlu0
        %v4439 = vpop.trf.xlu0
        %v4440 = vpop.trf.xlu0
        %v4441 = vpop.trf.xlu0
        %v4442 = vpop.trf.xlu0
        %4443 = vxpose.xlu0.b32.start [1/16] %v4342, 128
        %4444 = vxpose.xlu0.b32.cont [2/16] 0.0, 128
        %4445 = vxpose.xlu0.b32.cont [3/16] 0.0, 128
        %4446 = vxpose.xlu0.b32.cont [4/16] 0.0, 128
        %4447 = vxpose.xlu0.b32.cont [5/16] 0.0, 128
        %4448 = vxpose.xlu0.b32.cont [6/16] 0.0, 128
        %4449 = vxpose.xlu0.b32.cont [7/16] 0.0, 128
        %4450 = vxpose.xlu0.b32.cont [8/16] 0.0, 128
        %4451 = vxpose.xlu0.b32.cont [9/16] 0.0, 128
        %4452 = vxpose.xlu0.b32.cont [10/16] 0.0, 128
        %4453 = vxpose.xlu0.b32.cont [11/16] 0.0, 128
        %4454 = vxpose.xlu0.b32.cont [12/16] 0.0, 128
        %4455 = vxpose.xlu0.b32.cont [13/16] 0.0, 128
        %4456 = vxpose.xlu0.b32.cont [14/16] 0.0, 128
        %4457 = vxpose.xlu0.b32.cont [15/16] 0.0, 128
        %4458 = vxpose.xlu0.b32.end [16/16] 0.0, 128
        %v4459 = vpop.trf.xlu0
        %v4460 = vpop.trf.xlu0
        %v4461 = vpop.trf.xlu0
        %v4462 = vpop.trf.xlu0
        %v4463 = vpop.trf.xlu0
        %v4464 = vpop.trf.xlu0
        %v4465 = vpop.trf.xlu0
        %v4466 = vpop.trf.xlu0
        %v4467 = vpop.trf.xlu0
        %v4468 = vpop.trf.xlu0
        %v4469 = vpop.trf.xlu0
        %v4470 = vpop.trf.xlu0
        %v4471 = vpop.trf.xlu0
        %v4472 = vpop.trf.xlu0
        %v4473 = vpop.trf.xlu0
        %v4474 = vpop.trf.xlu0
        %v4475 = vcombine.low %v4363, %v4427
        %v4476 = vcombine.high %v4363, %v4427
        %v4478 = vunpack.c.l.s4 1983009808
        %v4479 = vunpack.c.0.s8 %v4478
        %v4480 = vlaneseq
        %v4481 = vshrl.u32 %v4480, 7
        %v4482 = vsub.s32 %v4479, %v4481
        %v4483 = vrot.slane %v4475, %v4482
        %v4485 = vunpack.c.l.s4 1983009808
        %v4486 = vunpack.c.0.s8 %v4485
        %v4487 = vlaneseq
        %v4488 = vshrl.u32 %v4487, 7
        %v4489 = vsub.s32 %v4486, %v4488
        %v4490 = vrot.slane %v4476, %v4489
        %v4491 = vcombine.low %v4395, %v4459
        %v4492 = vcombine.high %v4395, %v4459
        %v4494 = vunpack.c.l.s4 1983009808
        %v4495 = vunpack.c.0.s8 %v4494
        %v4496 = vlaneseq
        %v4497 = vshrl.u32 %v4496, 7
        %v4498 = vsub.s32 %v4495, %v4497
        %v4499 = vrot.slane %v4491, %v4498
        %v4501 = vunpack.c.l.s4 1983009808
        %v4502 = vunpack.c.0.s8 %v4501
        %v4503 = vlaneseq
        %v4504 = vshrl.u32 %v4503, 7
        %v4505 = vsub.s32 %v4502, %v4504
        %v4506 = vrot.slane %v4492, %v4505
        %v4507 = vcombine.low %v4483, %v4499
        %v4508 = vcombine.high %v4483, %v4499
        %v4510 = vunpack.c.l.s4 1934713408
        %v4511 = vunpack.c.0.s8 %v4510
        %v4512 = vlaneseq
        %v4513 = vshrl.u32 %v4512, 7
        %v4514 = vsub.s32 %v4511, %v4513
        %v4515 = vrot.slane %v4507, %v4514
        %v4517 = vunpack.c.l.s4 1934713408
        %v4518 = vunpack.c.0.s8 %v4517
        %v4519 = vlaneseq
        %v4520 = vshrl.u32 %v4519, 7
        %v4521 = vsub.s32 %v4518, %v4520
        %v4522 = vrot.slane %v4508, %v4521
        %v4523 = vcombine.low %v4490, %v4506
        %v4524 = vcombine.high %v4490, %v4506
        %v4526 = vunpack.c.l.s4 1934713408
        %v4527 = vunpack.c.0.s8 %v4526
        %v4528 = vlaneseq
        %v4529 = vshrl.u32 %v4528, 7
        %v4530 = vsub.s32 %v4527, %v4529
        %v4531 = vrot.slane %v4523, %v4530
        %v4533 = vunpack.c.l.s4 1934713408
        %v4534 = vunpack.c.0.s8 %v4533
        %v4535 = vlaneseq
        %v4536 = vshrl.u32 %v4535, 7
        %v4537 = vsub.s32 %v4534, %v4536
        %v4538 = vrot.slane %v4524, %v4537
        %v4539 = vcombine.high %v4515, 0.0
        %v4540 = vcombine.high %v4522, 0.0
        %v4541 = vcombine.high %v4531, 0.0
        %v4542 = vcombine.high %v4538, 0.0
        %v4543 = vcombine.low %v4515, %v4522
        %v4545 = vunpack.c.l.s4 1983009808
        %v4546 = vunpack.c.0.s8 %v4545
        %v4547 = vlaneseq
        %v4548 = vshrl.u32 %v4547, 7
        %v4549 = vsub.s32 %v4546, %v4548
        %v4550 = vrot.slane %v4543, %v4549
        %v4551 = vcombine.low %v4539, %v4540
        %v4553 = vunpack.c.l.s4 1983009808
        %v4554 = vunpack.c.0.s8 %v4553
        %v4555 = vlaneseq
        %v4556 = vshrl.u32 %v4555, 7
        %v4557 = vsub.s32 %v4554, %v4556
        %v4558 = vrot.slane %v4551, %v4557
        %v4559 = vcombine.low %v4531, %v4538
        %v4561 = vunpack.c.l.s4 1983009808
        %v4562 = vunpack.c.0.s8 %v4561
        %v4563 = vlaneseq
        %v4564 = vshrl.u32 %v4563, 7
        %v4565 = vsub.s32 %v4562, %v4564
        %v4566 = vrot.slane %v4559, %v4565
        %v4567 = vcombine.low %v4541, %v4542
        %v4569 = vunpack.c.l.s4 1983009808
        %v4570 = vunpack.c.0.s8 %v4569
        %v4571 = vlaneseq
        %v4572 = vshrl.u32 %v4571, 7
        %v4573 = vsub.s32 %v4570, %v4572
        %v4574 = vrot.slane %v4567, %v4573
        %v4575 = vcombine.low %v4550, %v4558
        %v4576 = vcombine.high %v4550, %v4558
        %v4578 = vunpack.c.l.s4 1934713408
        %v4579 = vunpack.c.0.s8 %v4578
        %v4580 = vlaneseq
        %v4581 = vshrl.u32 %v4580, 7
        %v4582 = vsub.s32 %v4579, %v4581
        %v4583 = vrot.slane %v4575, %v4582
        %v4585 = vunpack.c.l.s4 1934713408
        %v4586 = vunpack.c.0.s8 %v4585
        %v4587 = vlaneseq
        %v4588 = vshrl.u32 %v4587, 7
        %v4589 = vsub.s32 %v4586, %v4588
        %v4590 = vrot.slane %v4576, %v4589
        %v4591 = vcombine.low %v4566, %v4574
        %v4592 = vcombine.high %v4566, %v4574
        %v4594 = vunpack.c.l.s4 1934713408
        %v4595 = vunpack.c.0.s8 %v4594
        %v4596 = vlaneseq
        %v4597 = vshrl.u32 %v4596, 7
        %v4598 = vsub.s32 %v4595, %v4597
        %v4599 = vrot.slane %v4591, %v4598
        %v4601 = vunpack.c.l.s4 1934713408
        %v4602 = vunpack.c.0.s8 %v4601
        %v4603 = vlaneseq
        %v4604 = vshrl.u32 %v4603, 7
        %v4605 = vsub.s32 %v4602, %v4604
        %v4606 = vrot.slane %v4592, %v4605
        %v4607 = vcombine.low %v4583, %v4599
        %v4608 = vcombine.high %v4583, %v4599
        %v4609 = vcombine.low %v4590, %v4606
        %v4610 = vcombine.high %v4590, %v4606
        %4612 = vrot.lane.b32.xlu0 %v4608, 8
        %v4613 = vpop.permute.xlu0 %4612
        %4616 = vrot.lane.b32.xlu0 %v4609, 16
        %v4617 = vpop.permute.xlu0 %4616
        %4620 = vrot.lane.b32.xlu0 %v4610, 24
        %v4621 = vpop.permute.xlu0 %4620
        %v4623 = vsel %vm1644, %v4607, %v4613
        %v4624 = vsel %vm2763, %v4623, %v4617
        %v4625 = vsel %vm2765, %v4624, %v4621
        %v4626 = vpack.c.bf16 %v4625, %v2766
        %v4627 = vld [vmem:[%s805] sm:$0xf]
        %v4628 = vld [vmem:[%s805 + $0x4] sm:$0xf]
        %v4629 = vld [vmem:[%s805 + $0x8] sm:$0xf]
        %v4630 = vld [vmem:[%s805 + $0xc] sm:$0xf]
        %v4631 = vld [vmem:[%s659] sm:$0x1]
        %v4633 = vlaneseq
        %v4634 = vshrl.u32 %v4633, 7
        %v4635 = vsub.s32 0, %v4634
        %v4636 = vrot.slane %v4631, %v4635
        %v4642 = vunpack.c.l.b16 %v4627
        %v4643 = vunpack.c.l.b16 %v4628
        %v4644 = vunpack.c.l.b16 %v4629
        %v4645 = vunpack.c.l.b16 %v4630
        %v4646 = vpack.c.b16 %v4643, %v4642
        %v4647 = vpack.c.b16 %v4645, %v4644
        %v4651 = vsel %vm852, %v4626, 0
        %4653 = vmatprep.subr.bf16.mxu0 0
        %4654 = vmatpush1.bf16.msra.mxu0 %v4646
        %4655 = vmatprep.subr.bf16.mxu0 0
        %4656 = vmatpush1.bf16.msra.mxu0 %v4647
        %4657 = vmatprep.subr.bf16.mxu0 0
        %4658 = vmatpush1.bf16.msra.mxu0 0
        %4659 = vmatprep.subr.bf16.mxu0 0
        %4660 = vmatpush1.bf16.msra.mxu0 0
        %4661 = vmatprep.subr.bf16.mxu0 0
        %4662 = vmatpush1.bf16.msra.mxu0 0
        %4663 = vmatprep.subr.bf16.mxu0 0
        %4664 = vmatpush1.bf16.msra.mxu0 0
        %4665 = vmatprep.subr.bf16.mxu0 0
        %4666 = vmatpush1.bf16.msra.mxu0 0
        %4667 = vmatprep.subr.bf16.mxu0 0
        %4668 = vmatpush1.bf16.msra.mxu0 0
        %4669 = vmatprep.subr.bf16.mxu0 0
        %4670 = vmatpush1.bf16.msra.mxu0 0
        %4671 = vmatprep.subr.bf16.mxu0 0
        %4672 = vmatpush1.bf16.msra.mxu0 0
        %4673 = vmatprep.subr.bf16.mxu0 0
        %4674 = vmatpush1.bf16.msra.mxu0 0
        %4675 = vmatprep.subr.bf16.mxu0 0
        %4676 = vmatpush1.bf16.msra.mxu0 0
        %4677 = vmatprep.subr.bf16.mxu0 0
        %4678 = vmatpush1.bf16.msra.mxu0 0
        %4679 = vmatprep.subr.bf16.mxu0 0
        %4680 = vmatpush1.bf16.msra.mxu0 0
        %4681 = vmatprep.subr.bf16.mxu0 0
        %4682 = vmatpush1.bf16.msra.mxu0 0
        %4683 = vmatprep.subr.bf16.mxu0 0
        %4684 = vmatpush1.bf16.msra.mxu0 0
        %4685 = vmatprep.mubr.bf16.mxu0 0
        %4686 = vmatmul.mubr.bf16.gmra.mrb[0].mxu0 %v4651
        %v4687 = vpop.f32.mrb[0].mxu0
        %v4688 = vadd.f32 %v4636, %v4687
        %v4689 = vpop.f32.mrb[0].mxu0
        %v4690 = vpop.f32.mrb[0].mxu0
        %v4691 = vadd.f32 %v4636, %v4690
        %v4692 = vpop.f32.mrb[0].mxu0
        %4693 = vdwg.mxu0
        %v4694 = vadd.f32 %v826, %v4688
        %v4695 = vadd.f32 %v827, %v4691
        %v4696 = vld [vmem:[%s667] sm:$0x1]
        %v4697 = vld [vmem:[%s675] sm:$0x1]
        %v4698 = vsel %vm852, %v4694, 0.0
        %4699 = vadd.xlane.f32.xlu0 %v4698
        %v4700 = vpop.xlane.xlu0 %4699
        %v4701 = vsel %vm852, %v4695, 0.0
        %4702 = vadd.xlane.f32.xlu0 %v4701
        %v4703 = vpop.xlane.xlu0 %4702
        %v4704 = vrcp.pop 32.0
        %v4705 = vmul.f32 %v4700, %v4704
        %v4706 = vmul.f32 %v4703, %v4704
        %v4707 = vsub.f32 %v4694, %v4705
        %v4708 = vsub.f32 %v4695, %v4706
        %v4709 = vmul.f32 %v4707, %v4707
        %v4710 = vmul.f32 %v4708, %v4708
        %v4711 = vsel %vm852, %v4709, 0.0
        %4712 = vadd.xlane.f32.xlu0 %v4711
        %v4713 = vpop.xlane.xlu0 %4712
        %v4714 = vsel %vm852, %v4710, 0.0
        %4715 = vadd.xlane.f32.xlu0 %v4714
        %v4716 = vpop.xlane.xlu0 %4715
        %v4717 = vmul.f32 %v4713, %v4704
        %v4718 = vmul.f32 %v4716, %v4704
        %v4719 = vadd.f32 %v4717, 1e-05
        %v4720 = vadd.f32 %v4718, 1e-05
        %v4721 = vrsqrt.pop %v4719
        %v4722 = vrsqrt.pop %v4720
        %v4723 = vmul.f32 %v4707, %v4721
        %v4724 = vmul.f32 %v4708, %v4722
        %v4726 = vlaneseq
        %v4727 = vshrl.u32 %v4726, 7
        %v4728 = vsub.s32 0, %v4727
        %v4729 = vrot.slane %v4696, %v4728
        %v4731 = vmul.f32 %v4723, %v4729
        %v4732 = vmul.f32 %v4724, %v4729
        %v4734 = vlaneseq
        %v4735 = vshrl.u32 %v4734, 7
        %v4736 = vsub.s32 0, %v4735
        %v4737 = vrot.slane %v4697, %v4736
        %v4739 = vadd.f32 %v4731, %v4737
        %v4740 = vadd.f32 %v4732, %v4737
        %v4741 = vpack.c.bf16 %v4740, %v4739
        %v4742 = vld [vmem:[%s810] sm:$0xf]
        %v4743 = vld [vmem:[%s810 + $0x4] sm:$0xf]
        %v4744 = vld [vmem:[%s810 + $0x8] sm:$0xf]
        %v4745 = vld [vmem:[%s810 + $0xc] sm:$0xf]
        %v4746 = vld [vmem:[%s683] sm:$0x1]
        %v4748 = vlaneseq
        %v4749 = vshrl.u32 %v4748, 7
        %v4750 = vsub.s32 0, %v4749
        %v4751 = vrot.slane %v4746, %v4750
        %v4757 = vunpack.c.l.b16 %v4742
        %v4758 = vunpack.c.l.b16 %v4743
        %v4759 = vunpack.c.l.b16 %v4744
        %v4760 = vunpack.c.l.b16 %v4745
        %v4761 = vpack.c.b16 %v4758, %v4757
        %v4762 = vpack.c.b16 %v4760, %v4759
        %v4766 = vsel %vm852, %v4741, 0
        %4768 = vmatprep.subr.bf16.mxu0 0
        %4769 = vmatpush1.bf16.msra.mxu0 %v4761
        %4770 = vmatprep.subr.bf16.mxu0 0
        %4771 = vmatpush1.bf16.msra.mxu0 %v4762
        %4772 = vmatprep.subr.bf16.mxu0 0
        %4773 = vmatpush1.bf16.msra.mxu0 0
        %4774 = vmatprep.subr.bf16.mxu0 0
        %4775 = vmatpush1.bf16.msra.mxu0 0
        %4776 = vmatprep.subr.bf16.mxu0 0
        %4777 = vmatpush1.bf16.msra.mxu0 0
        %4778 = vmatprep.subr.bf16.mxu0 0
        %4779 = vmatpush1.bf16.msra.mxu0 0
        %4780 = vmatprep.subr.bf16.mxu0 0
        %4781 = vmatpush1.bf16.msra.mxu0 0
        %4782 = vmatprep.subr.bf16.mxu0 0
        %4783 = vmatpush1.bf16.msra.mxu0 0
        %4784 = vmatprep.subr.bf16.mxu0 0
        %4785 = vmatpush1.bf16.msra.mxu0 0
        %4786 = vmatprep.subr.bf16.mxu0 0
        %4787 = vmatpush1.bf16.msra.mxu0 0
        %4788 = vmatprep.subr.bf16.mxu0 0
        %4789 = vmatpush1.bf16.msra.mxu0 0
        %4790 = vmatprep.subr.bf16.mxu0 0
        %4791 = vmatpush1.bf16.msra.mxu0 0
        %4792 = vmatprep.subr.bf16.mxu0 0
        %4793 = vmatpush1.bf16.msra.mxu0 0
        %4794 = vmatprep.subr.bf16.mxu0 0
        %4795 = vmatpush1.bf16.msra.mxu0 0
        %4796 = vmatprep.subr.bf16.mxu0 0
        %4797 = vmatpush1.bf16.msra.mxu0 0
        %4798 = vmatprep.subr.bf16.mxu0 0
        %4799 = vmatpush1.bf16.msra.mxu0 0
        %4800 = vmatprep.mubr.bf16.mxu0 0
        %4801 = vmatmul.mubr.bf16.gmra.mrb[0].mxu0 %v4766
        %v4802 = vpop.f32.mrb[0].mxu0
        %v4803 = vadd.f32 %v4751, %v4802
        %v4804 = vpop.f32.mrb[0].mxu0
        %v4805 = vpop.f32.mrb[0].mxu0
        %v4806 = vadd.f32 %v4751, %v4805
        %v4807 = vpop.f32.mrb[0].mxu0
        %4808 = vdwg.mxu0
        %v4809 = vmax.f32 %v4803, 0.0
        %v4810 = vmax.f32 %v4806, 0.0
        %v4811 = vpack.c.bf16 %v4810, %v4809
        %v4812 = vld [vmem:[%s815] sm:$0xf]
        %v4813 = vld [vmem:[%s815 + $0x4] sm:$0xf]
        %v4814 = vld [vmem:[%s815 + $0x8] sm:$0xf]
        %v4815 = vld [vmem:[%s815 + $0xc] sm:$0xf]
        %v4816 = vld [vmem:[%s815 + $0x10] sm:$0xf]
        %v4817 = vld [vmem:[%s815 + $0x14] sm:$0xf]
        %v4818 = vld [vmem:[%s815 + $0x18] sm:$0xf]
        %v4819 = vld [vmem:[%s815 + $0x1c] sm:$0xf]
        %v4820 = vld [vmem:[%s691] sm:$0x1]
        %v4822 = vlaneseq
        %v4823 = vshrl.u32 %v4822, 7
        %v4824 = vsub.s32 0, %v4823
        %v4825 = vrot.slane %v4820, %v4824
        %v4835 = vunpack.c.l.b16 %v4812
        %v4836 = vunpack.c.l.b16 %v4813
        %v4837 = vunpack.c.l.b16 %v4814
        %v4838 = vunpack.c.l.b16 %v4815
        %v4839 = vunpack.c.l.b16 %v4816
        %v4840 = vunpack.c.l.b16 %v4817
        %v4841 = vunpack.c.l.b16 %v4818
        %v4842 = vunpack.c.l.b16 %v4819
        %v4843 = vpack.c.b16 %v4836, %v4835
        %v4844 = vpack.c.b16 %v4838, %v4837
        %v4845 = vpack.c.b16 %v4840, %v4839
        %v4846 = vpack.c.b16 %v4842, %v4841
        %vm4851 = vcmask 523264
        %v4853 = vsel %vm4851, %v4811, 0
        %4855 = vmatprep.subr.bf16.mxu0 0
        %4856 = vmatpush1.bf16.msra.mxu0 %v4843
        %4857 = vmatprep.subr.bf16.mxu0 0
        %4858 = vmatpush1.bf16.msra.mxu0 %v4844
        %4859 = vmatprep.subr.bf16.mxu0 0
        %4860 = vmatpush1.bf16.msra.mxu0 %v4845
        %4861 = vmatprep.subr.bf16.mxu0 0
        %4862 = vmatpush1.bf16.msra.mxu0 %v4846
        %4863 = vmatprep.subr.bf16.mxu0 0
        %4864 = vmatpush1.bf16.msra.mxu0 0
        %4865 = vmatprep.subr.bf16.mxu0 0
        %4866 = vmatpush1.bf16.msra.mxu0 0
        %4867 = vmatprep.subr.bf16.mxu0 0
        %4868 = vmatpush1.bf16.msra.mxu0 0
        %4869 = vmatprep.subr.bf16.mxu0 0
        %4870 = vmatpush1.bf16.msra.mxu0 0
        %4871 = vmatprep.subr.bf16.mxu0 0
        %4872 = vmatpush1.bf16.msra.mxu0 0
        %4873 = vmatprep.subr.bf16.mxu0 0
        %4874 = vmatpush1.bf16.msra.mxu0 0
        %4875 = vmatprep.subr.bf16.mxu0 0
        %4876 = vmatpush1.bf16.msra.mxu0 0
        %4877 = vmatprep.subr.bf16.mxu0 0
        %4878 = vmatpush1.bf16.msra.mxu0 0
        %4879 = vmatprep.subr.bf16.mxu0 0
        %4880 = vmatpush1.bf16.msra.mxu0 0
        %4881 = vmatprep.subr.bf16.mxu0 0
        %4882 = vmatpush1.bf16.msra.mxu0 0
        %4883 = vmatprep.subr.bf16.mxu0 0
        %4884 = vmatpush1.bf16.msra.mxu0 0
        %4885 = vmatprep.subr.bf16.mxu0 0
        %4886 = vmatpush1.bf16.msra.mxu0 0
        %4887 = vmatprep.mubr.bf16.mxu0 0
        %4888 = vmatmul.mubr.bf16.gmra.mrb[0].mxu0 %v4853
        %v4889 = vpop.f32.mrb[0].mxu0
        %v4890 = vadd.f32 %v4825, %v4889
        %v4891 = vpop.f32.mrb[0].mxu0
        %v4892 = vpop.f32.mrb[0].mxu0
        %v4893 = vadd.f32 %v4825, %v4892
        %v4894 = vpop.f32.mrb[0].mxu0
        %4895 = vdwg.mxu0
        %v4896 = vadd.f32 %v4739, %v4890
        %v4897 = vadd.f32 %v4740, %v4893
        %v4898 = vld [vmem:[%s699] sm:$0x1]
        %v4899 = vld [vmem:[%s707] sm:$0x1]
        %v4900 = vsel %vm852, %v4896, 0.0
        %4901 = vadd.xlane.f32.xlu0 %v4900
        %v4902 = vpop.xlane.xlu0 %4901
        %v4903 = vsel %vm852, %v4897, 0.0
        %4904 = vadd.xlane.f32.xlu0 %v4903
        %v4905 = vpop.xlane.xlu0 %4904
        %v4906 = vmul.f32 %v4902, %v4704
        %v4907 = vmul.f32 %v4905, %v4704
        %v4908 = vsub.f32 %v4896, %v4906
        %v4909 = vsub.f32 %v4897, %v4907
        %v4910 = vmul.f32 %v4908, %v4908
        %v4911 = vmul.f32 %v4909, %v4909
        %v4912 = vsel %vm852, %v4910, 0.0
        %4913 = vadd.xlane.f32.xlu0 %v4912
        %v4914 = vpop.xlane.xlu0 %4913
        %v4915 = vsel %vm852, %v4911, 0.0
        %4916 = vadd.xlane.f32.xlu0 %v4915
        %v4917 = vpop.xlane.xlu0 %4916
        %v4918 = vmul.f32 %v4914, %v4704
        %v4919 = vmul.f32 %v4917, %v4704
        %v4920 = vadd.f32 %v4918, 1e-05
        %v4921 = vadd.f32 %v4919, 1e-05
        %v4922 = vrsqrt.pop %v4920
        %v4923 = vrsqrt.pop %v4921
        %v4924 = vmul.f32 %v4908, %v4922
        %v4925 = vmul.f32 %v4909, %v4923
        %v4927 = vlaneseq
        %v4928 = vshrl.u32 %v4927, 7
        %v4929 = vsub.s32 0, %v4928
        %v4930 = vrot.slane %v4898, %v4929
        %v4932 = vmul.f32 %v4924, %v4930
        %v4933 = vmul.f32 %v4925, %v4930
        %v4935 = vlaneseq
        %v4936 = vshrl.u32 %v4935, 7
        %v4937 = vsub.s32 0, %v4936
        %v4938 = vrot.slane %v4899, %v4937
        %v4940 = vadd.f32 %v4932, %v4938
        %v4941 = vadd.f32 %v4933, %v4938
        %4942 = vst.msk [vmem:[#allocation2] sm:$0xff] %vm852, %v4940
        %4943 = vst.msk [vmem:[#allocation2 + $0x8] sm:$0xff] %vm852, %v4941
        %p4944 = scmp.eq.s32.totalorder %s40, 1
        // Predicated region
        $region121: #{tpu_custom_call.1} parent=79 // pred_check
          %p4945 = pneg %p4944
        $region122: #{tpu_custom_call.1} parent=79 // pred_check_branch
          %4947 = sbr.rel (%p4945) target = $region124
        $region123: #{tpu_custom_call.1} parent=79 // pred_region
          %v4948 = vpack.c.bf16 %v4941, %v4940
          %v4949 = vld [vmem:[%s13] sm:$0xf]
          %v4950 = vld [vmem:[%s13 + $0x4] sm:$0xf]
          %v4951 = vld [vmem:[%s13 + $0x8] sm:$0xf]
          %v4952 = vld [vmem:[%s13 + $0xc] sm:$0xf]
          %v4953 = vld [vmem:[%s14] sm:$0x1]
          %v4955 = vlaneseq
          %v4956 = vshrl.u32 %v4955, 7
          %v4957 = vsub.s32 0, %v4956
          %v4958 = vrot.slane %v4953, %v4957
          %v4964 = vunpack.c.l.b16 %v4949
          %v4965 = vunpack.c.l.b16 %v4950
          %v4966 = vunpack.c.l.b16 %v4951
          %v4967 = vunpack.c.l.b16 %v4952
          %v4968 = vpack.c.b16 %v4965, %v4964
          %v4969 = vpack.c.b16 %v4967, %v4966
          %v4973 = vsel %vm852, %v4948, 0
          %4975 = vmatprep.subr.bf16.mxu0 0
          %4976 = vmatpush1.bf16.msra.mxu0 %v4968
          %4977 = vmatprep.subr.bf16.mxu0 0
          %4978 = vmatpush1.bf16.msra.mxu0 %v4969
          %4979 = vmatprep.subr.bf16.mxu0 0
          %4980 = vmatpush1.bf16.msra.mxu0 0
          %4981 = vmatprep.subr.bf16.mxu0 0
          %4982 = vmatpush1.bf16.msra.mxu0 0
          %4983 = vmatprep.subr.bf16.mxu0 0
          %4984 = vmatpush1.bf16.msra.mxu0 0
          %4985 = vmatprep.subr.bf16.mxu0 0
          %4986 = vmatpush1.bf16.msra.mxu0 0
          %4987 = vmatprep.subr.bf16.mxu0 0
          %4988 = vmatpush1.bf16.msra.mxu0 0
          %4989 = vmatprep.subr.bf16.mxu0 0
          %4990 = vmatpush1.bf16.msra.mxu0 0
          %4991 = vmatprep.subr.bf16.mxu0 0
          %4992 = vmatpush1.bf16.msra.mxu0 0
          %4993 = vmatprep.subr.bf16.mxu0 0
          %4994 = vmatpush1.bf16.msra.mxu0 0
          %4995 = vmatprep.subr.bf16.mxu0 0
          %4996 = vmatpush1.bf16.msra.mxu0 0
          %4997 = vmatprep.subr.bf16.mxu0 0
          %4998 = vmatpush1.bf16.msra.mxu0 0
          %4999 = vmatprep.subr.bf16.mxu0 0
          %5000 = vmatpush1.bf16.msra.mxu0 0
          %5001 = vmatprep.subr.bf16.mxu0 0
          %5002 = vmatpush1.bf16.msra.mxu0 0
          %5003 = vmatprep.subr.bf16.mxu0 0
          %5004 = vmatpush1.bf16.msra.mxu0 0
          %5005 = vmatprep.subr.bf16.mxu0 0
          %5006 = vmatpush1.bf16.msra.mxu0 0
          %5007 = vmatprep.mubr.bf16.mxu0 0
          %5008 = vmatmul.mubr.bf16.gmra.mrb[0].mxu0 %v4973
          %v5009 = vpop.f32.mrb[0].mxu0
          %v5010 = vadd.f32 %v4958, %v5009
          %v5011 = vpop.f32.mrb[0].mxu0
          %v5012 = vpop.f32.mrb[0].mxu0
          %v5013 = vadd.f32 %v4958, %v5012
          %v5014 = vpop.f32.mrb[0].mxu0
          %5015 = vdwg.mxu0
          %5016 = vst [vmem:[#allocation18] sm:$0xff] %v5010
          %5017 = vst [vmem:[#allocation18 + $0x8] sm:$0xff] %v5013
        $region124: #{tpu_custom_call.1} parent=79 // pred_fallthru
          _
        // Predicated region
        $region125: #{tpu_custom_call.1} parent=79 // pred_check
          %p5018 = pneg %p428
        $region126: #{tpu_custom_call.1} parent=79 // pred_check_branch
          %5020 = sbr.rel (%p5018) target = $region128
        $region127: #{tpu_custom_call.1} parent=79 // pred_region
          %s5022 = ssub.s32 256, 256
          %5023 = vsyncadd [#allocation5], %s5022
          %s5024 = sshll.u32 [#allocation18], 4
          %s5025 = int_to_ptr.vmem [resolvable:$true] %s5024
          %5030 = dma.vmem_to_hbm [thread:$0]  %s5025, 256, %s15, [#allocation5], 128, 128, 8
        $region128: #{tpu_custom_call.1} parent=79 // pred_fallthru
          _
        // Predicated region
        $region129: #{tpu_custom_call.1} parent=79 // pred_check
          %p5031 = pneg %p428
        $region130: #{tpu_custom_call.1} parent=79 // pred_check_branch
          %5033 = sbr.rel (%p5031) target = $region132
        $region131: #{tpu_custom_call.1} parent=79 // pred_region
          %5034 = dma.done [#allocation5], 256
        $region132: #{tpu_custom_call.1} parent=79 // pred_fallthru
          _
      $region80: #{tpu_custom_call.1} parent=5 // pred_fallthru
        _
      %p5035 = scmp.le.s32.totalorder 2, %s35
      // Predicated region
      $region133: #{tpu_custom_call.1} parent=5 // pred_check
        %p5036 = pneg %p5035
      $region134: #{tpu_custom_call.1} parent=5 // pred_check_branch
        %5038 = sbr.rel (%p5036) target = $region136
      $region135: #{tpu_custom_call.1} parent=5 // pred_region
        %s5039 = ssub.s32 %s35, 2
      $region136: #{tpu_custom_call.1} parent=5 // pred_fallthru
        _
    $region6: #{tpu_custom_call.1} parent=1 // loop_footer
      %s39 = sadd.s32 1, %s35
    $region7: #{tpu_custom_call.1} parent=1 // loop_footer_branch
      %34 = sbr.rel target = $region3
    $region8: #{tpu_custom_call.1} parent=1 // loop_exit
      _
    %5040 = vsyncpa [#allocation4], 1
    %s5041 = scalar_lea.sflag [#allocation4], 1
    %5042 = vsyncpa %s5041, 1
    %5043 = vsyncpa [#allocation7], 1
    %s5044 = scalar_lea.sflag [#allocation7], 1
    %5045 = vsyncpa %s5044, 1
    %5046 = vsyncpa [#allocation10], 1
    %s5047 = scalar_lea.sflag [#allocation10], 1
    %5048 = vsyncpa %s5047, 1
    %5049 = vsyncpa [#allocation13], 1
    %s5050 = scalar_lea.sflag [#allocation13], 1
    %5051 = vsyncpa %s5050, 1
    %5052 = vsyncpa [#allocation16], 1
    %s5053 = scalar_lea.sflag [#allocation16], 1
    %5054 = vsyncpa %s5053, 1
    %5055 = vsyncpa [#allocation5], 1
    %s5056 = scalar_lea.sflag [#allocation5], 1
    %5057 = vsyncpa %s5056, 1

</llo_original>
